<compile_context>
chip_gen: v7x
topology: tpu7x:2x2x1
jax: 0.10.0
libtpu: 0.0.40
codegen_flags: <defaults>
</compile_context>

<pallas_src>
import math
import jax
import jax.numpy as jnp
from jax import lax
from jax.experimental import pallas as pl
from jax.experimental.pallas import tpu as pltpu

# ---- small synthetic "bert-base" configuration ----
B = 2                  # batch
S = 8                  # sequence length
H = 32                 # hidden size
NUM_HEADS = 4
HEAD_DIM = H // NUM_HEADS
FFN = 4 * H            # intermediate size (= 128)
VOCAB = 64             # len(vocab)  (classifier output size)
VOCAB_PAD = 128        # lane-dense classifier width (multiple of 128)
N_LAYERS = 2
PAD_ID = 0             # vocab['<pad>'] (only used by the training-loss path)

assert FFN == VOCAB_PAD == 128  # wide_pack rows are all 128 lanes wide


# ---------------------------------------------------------------------------
# helpers usable both inside the kernel and in plain JAX (all f32 math)
# ---------------------------------------------------------------------------
def _layernorm(x, g, b, eps=1e-12):
    mu = jnp.mean(x, axis=-1, keepdims=True)
    var = jnp.mean((x - mu) ** 2, axis=-1, keepdims=True)
    return (x - mu) * jax.lax.rsqrt(var + eps) * g + b


def _gelu(x):
    # tanh approximation of GELU (EUP-friendly on TPU).
    # TODO(synk): PyTorch nn.GELU defaults to the exact erf form; tiny numerical diff.
    c = math.sqrt(2.0 / math.pi)
    return 0.5 * x * (1.0 + jnp.tanh(c * (x + 0.044715 * x * x * x)))


# ---------------------------------------------------------------------------
# Fused forward kernel (one grid step = one batch element):
#   N_LAYERS encoder layers + classifier + softmax.
#
# S1/S2 mask semantics (matches get_s1_s2_mask):
#   - S1 rows (i <  s1) attend only to S1 columns (j <  s1)
#   - S2 rows (i >= s1) attend to all S1 columns and causally to S2 (j <= i)
# ---------------------------------------------------------------------------
def fused_sft_kernel(s1_ref,                         # scalar prefetch (SMEM)
                     h_ref, wqkv_ref, wo_ref, w1_ref, w2_ref,
                     clsw_ref, ln_ref, wide_ref,     # inputs (VMEM)
                     out_ref):                       # output (VMEM)
    f32 = jnp.float32
    bf16 = jnp.bfloat16
    scale = 1.0 / math.sqrt(HEAD_DIM)

    b = pl.program_id(0)
    s1 = s1_ref[b]

    h = h_ref[...]                                   # (S, H) f32
    wide = wide_ref[...]                             # (2*N_LAYERS+1, 128) f32

    # Additive attention mask, built ONCE per batch element from an SMEM scalar +
    # 2-D iotas (no (B,S,S) HBM mask traffic), broadcast onto the batched scores.
    row = lax.broadcasted_iota(jnp.int32, (S, S), 0)     # query position i
    col = lax.broadcasted_iota(jnp.int32, (S, S), 1)     # key position j
    allowed = (col < s1) | ((row >= s1) & (col <= row))
    neg = jnp.where(allowed, 0.0, -1e9).astype(f32)      # (S, S)

    for l in range(N_LAYERS):                            # static unroll, N_LAYERS=2
        ln = ln_ref[l]                                   # (6, H): bo,g1,b1,b2,g2,b2'
        bqkv = wide[2 * l:2 * l + 1, 0:3 * H]            # (1, 3H)
        b1 = wide[2 * l + 1:2 * l + 2, :]                # (1, FFN)

        # fused QKV projection: one MXU matmul, bf16 operands, f32 accumulate
        qkv = jnp.dot(h.astype(bf16), wqkv_ref[l],
                      preferred_element_type=f32) + bqkv        # (S, 3H) f32
        qkv = qkv.astype(bf16)

        # assemble head-leading (NUM_HEADS, S, HEAD_DIM) operands as values
        q = jnp.stack([qkv[:, n * HEAD_DIM:(n + 1) * HEAD_DIM]
                       for n in range(NUM_HEADS)], axis=0)
        k = jnp.stack([qkv[:, H + n * HEAD_DIM:H + (n + 1) * HEAD_DIM]
                       for n in range(NUM_HEADS)], axis=0)
        v = jnp.stack([qkv[:, 2 * H + n * HEAD_DIM:2 * H + (n + 1) * HEAD_DIM]
                       for n in range(NUM_HEADS)], axis=0)

        # ONE batched QK^T + ONE batched softmax + ONE batched PV product
        sc = jnp.einsum('nqd,nkd->nqk', q, k,
                        preferred_element_type=f32) * scale + neg[None]   # (NH,S,S)
        sc = sc - jnp.max(sc, axis=-1, keepdims=True)
        p = jnp.exp(sc)
        p = p * pl.reciprocal(jnp.sum(p, axis=-1, keepdims=True), approx=True)
        ctx = jnp.einsum('nqk,nkd->nqd', p.astype(bf16), v,
                         preferred_element_type=f32)                      # (NH,S,HD)

        # output projection folded over heads (WO pre-split per head):
        #   attn = bo + sum_n ctx_n @ WO_n     -- no scratch, no concatenate
        attn = ln[0:1]                                    # bo, (1, H)
        for n in range(NUM_HEADS):
            attn = attn + jnp.dot(ctx[n].astype(bf16), wo_ref[l, n],
                                  preferred_element_type=f32)
        h1 = _layernorm(h + attn, ln[1:2], ln[2:3])

        # feed-forward
        ff = jnp.dot(h1.astype(bf16), w1_ref[l],
                     preferred_element_type=f32) + b1
        ff = _gelu(ff)
        ff = jnp.dot(ff.astype(bf16), w2_ref[l],
                     preferred_element_type=f32) + ln[3:4]
        h = _layernorm(h1 + ff, ln[4:5], ln[5:6])

    # classifier + softmax over the lane-dense padded vocab; padded columns carry
    # a -1e9 bias so their probability underflows to exactly 0.
    cls_b = wide[2 * N_LAYERS:2 * N_LAYERS + 1, :]        # (1, 128)
    logits = jnp.dot(h.astype(bf16), clsw_ref[...],
                     preferred_element_type=f32) + cls_b  # (S, 128)
    logits = logits - jnp.max(logits, axis=-1, keepdims=True)
    pr = jnp.exp(logits)
    # exact reciprocal at the output so probabilities sum to 1 within f32 rounding
    out_ref[...] = pr * pl.reciprocal(jnp.sum(pr, axis=-1, keepdims=True), approx=False)


# ---------------------------------------------------------------------------
# deterministic parameter init (stacked / packed weights; MXU operands in bf16)
# ---------------------------------------------------------------------------
def init_params(key):
    keys = iter(jax.random.split(key, 16))

    def dense(shape):
        return jax.random.normal(next(keys), shape, jnp.float32) * 0.02

    # lane-dense classifier: weight zero-padded to 128 cols, bias -1e9 on padded lanes
    cls_w = jnp.pad(dense((H, VOCAB)), ((0, 0), (0, VOCAB_PAD - VOCAB))).astype(jnp.bfloat16)
    cls_b = jnp.concatenate([jnp.zeros((VOCAB,), jnp.float32),
                             jnp.full((VOCAB_PAD - VOCAB,), -1e9, jnp.float32)])

    # packed H-wide side params, per layer: [bo, ln1_g, ln1_b, b2, ln2_g, ln2_b]
    one_layer = jnp.stack([jnp.zeros((H,)), jnp.ones((H,)), jnp.zeros((H,)),
                           jnp.zeros((H,)), jnp.ones((H,)), jnp.zeros((H,))])
    ln_pack = jnp.stack([one_layer] * N_LAYERS).astype(jnp.float32)       # (L, 6, H)

    # packed 128-lane-wide side params: rows [2l]=bqkv (3H used), [2l+1]=b1, last=cls_b
    rows = []
    for _ in range(N_LAYERS):
        rows.append(jnp.zeros((VOCAB_PAD,), jnp.float32))   # bqkv (zeros) + lane pad
        rows.append(jnp.zeros((FFN,), jnp.float32))          # b1 (FFN == 128)
    rows.append(cls_b)
    wide_pack = jnp.stack(rows).astype(jnp.float32)          # (2L+1, 128)

    return {
        # embeddings (JAX glue)
        "word_emb": dense((VOCAB, H)),
        "pos_emb": dense((S, H)),
        "type_emb": dense((1, H)),
        "emb_ln_g": jnp.ones((1, H), jnp.float32),
        "emb_ln_b": jnp.zeros((1, H), jnp.float32),
        # encoder layers, stacked on a leading layer axis (bf16 MXU operands)
        "wqkv": jnp.stack([dense((H, 3 * H)) for _ in range(N_LAYERS)]).astype(jnp.bfloat16),
        # WO pre-split per head: (L, NUM_HEADS, HEAD_DIM, H)
        "wo": jnp.stack([dense((H, H)).reshape(NUM_HEADS, HEAD_DIM, H)
                         for _ in range(N_LAYERS)]).astype(jnp.bfloat16),
        "w1": jnp.stack([dense((H, FFN)) for _ in range(N_LAYERS)]).astype(jnp.bfloat16),
        "w2": jnp.stack([dense((FFN, H)) for _ in range(N_LAYERS)]).astype(jnp.bfloat16),
        "cls_w": cls_w,
        # packed small params
        "ln_pack": ln_pack,
        "wide_pack": wide_pack,
    }


# ---------------------------------------------------------------------------
# SFTLanguageModel.forward (inference path: y=None -> softmax(classify(bert(x))))
# ---------------------------------------------------------------------------
def sft_forward(x, s1_lengths, params):
    # embeddings (gather + add + layernorm): glue in plain JAX
    emb = (params["word_emb"][x]
           + params["pos_emb"][None, :, :]
           + params["type_emb"][None, :, :])
    h0 = _layernorm(emb, params["emb_ln_g"], params["emb_ln_b"])          # (B, S, H)

    vmem = pl.BlockSpec(memory_space=pltpu.MemorySpace.VMEM)              # whole-array, resident

    grid_spec = pltpu.PrefetchScalarGridSpec(
        num_scalar_prefetch=1,                    # s1_lengths -> SMEM
        grid=(B,),                                # one batch element per grid step
        in_specs=[
            pl.BlockSpec((None, S, H), lambda b, s1: (b, 0, 0)),          # hidden
            vmem,                                                          # wqkv
            vmem,                                                          # wo (head-split)
            vmem,                                                          # w1
            vmem,                                                          # w2
            vmem,                                                          # cls_w
            vmem,                                                          # ln_pack
            vmem,                                                          # wide_pack
        ],
        out_specs=pl.BlockSpec((None, S, VOCAB_PAD), lambda b, s1: (b, 0, 0)),
    )

    probs_padded = pl.pallas_call(
        fused_sft_kernel,
        out_shape=jax.ShapeDtypeStruct((B, S, VOCAB_PAD), jnp.float32),
        grid_spec=grid_spec,
        compiler_params=pltpu.CompilerParams(
            dimension_semantics=("parallel",)),   # shards across v7x's 2 TCs; no-op on v5e/v6e
    )(s1_lengths.astype(jnp.int32), h0,
      params["wqkv"], params["wo"], params["w1"], params["w2"],
      params["cls_w"], params["ln_pack"], params["wide_pack"])

    # Dropout(0.1) is identity in eval/inference mode.
    # TODO(synk): training-mode dropout + pad-masked cross-entropy loss path (y != None).
    return probs_padded[:, :, :VOCAB]


if __name__ == "__main__":
    key = jax.random.PRNGKey(0)
    kp, kx = jax.random.split(key)
    params = init_params(kp)

    x = jax.random.randint(kx, (B, S), 1, VOCAB, dtype=jnp.int32)     # token ids
    s1_lengths = jnp.array([3, 5], dtype=jnp.int32)

    probs = sft_forward(x, s1_lengths, params)
    jax.block_until_ready(probs)

    assert probs.shape == (B, S, VOCAB)
    assert bool(jnp.all(jnp.isfinite(probs)))
    assert bool(jnp.allclose(jnp.sum(probs, axis=-1), 1.0, atol=1e-4))
    print("KERNEL_OK")
</pallas_src>

<mosaic_0001>
module attributes {stable_mosaic.version = 11 : i64} {
  func.func @fused_sft_kernel(%arg0: i32, %arg1: memref<2xi32, #tpu.memory_space<smem>>, %arg2: memref<1x8x32xf32, #tpu.memory_space<vmem>>, %arg3: memref<2x32x96xbf16, #tpu.memory_space<vmem>>, %arg4: memref<2x4x8x32xbf16, #tpu.memory_space<vmem>>, %arg5: memref<2x32x128xbf16, #tpu.memory_space<vmem>>, %arg6: memref<2x128x32xbf16, #tpu.memory_space<vmem>>, %arg7: memref<32x128xbf16, #tpu.memory_space<vmem>>, %arg8: memref<2x6x32xf32, #tpu.memory_space<vmem>>, %arg9: memref<5x128xf32, #tpu.memory_space<vmem>>, %arg10: memref<1x8x128xf32, #tpu.memory_space<vmem>>) attributes {dimension_semantics = [#tpu.dimension_semantics<parallel>], iteration_bounds = array<i64: 2>, scalar_prefetch = 1 : i64, scratch_operands = 0 : i64, tpu.core_type = #tpu.core_type<tc>, window_params = [{transform_indices = @transform_0, window_bounds = array<i64: 1, 8, 32>}, {pipeline_mode = #tpu.pipeline_mode<synchronous>, transform_indices = @transform_1, window_bounds = array<i64: 2, 32, 96>}, {pipeline_mode = #tpu.pipeline_mode<synchronous>, transform_indices = @transform_2, window_bounds = array<i64: 2, 4, 8, 32>}, {pipeline_mode = #tpu.pipeline_mode<synchronous>, transform_indices = @transform_3, window_bounds = array<i64: 2, 32, 128>}, {pipeline_mode = #tpu.pipeline_mode<synchronous>, transform_indices = @transform_4, window_bounds = array<i64: 2, 128, 32>}, {pipeline_mode = #tpu.pipeline_mode<synchronous>, transform_indices = @transform_5, window_bounds = array<i64: 32, 128>}, {pipeline_mode = #tpu.pipeline_mode<synchronous>, transform_indices = @transform_6, window_bounds = array<i64: 2, 6, 32>}, {pipeline_mode = #tpu.pipeline_mode<synchronous>, transform_indices = @transform_7, window_bounds = array<i64: 5, 128>}, {transform_indices = @transform_8, window_bounds = array<i64: 1, 8, 128>}]} {
    %0 = arith.index_cast %arg0 : i32 to index
    %1 = memref.load %arg1[%0] : memref<2xi32, #tpu.memory_space<smem>>
    %c0 = arith.constant 0 : index
    %c0_0 = arith.constant 0 : index
    %c0_1 = arith.constant 0 : index
    %2 = vector.load %arg2[%c0, %c0_0, %c0_1] : memref<1x8x32xf32, #tpu.memory_space<vmem>>, vector<1x8x32xf32>
    %3 = vector.shape_cast %2 : vector<1x8x32xf32> to vector<8x32xf32>
    %c0_2 = arith.constant 0 : index
    %c0_3 = arith.constant 0 : index
    %4 = vector.load %arg9[%c0_2, %c0_3] : memref<5x128xf32, #tpu.memory_space<vmem>>, vector<5x128xf32>
    %5 = tpu.iota {dimensions = array<i32: 0>} : vector<8x8xi32>
    %6 = tpu.iota {dimensions = array<i32: 1>} : vector<8x8xi32>
    %7 = vector.broadcast %1 : i32 to vector<8x8xi32>
    %8 = arith.cmpi slt, %6, %7 : vector<8x8xi32>
    %9 = vector.broadcast %1 : i32 to vector<8x8xi32>
    %10 = arith.cmpi sge, %5, %9 : vector<8x8xi32>
    %11 = arith.cmpi sle, %6, %5 : vector<8x8xi32>
    %12 = arith.andi %10, %11 : vector<8x8xi1>
    %13 = arith.ori %8, %12 : vector<8x8xi1>
    %cst = arith.constant 0.000000e+00 : f32
    %cst_4 = arith.constant -1.000000e+09 : f32
    %14 = vector.broadcast %cst : f32 to vector<8x8xf32>
    %15 = vector.broadcast %cst_4 : f32 to vector<8x8xf32>
    %16 = arith.select %13, %14, %15 : vector<8x8xi1>, vector<8x8xf32>
    %c0_5 = arith.constant 0 : index
    %c0_6 = arith.constant 0 : index
    %c0_7 = arith.constant 0 : index
    %17 = vector.load %arg8[%c0_5, %c0_6, %c0_7] : memref<2x6x32xf32, #tpu.memory_space<vmem>>, vector<1x6x32xf32>
    %18 = vector.shape_cast %17 : vector<1x6x32xf32> to vector<6x32xf32>
    %19 = vector.extract_strided_slice %4 {offsets = [0, 0], sizes = [1, 96], strides = [1, 1]} : vector<5x128xf32> to vector<1x96xf32>
    %20 = vector.extract_strided_slice %4 {offsets = [1, 0], sizes = [1, 128], strides = [1, 1]} : vector<5x128xf32> to vector<1x128xf32>
    %21 = arith.truncf %3 : vector<8x32xf32> to vector<8x32xbf16>
    %c0_8 = arith.constant 0 : index
    %c0_9 = arith.constant 0 : index
    %c0_10 = arith.constant 0 : index
    %22 = vector.load %arg3[%c0_8, %c0_9, %c0_10] : memref<2x32x96xbf16, #tpu.memory_space<vmem>>, vector<1x32x96xbf16>
    %23 = vector.shape_cast %22 : vector<1x32x96xbf16> to vector<32x96xbf16>
    %cst_11 = arith.constant dense<0.000000e+00> : vector<8x96xf32>
    %24 = tpu.matmul %21, %23, %cst_11 {dimension_numbers = #tpu.dot_dimension_numbers<[1], [0], [0], [1], [0, 0, 1, 1], [], []>} : vector<8x32xbf16>, vector<32x96xbf16>, vector<8x96xf32> -> vector<8x96xf32>
    %25 = vector.broadcast %19 : vector<1x96xf32> to vector<8x96xf32>
    %26 = arith.addf %24, %25 : vector<8x96xf32>
    %27 = arith.truncf %26 : vector<8x96xf32> to vector<8x96xbf16>
    %28 = vector.extract_strided_slice %27 {offsets = [0, 0], sizes = [8, 8], strides = [1, 1]} : vector<8x96xbf16> to vector<8x8xbf16>
    %29 = vector.extract_strided_slice %27 {offsets = [0, 8], sizes = [8, 8], strides = [1, 1]} : vector<8x96xbf16> to vector<8x8xbf16>
    %30 = vector.extract_strided_slice %27 {offsets = [0, 16], sizes = [8, 8], strides = [1, 1]} : vector<8x96xbf16> to vector<8x8xbf16>
    %31 = vector.extract_strided_slice %27 {offsets = [0, 24], sizes = [8, 8], strides = [1, 1]} : vector<8x96xbf16> to vector<8x8xbf16>
    %32 = vector.shape_cast %28 : vector<8x8xbf16> to vector<1x8x8xbf16>
    %33 = vector.shape_cast %29 : vector<8x8xbf16> to vector<1x8x8xbf16>
    %34 = vector.shape_cast %30 : vector<8x8xbf16> to vector<1x8x8xbf16>
    %35 = vector.shape_cast %31 : vector<8x8xbf16> to vector<1x8x8xbf16>
    %36 = tpu.concatenate %32, %33, %34, %35 in 0 : vector<1x8x8xbf16>, vector<1x8x8xbf16>, vector<1x8x8xbf16>, vector<1x8x8xbf16> -> vector<4x8x8xbf16>
    %37 = vector.extract_strided_slice %27 {offsets = [0, 32], sizes = [8, 8], strides = [1, 1]} : vector<8x96xbf16> to vector<8x8xbf16>
    %38 = vector.extract_strided_slice %27 {offsets = [0, 40], sizes = [8, 8], strides = [1, 1]} : vector<8x96xbf16> to vector<8x8xbf16>
    %39 = vector.extract_strided_slice %27 {offsets = [0, 48], sizes = [8, 8], strides = [1, 1]} : vector<8x96xbf16> to vector<8x8xbf16>
    %40 = vector.extract_strided_slice %27 {offsets = [0, 56], sizes = [8, 8], strides = [1, 1]} : vector<8x96xbf16> to vector<8x8xbf16>
    %41 = vector.shape_cast %37 : vector<8x8xbf16> to vector<1x8x8xbf16>
    %42 = vector.shape_cast %38 : vector<8x8xbf16> to vector<1x8x8xbf16>
    %43 = vector.shape_cast %39 : vector<8x8xbf16> to vector<1x8x8xbf16>
    %44 = vector.shape_cast %40 : vector<8x8xbf16> to vector<1x8x8xbf16>
    %45 = tpu.concatenate %41, %42, %43, %44 in 0 : vector<1x8x8xbf16>, vector<1x8x8xbf16>, vector<1x8x8xbf16>, vector<1x8x8xbf16> -> vector<4x8x8xbf16>
    %46 = vector.extract_strided_slice %27 {offsets = [0, 64], sizes = [8, 8], strides = [1, 1]} : vector<8x96xbf16> to vector<8x8xbf16>
    %47 = vector.extract_strided_slice %27 {offsets = [0, 72], sizes = [8, 8], strides = [1, 1]} : vector<8x96xbf16> to vector<8x8xbf16>
    %48 = vector.extract_strided_slice %27 {offsets = [0, 80], sizes = [8, 8], strides = [1, 1]} : vector<8x96xbf16> to vector<8x8xbf16>
    %49 = vector.extract_strided_slice %27 {offsets = [0, 88], sizes = [8, 8], strides = [1, 1]} : vector<8x96xbf16> to vector<8x8xbf16>
    %50 = vector.shape_cast %46 : vector<8x8xbf16> to vector<1x8x8xbf16>
    %51 = vector.shape_cast %47 : vector<8x8xbf16> to vector<1x8x8xbf16>
    %52 = vector.shape_cast %48 : vector<8x8xbf16> to vector<1x8x8xbf16>
    %53 = vector.shape_cast %49 : vector<8x8xbf16> to vector<1x8x8xbf16>
    %54 = tpu.concatenate %50, %51, %52, %53 in 0 : vector<1x8x8xbf16>, vector<1x8x8xbf16>, vector<1x8x8xbf16>, vector<1x8x8xbf16> -> vector<4x8x8xbf16>
    "tpu.trace_start"() <{level = 10 : i32, message = "nqd,nkd->nqk"}> : () -> ()
    %cst_12 = arith.constant dense<0.000000e+00> : vector<4x8x8xf32>
    %55 = tpu.matmul %36, %45, %cst_12 {dimension_numbers = #tpu.dot_dimension_numbers<[2], [2], [1], [1], [0, 0, 0, 1, 1, 1], [0], [0]>} : vector<4x8x8xbf16>, vector<4x8x8xbf16>, vector<4x8x8xf32> -> vector<4x8x8xf32>
    "tpu.trace_stop"() : () -> ()
    %cst_13 = arith.constant 0.353553385 : f32
    %56 = vector.broadcast %cst_13 : f32 to vector<4x8x8xf32>
    %57 = arith.mulf %55, %56 : vector<4x8x8xf32>
    %58 = vector.shape_cast %16 : vector<8x8xf32> to vector<1x8x8xf32>
    %59 = vector.broadcast %58 : vector<1x8x8xf32> to vector<4x8x8xf32>
    %60 = arith.addf %57, %59 : vector<4x8x8xf32>
    %cst_14 = arith.constant dense<0xFF800000> : vector<4x8xf32>
    %61 = vector.multi_reduction <maximumf>, %60, %cst_14 [2] : vector<4x8x8xf32> to vector<4x8xf32>
    %62 = vector.shape_cast %61 : vector<4x8xf32> to vector<4x8x1xf32>
    %63 = vector.broadcast %62 : vector<4x8x1xf32> to vector<4x8x8xf32>
    %64 = arith.subf %60, %63 : vector<4x8x8xf32>
    %65 = math.exp %64 : vector<4x8x8xf32>
    %cst_15 = arith.constant dense<0.000000e+00> : vector<4x8xf32>
    %66 = vector.multi_reduction <add>, %65, %cst_15 [2] : vector<4x8x8xf32> to vector<4x8xf32>
    %67 = vector.shape_cast %66 : vector<4x8xf32> to vector<4x8x1xf32>
    %68 = tpu.reciprocal %67 {approx = true} : vector<4x8x1xf32> -> vector<4x8x1xf32>
    %69 = vector.broadcast %68 : vector<4x8x1xf32> to vector<4x8x8xf32>
    %70 = arith.mulf %65, %69 : vector<4x8x8xf32>
    %71 = arith.truncf %70 : vector<4x8x8xf32> to vector<4x8x8xbf16>
    "tpu.trace_start"() <{level = 10 : i32, message = "nqk,nkd->nqd"}> : () -> ()
    %cst_16 = arith.constant dense<0.000000e+00> : vector<4x8x8xf32>
    %72 = tpu.matmul %71, %54, %cst_16 {dimension_numbers = #tpu.dot_dimension_numbers<[2], [1], [1], [2], [0, 0, 0, 1, 1, 2], [0], [0]>} : vector<4x8x8xbf16>, vector<4x8x8xbf16>, vector<4x8x8xf32> -> vector<4x8x8xf32>
    "tpu.trace_stop"() : () -> ()
    %73 = vector.extract_strided_slice %18 {offsets = [0, 0], sizes = [1, 32], strides = [1, 1]} : vector<6x32xf32> to vector<1x32xf32>
    %74 = vector.extract_strided_slice %72 {offsets = [0, 0, 0], sizes = [1, 8, 8], strides = [1, 1, 1]} : vector<4x8x8xf32> to vector<1x8x8xf32>
    %75 = vector.shape_cast %74 : vector<1x8x8xf32> to vector<8x8xf32>
    %76 = arith.truncf %75 : vector<8x8xf32> to vector<8x8xbf16>
    %c0_17 = arith.constant 0 : index
    %c0_18 = arith.constant 0 : index
    %c0_19 = arith.constant 0 : index
    %c0_20 = arith.constant 0 : index
    %77 = vector.load %arg4[%c0_17, %c0_18, %c0_19, %c0_20] : memref<2x4x8x32xbf16, #tpu.memory_space<vmem>>, vector<1x1x8x32xbf16>
    %78 = vector.shape_cast %77 : vector<1x1x8x32xbf16> to vector<8x32xbf16>
    %cst_21 = arith.constant dense<0.000000e+00> : vector<8x32xf32>
    %79 = tpu.matmul %76, %78, %cst_21 {dimension_numbers = #tpu.dot_dimension_numbers<[1], [0], [0], [1], [0, 0, 1, 1], [], []>} : vector<8x8xbf16>, vector<8x32xbf16>, vector<8x32xf32> -> vector<8x32xf32>
    %80 = vector.broadcast %73 : vector<1x32xf32> to vector<8x32xf32>
    %81 = arith.addf %80, %79 : vector<8x32xf32>
    %82 = vector.extract_strided_slice %72 {offsets = [1, 0, 0], sizes = [1, 8, 8], strides = [1, 1, 1]} : vector<4x8x8xf32> to vector<1x8x8xf32>
    %83 = vector.shape_cast %82 : vector<1x8x8xf32> to vector<8x8xf32>
    %84 = arith.truncf %83 : vector<8x8xf32> to vector<8x8xbf16>
    %c0_22 = arith.constant 0 : index
    %c1 = arith.constant 1 : index
    %c0_23 = arith.constant 0 : index
    %c0_24 = arith.constant 0 : index
    %85 = vector.load %arg4[%c0_22, %c1, %c0_23, %c0_24] : memref<2x4x8x32xbf16, #tpu.memory_space<vmem>>, vector<1x1x8x32xbf16>
    %86 = vector.shape_cast %85 : vector<1x1x8x32xbf16> to vector<8x32xbf16>
    %cst_25 = arith.constant dense<0.000000e+00> : vector<8x32xf32>
    %87 = tpu.matmul %84, %86, %cst_25 {dimension_numbers = #tpu.dot_dimension_numbers<[1], [0], [0], [1], [0, 0, 1, 1], [], []>} : vector<8x8xbf16>, vector<8x32xbf16>, vector<8x32xf32> -> vector<8x32xf32>
    %88 = arith.addf %81, %87 : vector<8x32xf32>
    %89 = vector.extract_strided_slice %72 {offsets = [2, 0, 0], sizes = [1, 8, 8], strides = [1, 1, 1]} : vector<4x8x8xf32> to vector<1x8x8xf32>
    %90 = vector.shape_cast %89 : vector<1x8x8xf32> to vector<8x8xf32>
    %91 = arith.truncf %90 : vector<8x8xf32> to vector<8x8xbf16>
    %c0_26 = arith.constant 0 : index
    %c2 = arith.constant 2 : index
    %c0_27 = arith.constant 0 : index
    %c0_28 = arith.constant 0 : index
    %92 = vector.load %arg4[%c0_26, %c2, %c0_27, %c0_28] : memref<2x4x8x32xbf16, #tpu.memory_space<vmem>>, vector<1x1x8x32xbf16>
    %93 = vector.shape_cast %92 : vector<1x1x8x32xbf16> to vector<8x32xbf16>
    %cst_29 = arith.constant dense<0.000000e+00> : vector<8x32xf32>
    %94 = tpu.matmul %91, %93, %cst_29 {dimension_numbers = #tpu.dot_dimension_numbers<[1], [0], [0], [1], [0, 0, 1, 1], [], []>} : vector<8x8xbf16>, vector<8x32xbf16>, vector<8x32xf32> -> vector<8x32xf32>
    %95 = arith.addf %88, %94 : vector<8x32xf32>
    %96 = vector.extract_strided_slice %72 {offsets = [3, 0, 0], sizes = [1, 8, 8], strides = [1, 1, 1]} : vector<4x8x8xf32> to vector<1x8x8xf32>
    %97 = vector.shape_cast %96 : vector<1x8x8xf32> to vector<8x8xf32>
    %98 = arith.truncf %97 : vector<8x8xf32> to vector<8x8xbf16>
    %c0_30 = arith.constant 0 : index
    %c3 = arith.constant 3 : index
    %c0_31 = arith.constant 0 : index
    %c0_32 = arith.constant 0 : index
    %99 = vector.load %arg4[%c0_30, %c3, %c0_31, %c0_32] : memref<2x4x8x32xbf16, #tpu.memory_space<vmem>>, vector<1x1x8x32xbf16>
    %100 = vector.shape_cast %99 : vector<1x1x8x32xbf16> to vector<8x32xbf16>
    %cst_33 = arith.constant dense<0.000000e+00> : vector<8x32xf32>
    %101 = tpu.matmul %98, %100, %cst_33 {dimension_numbers = #tpu.dot_dimension_numbers<[1], [0], [0], [1], [0, 0, 1, 1], [], []>} : vector<8x8xbf16>, vector<8x32xbf16>, vector<8x32xf32> -> vector<8x32xf32>
    %102 = arith.addf %95, %101 : vector<8x32xf32>
    %103 = arith.addf %3, %102 : vector<8x32xf32>
    %104 = vector.extract_strided_slice %18 {offsets = [1, 0], sizes = [1, 32], strides = [1, 1]} : vector<6x32xf32> to vector<1x32xf32>
    %105 = vector.extract_strided_slice %18 {offsets = [2, 0], sizes = [1, 32], strides = [1, 1]} : vector<6x32xf32> to vector<1x32xf32>
    %cst_34 = arith.constant dense<0.000000e+00> : vector<8xf32>
    %106 = vector.multi_reduction <add>, %103, %cst_34 [1] : vector<8x32xf32> to vector<8xf32>
    %107 = vector.shape_cast %106 : vector<8xf32> to vector<8x1xf32>
    %cst_35 = arith.constant 3.200000e+01 : f32
    %108 = vector.broadcast %cst_35 : f32 to vector<8x1xf32>
    %109 = arith.divf %107, %108 : vector<8x1xf32>
    %110 = vector.broadcast %109 : vector<8x1xf32> to vector<8x32xf32>
    %111 = arith.subf %103, %110 : vector<8x32xf32>
    %112 = arith.mulf %111, %111 : vector<8x32xf32>
    %cst_36 = arith.constant dense<0.000000e+00> : vector<8xf32>
    %113 = vector.multi_reduction <add>, %112, %cst_36 [1] : vector<8x32xf32> to vector<8xf32>
    %114 = vector.shape_cast %113 : vector<8xf32> to vector<8x1xf32>
    %cst_37 = arith.constant 3.200000e+01 : f32
    %115 = vector.broadcast %cst_37 : f32 to vector<8x1xf32>
    %116 = arith.divf %114, %115 : vector<8x1xf32>
    %117 = vector.broadcast %109 : vector<8x1xf32> to vector<8x32xf32>
    %118 = arith.subf %103, %117 : vector<8x32xf32>
    %cst_38 = arith.constant 9.99999996E-13 : f32
    %119 = vector.broadcast %cst_38 : f32 to vector<8x1xf32>
    %120 = arith.addf %116, %119 : vector<8x1xf32>
    %121 = math.rsqrt %120 : vector<8x1xf32>
    %122 = vector.broadcast %121 : vector<8x1xf32> to vector<8x32xf32>
    %123 = arith.mulf %118, %122 : vector<8x32xf32>
    %124 = vector.broadcast %104 : vector<1x32xf32> to vector<8x32xf32>
    %125 = arith.mulf %123, %124 : vector<8x32xf32>
    %126 = vector.broadcast %105 : vector<1x32xf32> to vector<8x32xf32>
    %127 = arith.addf %125, %126 : vector<8x32xf32>
    %128 = arith.truncf %127 : vector<8x32xf32> to vector<8x32xbf16>
    %c0_39 = arith.constant 0 : index
    %c0_40 = arith.constant 0 : index
    %c0_41 = arith.constant 0 : index
    %129 = vector.load %arg5[%c0_39, %c0_40, %c0_41] : memref<2x32x128xbf16, #tpu.memory_space<vmem>>, vector<1x32x128xbf16>
    %130 = vector.shape_cast %129 : vector<1x32x128xbf16> to vector<32x128xbf16>
    %cst_42 = arith.constant dense<0.000000e+00> : vector<8x128xf32>
    %131 = tpu.matmul %128, %130, %cst_42 {dimension_numbers = #tpu.dot_dimension_numbers<[1], [0], [0], [1], [0, 0, 1, 1], [], []>} : vector<8x32xbf16>, vector<32x128xbf16>, vector<8x128xf32> -> vector<8x128xf32>
    %132 = vector.broadcast %20 : vector<1x128xf32> to vector<8x128xf32>
    %133 = arith.addf %131, %132 : vector<8x128xf32>
    %cst_43 = arith.constant 5.000000e-01 : f32
    %134 = vector.broadcast %cst_43 : f32 to vector<8x128xf32>
    %135 = arith.mulf %134, %133 : vector<8x128xf32>
    %cst_44 = arith.constant 4.471500e-02 : f32
    %136 = vector.broadcast %cst_44 : f32 to vector<8x128xf32>
    %137 = arith.mulf %136, %133 : vector<8x128xf32>
    %138 = arith.mulf %137, %133 : vector<8x128xf32>
    %139 = arith.mulf %138, %133 : vector<8x128xf32>
    %140 = arith.addf %133, %139 : vector<8x128xf32>
    %cst_45 = arith.constant 0.797884583 : f32
    %141 = vector.broadcast %cst_45 : f32 to vector<8x128xf32>
    %142 = arith.mulf %141, %140 : vector<8x128xf32>
    %143 = math.tanh %142 : vector<8x128xf32>
    %cst_46 = arith.constant 1.000000e+00 : f32
    %144 = vector.broadcast %cst_46 : f32 to vector<8x128xf32>
    %145 = arith.addf %144, %143 : vector<8x128xf32>
    %146 = arith.mulf %135, %145 : vector<8x128xf32>
    %147 = arith.truncf %146 : vector<8x128xf32> to vector<8x128xbf16>
    %c0_47 = arith.constant 0 : index
    %c0_48 = arith.constant 0 : index
    %c0_49 = arith.constant 0 : index
    %148 = vector.load %arg6[%c0_47, %c0_48, %c0_49] : memref<2x128x32xbf16, #tpu.memory_space<vmem>>, vector<1x128x32xbf16>
    %149 = vector.shape_cast %148 : vector<1x128x32xbf16> to vector<128x32xbf16>
    %cst_50 = arith.constant dense<0.000000e+00> : vector<8x32xf32>
    %150 = tpu.matmul %147, %149, %cst_50 {dimension_numbers = #tpu.dot_dimension_numbers<[1], [0], [0], [1], [0, 0, 1, 1], [], []>} : vector<8x128xbf16>, vector<128x32xbf16>, vector<8x32xf32> -> vector<8x32xf32>
    %151 = vector.extract_strided_slice %18 {offsets = [3, 0], sizes = [1, 32], strides = [1, 1]} : vector<6x32xf32> to vector<1x32xf32>
    %152 = vector.broadcast %151 : vector<1x32xf32> to vector<8x32xf32>
    %153 = arith.addf %150, %152 : vector<8x32xf32>
    %154 = arith.addf %127, %153 : vector<8x32xf32>
    %155 = vector.extract_strided_slice %18 {offsets = [4, 0], sizes = [1, 32], strides = [1, 1]} : vector<6x32xf32> to vector<1x32xf32>
    %156 = vector.extract_strided_slice %18 {offsets = [5, 0], sizes = [1, 32], strides = [1, 1]} : vector<6x32xf32> to vector<1x32xf32>
    %cst_51 = arith.constant dense<0.000000e+00> : vector<8xf32>
    %157 = vector.multi_reduction <add>, %154, %cst_51 [1] : vector<8x32xf32> to vector<8xf32>
    %158 = vector.shape_cast %157 : vector<8xf32> to vector<8x1xf32>
    %cst_52 = arith.constant 3.200000e+01 : f32
    %159 = vector.broadcast %cst_52 : f32 to vector<8x1xf32>
    %160 = arith.divf %158, %159 : vector<8x1xf32>
    %161 = vector.broadcast %160 : vector<8x1xf32> to vector<8x32xf32>
    %162 = arith.subf %154, %161 : vector<8x32xf32>
    %163 = arith.mulf %162, %162 : vector<8x32xf32>
    %cst_53 = arith.constant dense<0.000000e+00> : vector<8xf32>
    %164 = vector.multi_reduction <add>, %163, %cst_53 [1] : vector<8x32xf32> to vector<8xf32>
    %165 = vector.shape_cast %164 : vector<8xf32> to vector<8x1xf32>
    %cst_54 = arith.constant 3.200000e+01 : f32
    %166 = vector.broadcast %cst_54 : f32 to vector<8x1xf32>
    %167 = arith.divf %165, %166 : vector<8x1xf32>
    %168 = vector.broadcast %160 : vector<8x1xf32> to vector<8x32xf32>
    %169 = arith.subf %154, %168 : vector<8x32xf32>
    %cst_55 = arith.constant 9.99999996E-13 : f32
    %170 = vector.broadcast %cst_55 : f32 to vector<8x1xf32>
    %171 = arith.addf %167, %170 : vector<8x1xf32>
    %172 = math.rsqrt %171 : vector<8x1xf32>
    %173 = vector.broadcast %172 : vector<8x1xf32> to vector<8x32xf32>
    %174 = arith.mulf %169, %173 : vector<8x32xf32>
    %175 = vector.broadcast %155 : vector<1x32xf32> to vector<8x32xf32>
    %176 = arith.mulf %174, %175 : vector<8x32xf32>
    %177 = vector.broadcast %156 : vector<1x32xf32> to vector<8x32xf32>
    %178 = arith.addf %176, %177 : vector<8x32xf32>
    %c1_56 = arith.constant 1 : index
    %c0_57 = arith.constant 0 : index
    %c0_58 = arith.constant 0 : index
    %179 = vector.load %arg8[%c1_56, %c0_57, %c0_58] : memref<2x6x32xf32, #tpu.memory_space<vmem>>, vector<1x6x32xf32>
    %180 = vector.shape_cast %179 : vector<1x6x32xf32> to vector<6x32xf32>
    %181 = vector.extract_strided_slice %4 {offsets = [2, 0], sizes = [1, 96], strides = [1, 1]} : vector<5x128xf32> to vector<1x96xf32>
    %182 = vector.extract_strided_slice %4 {offsets = [3, 0], sizes = [1, 128], strides = [1, 1]} : vector<5x128xf32> to vector<1x128xf32>
    %183 = arith.truncf %178 : vector<8x32xf32> to vector<8x32xbf16>
    %c1_59 = arith.constant 1 : index
    %c0_60 = arith.constant 0 : index
    %c0_61 = arith.constant 0 : index
    %184 = vector.load %arg3[%c1_59, %c0_60, %c0_61] : memref<2x32x96xbf16, #tpu.memory_space<vmem>>, vector<1x32x96xbf16>
    %185 = vector.shape_cast %184 : vector<1x32x96xbf16> to vector<32x96xbf16>
    %cst_62 = arith.constant dense<0.000000e+00> : vector<8x96xf32>
    %186 = tpu.matmul %183, %185, %cst_62 {dimension_numbers = #tpu.dot_dimension_numbers<[1], [0], [0], [1], [0, 0, 1, 1], [], []>} : vector<8x32xbf16>, vector<32x96xbf16>, vector<8x96xf32> -> vector<8x96xf32>
    %187 = vector.broadcast %181 : vector<1x96xf32> to vector<8x96xf32>
    %188 = arith.addf %186, %187 : vector<8x96xf32>
    %189 = arith.truncf %188 : vector<8x96xf32> to vector<8x96xbf16>
    %190 = vector.extract_strided_slice %189 {offsets = [0, 0], sizes = [8, 8], strides = [1, 1]} : vector<8x96xbf16> to vector<8x8xbf16>
    %191 = vector.extract_strided_slice %189 {offsets = [0, 8], sizes = [8, 8], strides = [1, 1]} : vector<8x96xbf16> to vector<8x8xbf16>
    %192 = vector.extract_strided_slice %189 {offsets = [0, 16], sizes = [8, 8], strides = [1, 1]} : vector<8x96xbf16> to vector<8x8xbf16>
    %193 = vector.extract_strided_slice %189 {offsets = [0, 24], sizes = [8, 8], strides = [1, 1]} : vector<8x96xbf16> to vector<8x8xbf16>
    %194 = vector.shape_cast %190 : vector<8x8xbf16> to vector<1x8x8xbf16>
    %195 = vector.shape_cast %191 : vector<8x8xbf16> to vector<1x8x8xbf16>
    %196 = vector.shape_cast %192 : vector<8x8xbf16> to vector<1x8x8xbf16>
    %197 = vector.shape_cast %193 : vector<8x8xbf16> to vector<1x8x8xbf16>
    %198 = tpu.concatenate %194, %195, %196, %197 in 0 : vector<1x8x8xbf16>, vector<1x8x8xbf16>, vector<1x8x8xbf16>, vector<1x8x8xbf16> -> vector<4x8x8xbf16>
    %199 = vector.extract_strided_slice %189 {offsets = [0, 32], sizes = [8, 8], strides = [1, 1]} : vector<8x96xbf16> to vector<8x8xbf16>
    %200 = vector.extract_strided_slice %189 {offsets = [0, 40], sizes = [8, 8], strides = [1, 1]} : vector<8x96xbf16> to vector<8x8xbf16>
    %201 = vector.extract_strided_slice %189 {offsets = [0, 48], sizes = [8, 8], strides = [1, 1]} : vector<8x96xbf16> to vector<8x8xbf16>
    %202 = vector.extract_strided_slice %189 {offsets = [0, 56], sizes = [8, 8], strides = [1, 1]} : vector<8x96xbf16> to vector<8x8xbf16>
    %203 = vector.shape_cast %199 : vector<8x8xbf16> to vector<1x8x8xbf16>
    %204 = vector.shape_cast %200 : vector<8x8xbf16> to vector<1x8x8xbf16>
    %205 = vector.shape_cast %201 : vector<8x8xbf16> to vector<1x8x8xbf16>
    %206 = vector.shape_cast %202 : vector<8x8xbf16> to vector<1x8x8xbf16>
    %207 = tpu.concatenate %203, %204, %205, %206 in 0 : vector<1x8x8xbf16>, vector<1x8x8xbf16>, vector<1x8x8xbf16>, vector<1x8x8xbf16> -> vector<4x8x8xbf16>
    %208 = vector.extract_strided_slice %189 {offsets = [0, 64], sizes = [8, 8], strides = [1, 1]} : vector<8x96xbf16> to vector<8x8xbf16>
    %209 = vector.extract_strided_slice %189 {offsets = [0, 72], sizes = [8, 8], strides = [1, 1]} : vector<8x96xbf16> to vector<8x8xbf16>
    %210 = vector.extract_strided_slice %189 {offsets = [0, 80], sizes = [8, 8], strides = [1, 1]} : vector<8x96xbf16> to vector<8x8xbf16>
    %211 = vector.extract_strided_slice %189 {offsets = [0, 88], sizes = [8, 8], strides = [1, 1]} : vector<8x96xbf16> to vector<8x8xbf16>
    %212 = vector.shape_cast %208 : vector<8x8xbf16> to vector<1x8x8xbf16>
    %213 = vector.shape_cast %209 : vector<8x8xbf16> to vector<1x8x8xbf16>
    %214 = vector.shape_cast %210 : vector<8x8xbf16> to vector<1x8x8xbf16>
    %215 = vector.shape_cast %211 : vector<8x8xbf16> to vector<1x8x8xbf16>
    %216 = tpu.concatenate %212, %213, %214, %215 in 0 : vector<1x8x8xbf16>, vector<1x8x8xbf16>, vector<1x8x8xbf16>, vector<1x8x8xbf16> -> vector<4x8x8xbf16>
    "tpu.trace_start"() <{level = 10 : i32, message = "nqd,nkd->nqk"}> : () -> ()
    %cst_63 = arith.constant dense<0.000000e+00> : vector<4x8x8xf32>
    %217 = tpu.matmul %198, %207, %cst_63 {dimension_numbers = #tpu.dot_dimension_numbers<[2], [2], [1], [1], [0, 0, 0, 1, 1, 1], [0], [0]>} : vector<4x8x8xbf16>, vector<4x8x8xbf16>, vector<4x8x8xf32> -> vector<4x8x8xf32>
    "tpu.trace_stop"() : () -> ()
    %cst_64 = arith.constant 0.353553385 : f32
    %218 = vector.broadcast %cst_64 : f32 to vector<4x8x8xf32>
    %219 = arith.mulf %217, %218 : vector<4x8x8xf32>
    %220 = vector.shape_cast %16 : vector<8x8xf32> to vector<1x8x8xf32>
    %221 = vector.broadcast %220 : vector<1x8x8xf32> to vector<4x8x8xf32>
    %222 = arith.addf %219, %221 : vector<4x8x8xf32>
    %cst_65 = arith.constant dense<0xFF800000> : vector<4x8xf32>
    %223 = vector.multi_reduction <maximumf>, %222, %cst_65 [2] : vector<4x8x8xf32> to vector<4x8xf32>
    %224 = vector.shape_cast %223 : vector<4x8xf32> to vector<4x8x1xf32>
    %225 = vector.broadcast %224 : vector<4x8x1xf32> to vector<4x8x8xf32>
    %226 = arith.subf %222, %225 : vector<4x8x8xf32>
    %227 = math.exp %226 : vector<4x8x8xf32>
    %cst_66 = arith.constant dense<0.000000e+00> : vector<4x8xf32>
    %228 = vector.multi_reduction <add>, %227, %cst_66 [2] : vector<4x8x8xf32> to vector<4x8xf32>
    %229 = vector.shape_cast %228 : vector<4x8xf32> to vector<4x8x1xf32>
    %230 = tpu.reciprocal %229 {approx = true} : vector<4x8x1xf32> -> vector<4x8x1xf32>
    %231 = vector.broadcast %230 : vector<4x8x1xf32> to vector<4x8x8xf32>
    %232 = arith.mulf %227, %231 : vector<4x8x8xf32>
    %233 = arith.truncf %232 : vector<4x8x8xf32> to vector<4x8x8xbf16>
    "tpu.trace_start"() <{level = 10 : i32, message = "nqk,nkd->nqd"}> : () -> ()
    %cst_67 = arith.constant dense<0.000000e+00> : vector<4x8x8xf32>
    %234 = tpu.matmul %233, %216, %cst_67 {dimension_numbers = #tpu.dot_dimension_numbers<[2], [1], [1], [2], [0, 0, 0, 1, 1, 2], [0], [0]>} : vector<4x8x8xbf16>, vector<4x8x8xbf16>, vector<4x8x8xf32> -> vector<4x8x8xf32>
    "tpu.trace_stop"() : () -> ()
    %235 = vector.extract_strided_slice %180 {offsets = [0, 0], sizes = [1, 32], strides = [1, 1]} : vector<6x32xf32> to vector<1x32xf32>
    %236 = vector.extract_strided_slice %234 {offsets = [0, 0, 0], sizes = [1, 8, 8], strides = [1, 1, 1]} : vector<4x8x8xf32> to vector<1x8x8xf32>
    %237 = vector.shape_cast %236 : vector<1x8x8xf32> to vector<8x8xf32>
    %238 = arith.truncf %237 : vector<8x8xf32> to vector<8x8xbf16>
    %c1_68 = arith.constant 1 : index
    %c0_69 = arith.constant 0 : index
    %c0_70 = arith.constant 0 : index
    %c0_71 = arith.constant 0 : index
    %239 = vector.load %arg4[%c1_68, %c0_69, %c0_70, %c0_71] : memref<2x4x8x32xbf16, #tpu.memory_space<vmem>>, vector<1x1x8x32xbf16>
    %240 = vector.shape_cast %239 : vector<1x1x8x32xbf16> to vector<8x32xbf16>
    %cst_72 = arith.constant dense<0.000000e+00> : vector<8x32xf32>
    %241 = tpu.matmul %238, %240, %cst_72 {dimension_numbers = #tpu.dot_dimension_numbers<[1], [0], [0], [1], [0, 0, 1, 1], [], []>} : vector<8x8xbf16>, vector<8x32xbf16>, vector<8x32xf32> -> vector<8x32xf32>
    %242 = vector.broadcast %235 : vector<1x32xf32> to vector<8x32xf32>
    %243 = arith.addf %242, %241 : vector<8x32xf32>
    %244 = vector.extract_strided_slice %234 {offsets = [1, 0, 0], sizes = [1, 8, 8], strides = [1, 1, 1]} : vector<4x8x8xf32> to vector<1x8x8xf32>
    %245 = vector.shape_cast %244 : vector<1x8x8xf32> to vector<8x8xf32>
    %246 = arith.truncf %245 : vector<8x8xf32> to vector<8x8xbf16>
    %c1_73 = arith.constant 1 : index
    %c1_74 = arith.constant 1 : index
    %c0_75 = arith.constant 0 : index
    %c0_76 = arith.constant 0 : index
    %247 = vector.load %arg4[%c1_73, %c1_74, %c0_75, %c0_76] : memref<2x4x8x32xbf16, #tpu.memory_space<vmem>>, vector<1x1x8x32xbf16>
    %248 = vector.shape_cast %247 : vector<1x1x8x32xbf16> to vector<8x32xbf16>
    %cst_77 = arith.constant dense<0.000000e+00> : vector<8x32xf32>
    %249 = tpu.matmul %246, %248, %cst_77 {dimension_numbers = #tpu.dot_dimension_numbers<[1], [0], [0], [1], [0, 0, 1, 1], [], []>} : vector<8x8xbf16>, vector<8x32xbf16>, vector<8x32xf32> -> vector<8x32xf32>
    %250 = arith.addf %243, %249 : vector<8x32xf32>
    %251 = vector.extract_strided_slice %234 {offsets = [2, 0, 0], sizes = [1, 8, 8], strides = [1, 1, 1]} : vector<4x8x8xf32> to vector<1x8x8xf32>
    %252 = vector.shape_cast %251 : vector<1x8x8xf32> to vector<8x8xf32>
    %253 = arith.truncf %252 : vector<8x8xf32> to vector<8x8xbf16>
    %c1_78 = arith.constant 1 : index
    %c2_79 = arith.constant 2 : index
    %c0_80 = arith.constant 0 : index
    %c0_81 = arith.constant 0 : index
    %254 = vector.load %arg4[%c1_78, %c2_79, %c0_80, %c0_81] : memref<2x4x8x32xbf16, #tpu.memory_space<vmem>>, vector<1x1x8x32xbf16>
    %255 = vector.shape_cast %254 : vector<1x1x8x32xbf16> to vector<8x32xbf16>
    %cst_82 = arith.constant dense<0.000000e+00> : vector<8x32xf32>
    %256 = tpu.matmul %253, %255, %cst_82 {dimension_numbers = #tpu.dot_dimension_numbers<[1], [0], [0], [1], [0, 0, 1, 1], [], []>} : vector<8x8xbf16>, vector<8x32xbf16>, vector<8x32xf32> -> vector<8x32xf32>
    %257 = arith.addf %250, %256 : vector<8x32xf32>
    %258 = vector.extract_strided_slice %234 {offsets = [3, 0, 0], sizes = [1, 8, 8], strides = [1, 1, 1]} : vector<4x8x8xf32> to vector<1x8x8xf32>
    %259 = vector.shape_cast %258 : vector<1x8x8xf32> to vector<8x8xf32>
    %260 = arith.truncf %259 : vector<8x8xf32> to vector<8x8xbf16>
    %c1_83 = arith.constant 1 : index
    %c3_84 = arith.constant 3 : index
    %c0_85 = arith.constant 0 : index
    %c0_86 = arith.constant 0 : index
    %261 = vector.load %arg4[%c1_83, %c3_84, %c0_85, %c0_86] : memref<2x4x8x32xbf16, #tpu.memory_space<vmem>>, vector<1x1x8x32xbf16>
    %262 = vector.shape_cast %261 : vector<1x1x8x32xbf16> to vector<8x32xbf16>
    %cst_87 = arith.constant dense<0.000000e+00> : vector<8x32xf32>
    %263 = tpu.matmul %260, %262, %cst_87 {dimension_numbers = #tpu.dot_dimension_numbers<[1], [0], [0], [1], [0, 0, 1, 1], [], []>} : vector<8x8xbf16>, vector<8x32xbf16>, vector<8x32xf32> -> vector<8x32xf32>
    %264 = arith.addf %257, %263 : vector<8x32xf32>
    %265 = arith.addf %178, %264 : vector<8x32xf32>
    %266 = vector.extract_strided_slice %180 {offsets = [1, 0], sizes = [1, 32], strides = [1, 1]} : vector<6x32xf32> to vector<1x32xf32>
    %267 = vector.extract_strided_slice %180 {offsets = [2, 0], sizes = [1, 32], strides = [1, 1]} : vector<6x32xf32> to vector<1x32xf32>
    %cst_88 = arith.constant dense<0.000000e+00> : vector<8xf32>
    %268 = vector.multi_reduction <add>, %265, %cst_88 [1] : vector<8x32xf32> to vector<8xf32>
    %269 = vector.shape_cast %268 : vector<8xf32> to vector<8x1xf32>
    %cst_89 = arith.constant 3.200000e+01 : f32
    %270 = vector.broadcast %cst_89 : f32 to vector<8x1xf32>
    %271 = arith.divf %269, %270 : vector<8x1xf32>
    %272 = vector.broadcast %271 : vector<8x1xf32> to vector<8x32xf32>
    %273 = arith.subf %265, %272 : vector<8x32xf32>
    %274 = arith.mulf %273, %273 : vector<8x32xf32>
    %cst_90 = arith.constant dense<0.000000e+00> : vector<8xf32>
    %275 = vector.multi_reduction <add>, %274, %cst_90 [1] : vector<8x32xf32> to vector<8xf32>
    %276 = vector.shape_cast %275 : vector<8xf32> to vector<8x1xf32>
    %cst_91 = arith.constant 3.200000e+01 : f32
    %277 = vector.broadcast %cst_91 : f32 to vector<8x1xf32>
    %278 = arith.divf %276, %277 : vector<8x1xf32>
    %279 = vector.broadcast %271 : vector<8x1xf32> to vector<8x32xf32>
    %280 = arith.subf %265, %279 : vector<8x32xf32>
    %cst_92 = arith.constant 9.99999996E-13 : f32
    %281 = vector.broadcast %cst_92 : f32 to vector<8x1xf32>
    %282 = arith.addf %278, %281 : vector<8x1xf32>
    %283 = math.rsqrt %282 : vector<8x1xf32>
    %284 = vector.broadcast %283 : vector<8x1xf32> to vector<8x32xf32>
    %285 = arith.mulf %280, %284 : vector<8x32xf32>
    %286 = vector.broadcast %266 : vector<1x32xf32> to vector<8x32xf32>
    %287 = arith.mulf %285, %286 : vector<8x32xf32>
    %288 = vector.broadcast %267 : vector<1x32xf32> to vector<8x32xf32>
    %289 = arith.addf %287, %288 : vector<8x32xf32>
    %290 = arith.truncf %289 : vector<8x32xf32> to vector<8x32xbf16>
    %c1_93 = arith.constant 1 : index
    %c0_94 = arith.constant 0 : index
    %c0_95 = arith.constant 0 : index
    %291 = vector.load %arg5[%c1_93, %c0_94, %c0_95] : memref<2x32x128xbf16, #tpu.memory_space<vmem>>, vector<1x32x128xbf16>
    %292 = vector.shape_cast %291 : vector<1x32x128xbf16> to vector<32x128xbf16>
    %cst_96 = arith.constant dense<0.000000e+00> : vector<8x128xf32>
    %293 = tpu.matmul %290, %292, %cst_96 {dimension_numbers = #tpu.dot_dimension_numbers<[1], [0], [0], [1], [0, 0, 1, 1], [], []>} : vector<8x32xbf16>, vector<32x128xbf16>, vector<8x128xf32> -> vector<8x128xf32>
    %294 = vector.broadcast %182 : vector<1x128xf32> to vector<8x128xf32>
    %295 = arith.addf %293, %294 : vector<8x128xf32>
    %cst_97 = arith.constant 5.000000e-01 : f32
    %296 = vector.broadcast %cst_97 : f32 to vector<8x128xf32>
    %297 = arith.mulf %296, %295 : vector<8x128xf32>
    %cst_98 = arith.constant 4.471500e-02 : f32
    %298 = vector.broadcast %cst_98 : f32 to vector<8x128xf32>
    %299 = arith.mulf %298, %295 : vector<8x128xf32>
    %300 = arith.mulf %299, %295 : vector<8x128xf32>
    %301 = arith.mulf %300, %295 : vector<8x128xf32>
    %302 = arith.addf %295, %301 : vector<8x128xf32>
    %cst_99 = arith.constant 0.797884583 : f32
    %303 = vector.broadcast %cst_99 : f32 to vector<8x128xf32>
    %304 = arith.mulf %303, %302 : vector<8x128xf32>
    %305 = math.tanh %304 : vector<8x128xf32>
    %cst_100 = arith.constant 1.000000e+00 : f32
    %306 = vector.broadcast %cst_100 : f32 to vector<8x128xf32>
    %307 = arith.addf %306, %305 : vector<8x128xf32>
    %308 = arith.mulf %297, %307 : vector<8x128xf32>
    %309 = arith.truncf %308 : vector<8x128xf32> to vector<8x128xbf16>
    %c1_101 = arith.constant 1 : index
    %c0_102 = arith.constant 0 : index
    %c0_103 = arith.constant 0 : index
    %310 = vector.load %arg6[%c1_101, %c0_102, %c0_103] : memref<2x128x32xbf16, #tpu.memory_space<vmem>>, vector<1x128x32xbf16>
    %311 = vector.shape_cast %310 : vector<1x128x32xbf16> to vector<128x32xbf16>
    %cst_104 = arith.constant dense<0.000000e+00> : vector<8x32xf32>
    %312 = tpu.matmul %309, %311, %cst_104 {dimension_numbers = #tpu.dot_dimension_numbers<[1], [0], [0], [1], [0, 0, 1, 1], [], []>} : vector<8x128xbf16>, vector<128x32xbf16>, vector<8x32xf32> -> vector<8x32xf32>
    %313 = vector.extract_strided_slice %180 {offsets = [3, 0], sizes = [1, 32], strides = [1, 1]} : vector<6x32xf32> to vector<1x32xf32>
    %314 = vector.broadcast %313 : vector<1x32xf32> to vector<8x32xf32>
    %315 = arith.addf %312, %314 : vector<8x32xf32>
    %316 = arith.addf %289, %315 : vector<8x32xf32>
    %317 = vector.extract_strided_slice %180 {offsets = [4, 0], sizes = [1, 32], strides = [1, 1]} : vector<6x32xf32> to vector<1x32xf32>
    %318 = vector.extract_strided_slice %180 {offsets = [5, 0], sizes = [1, 32], strides = [1, 1]} : vector<6x32xf32> to vector<1x32xf32>
    %cst_105 = arith.constant dense<0.000000e+00> : vector<8xf32>
    %319 = vector.multi_reduction <add>, %316, %cst_105 [1] : vector<8x32xf32> to vector<8xf32>
    %320 = vector.shape_cast %319 : vector<8xf32> to vector<8x1xf32>
    %cst_106 = arith.constant 3.200000e+01 : f32
    %321 = vector.broadcast %cst_106 : f32 to vector<8x1xf32>
    %322 = arith.divf %320, %321 : vector<8x1xf32>
    %323 = vector.broadcast %322 : vector<8x1xf32> to vector<8x32xf32>
    %324 = arith.subf %316, %323 : vector<8x32xf32>
    %325 = arith.mulf %324, %324 : vector<8x32xf32>
    %cst_107 = arith.constant dense<0.000000e+00> : vector<8xf32>
    %326 = vector.multi_reduction <add>, %325, %cst_107 [1] : vector<8x32xf32> to vector<8xf32>
    %327 = vector.shape_cast %326 : vector<8xf32> to vector<8x1xf32>
    %cst_108 = arith.constant 3.200000e+01 : f32
    %328 = vector.broadcast %cst_108 : f32 to vector<8x1xf32>
    %329 = arith.divf %327, %328 : vector<8x1xf32>
    %330 = vector.broadcast %322 : vector<8x1xf32> to vector<8x32xf32>
    %331 = arith.subf %316, %330 : vector<8x32xf32>
    %cst_109 = arith.constant 9.99999996E-13 : f32
    %332 = vector.broadcast %cst_109 : f32 to vector<8x1xf32>
    %333 = arith.addf %329, %332 : vector<8x1xf32>
    %334 = math.rsqrt %333 : vector<8x1xf32>
    %335 = vector.broadcast %334 : vector<8x1xf32> to vector<8x32xf32>
    %336 = arith.mulf %331, %335 : vector<8x32xf32>
    %337 = vector.broadcast %317 : vector<1x32xf32> to vector<8x32xf32>
    %338 = arith.mulf %336, %337 : vector<8x32xf32>
    %339 = vector.broadcast %318 : vector<1x32xf32> to vector<8x32xf32>
    %340 = arith.addf %338, %339 : vector<8x32xf32>
    %341 = vector.extract_strided_slice %4 {offsets = [4, 0], sizes = [1, 128], strides = [1, 1]} : vector<5x128xf32> to vector<1x128xf32>
    %342 = arith.truncf %340 : vector<8x32xf32> to vector<8x32xbf16>
    %c0_110 = arith.constant 0 : index
    %c0_111 = arith.constant 0 : index
    %343 = vector.load %arg7[%c0_110, %c0_111] : memref<32x128xbf16, #tpu.memory_space<vmem>>, vector<32x128xbf16>
    %cst_112 = arith.constant dense<0.000000e+00> : vector<8x128xf32>
    %344 = tpu.matmul %342, %343, %cst_112 {dimension_numbers = #tpu.dot_dimension_numbers<[1], [0], [0], [1], [0, 0, 1, 1], [], []>} : vector<8x32xbf16>, vector<32x128xbf16>, vector<8x128xf32> -> vector<8x128xf32>
    %345 = vector.broadcast %341 : vector<1x128xf32> to vector<8x128xf32>
    %346 = arith.addf %344, %345 : vector<8x128xf32>
    %cst_113 = arith.constant dense<0xFF800000> : vector<8xf32>
    %347 = vector.multi_reduction <maximumf>, %346, %cst_113 [1] : vector<8x128xf32> to vector<8xf32>
    %348 = vector.shape_cast %347 : vector<8xf32> to vector<8x1xf32>
    %349 = vector.broadcast %348 : vector<8x1xf32> to vector<8x128xf32>
    %350 = arith.subf %346, %349 : vector<8x128xf32>
    %351 = math.exp %350 : vector<8x128xf32>
    %cst_114 = arith.constant dense<0.000000e+00> : vector<8xf32>
    %352 = vector.multi_reduction <add>, %351, %cst_114 [1] : vector<8x128xf32> to vector<8xf32>
    %353 = vector.shape_cast %352 : vector<8xf32> to vector<8x1xf32>
    %354 = tpu.reciprocal %353 : vector<8x1xf32> -> vector<8x1xf32>
    %355 = vector.broadcast %354 : vector<8x1xf32> to vector<8x128xf32>
    %356 = arith.mulf %351, %355 : vector<8x128xf32>
    %c0_115 = arith.constant 0 : index
    %c0_116 = arith.constant 0 : index
    %c0_117 = arith.constant 0 : index
    %357 = vector.load %arg10[%c0_115, %c0_116, %c0_117] : memref<1x8x128xf32, #tpu.memory_space<vmem>>, vector<1x8x128xf32>
    %358 = vector.shape_cast %357 : vector<1x8x128xf32> to vector<8x128xf32>
    %359 = vector.shape_cast %356 : vector<8x128xf32> to vector<1x8x128xf32>
    tpu.vector_store %arg10[%c0_115, %c0_116, %c0_117], %359 {strides = array<i32>} : memref<1x8x128xf32, #tpu.memory_space<vmem>>, vector<1x8x128xf32>,
    return
  }
  func.func @transform_0(%arg0: i32, %arg1: memref<2xi32, #tpu.memory_space<smem>>) -> (i32, i32, i32) {
    %c0_i32 = arith.constant 0 : i32
    %c0_i32_0 = arith.constant 0 : i32
    %c0_i32_1 = arith.constant 0 : i32
    return %arg0, %c0_i32, %c0_i32_0 : i32, i32, i32
  }
  func.func @transform_1(%arg0: i32, %arg1: memref<2xi32, #tpu.memory_space<smem>>) -> (i32, i32, i32) {
    %c0_i32 = arith.constant 0 : i32
    %c0_i32_0 = arith.constant 0 : i32
    %c0_i32_1 = arith.constant 0 : i32
    %c0_i32_2 = arith.constant 0 : i32
    return %c0_i32, %c0_i32_0, %c0_i32_1 : i32, i32, i32
  }
  func.func @transform_2(%arg0: i32, %arg1: memref<2xi32, #tpu.memory_space<smem>>) -> (i32, i32, i32, i32) {
    %c0_i32 = arith.constant 0 : i32
    %c0_i32_0 = arith.constant 0 : i32
    %c0_i32_1 = arith.constant 0 : i32
    %c0_i32_2 = arith.constant 0 : i32
    %c0_i32_3 = arith.constant 0 : i32
    return %c0_i32, %c0_i32_0, %c0_i32_1, %c0_i32_2 : i32, i32, i32, i32
  }
  func.func @transform_3(%arg0: i32, %arg1: memref<2xi32, #tpu.memory_space<smem>>) -> (i32, i32, i32) {
    %c0_i32 = arith.constant 0 : i32
    %c0_i32_0 = arith.constant 0 : i32
    %c0_i32_1 = arith.constant 0 : i32
    %c0_i32_2 = arith.constant 0 : i32
    return %c0_i32, %c0_i32_0, %c0_i32_1 : i32, i32, i32
  }
  func.func @transform_4(%arg0: i32, %arg1: memref<2xi32, #tpu.memory_space<smem>>) -> (i32, i32, i32) {
    %c0_i32 = arith.constant 0 : i32
    %c0_i32_0 = arith.constant 0 : i32
    %c0_i32_1 = arith.constant 0 : i32
    %c0_i32_2 = arith.constant 0 : i32
    return %c0_i32, %c0_i32_0, %c0_i32_1 : i32, i32, i32
  }
  func.func @transform_5(%arg0: i32, %arg1: memref<2xi32, #tpu.memory_space<smem>>) -> (i32, i32) {
    %c0_i32 = arith.constant 0 : i32
    %c0_i32_0 = arith.constant 0 : i32
    %c0_i32_1 = arith.constant 0 : i32
    return %c0_i32, %c0_i32_0 : i32, i32
  }
  func.func @transform_6(%arg0: i32, %arg1: memref<2xi32, #tpu.memory_space<smem>>) -> (i32, i32, i32) {
    %c0_i32 = arith.constant 0 : i32
    %c0_i32_0 = arith.constant 0 : i32
    %c0_i32_1 = arith.constant 0 : i32
    %c0_i32_2 = arith.constant 0 : i32
    return %c0_i32, %c0_i32_0, %c0_i32_1 : i32, i32, i32
  }
  func.func @transform_7(%arg0: i32, %arg1: memref<2xi32, #tpu.memory_space<smem>>) -> (i32, i32) {
    %c0_i32 = arith.constant 0 : i32
    %c0_i32_0 = arith.constant 0 : i32
    %c0_i32_1 = arith.constant 0 : i32
    return %c0_i32, %c0_i32_0 : i32, i32
  }
  func.func @transform_8(%arg0: i32, %arg1: memref<2xi32, #tpu.memory_space<smem>>) -> (i32, i32, i32) {
    %c0_i32 = arith.constant 0 : i32
    %c0_i32_0 = arith.constant 0 : i32
    %c0_i32_1 = arith.constant 0 : i32
    return %arg0, %c0_i32, %c0_i32_0 : i32, i32, i32
  }
}

</mosaic_0001>

<llo_original>
// kernel: tpu_custom_call.1
$region0: #{tpu_custom_call.1}
  #allocation0 [shape = 'u32[]', space=smem, size = 0x4, offset = 0x4, fixed_abs, tag = 'smem constant byte address 0x4 - core index']
  #allocation1 [shape = 'u32[144,128]{1,0:T(1,128)}', space=vmem, size = 0x12000, scoped, tag = 'internal scratch']
  #allocation2 [shape = 's32[1]{0}', space=sflag, size = 0x4, scoped, tag = 'scoped memory for tpu_custom_call.1']
  #allocation3 [shape = 'u8[512]{0}', space=smem, size = 0x200, scoped, tag = 'prefetched SMEM operand 0']
  %s0 = inlined_call_operand.vmem [shape: s32[2], index: 0, kind: input, shape index: {}]
  %s1 = inlined_call_operand.vmem [shape: f32[2,8,32], index: 1, kind: input, shape index: {}]
  %s2 = inlined_call_operand.vmem [shape: bf16[2,32,96], index: 2, kind: input, shape index: {}]
  %s3 = inlined_call_operand.vmem [shape: bf16[2,4,8,32], index: 3, kind: input, shape index: {}]
  %s4 = inlined_call_operand.vmem [shape: bf16[2,32,128], index: 4, kind: input, shape index: {}]
  %s5 = inlined_call_operand.vmem [shape: bf16[2,128,32], index: 5, kind: input, shape index: {}]
  %s6 = inlined_call_operand.vmem [shape: bf16[32,128], index: 6, kind: input, shape index: {}]
  %s7 = inlined_call_operand.vmem [shape: f32[2,6,32], index: 7, kind: input, shape index: {}]
  %s8 = inlined_call_operand.vmem [shape: f32[5,128], index: 8, kind: input, shape index: {}]
  %s9 = inlined_call_operand.hbm [shape: f32[2,8,128], index: 9, kind: output, shape index: {}]
  %s10 = sld [smem:[#allocation0]]
  $region65: #{tpu_custom_call.1} parent=0
    _
  %s12 = ssub.s32 1, %s10
  %s13 = scalar_select 0, %s12, %s10
  %s14 = sshll.u32 %s0, 4
  %s15 = int_to_ptr.vmem [resolvable:$true] %s14
  %17 = dma.vmem_to_smem %s15, 16, [#allocation3], [#allocation2]
  %18 = dma.done [#allocation2], 16
  %19 = sfence
  $region1: #{tpu_custom_call.1} parent=0
    #allocation4 [shape = 'u8[8192]{0}', space=vmem, size = 0x2000, scoped, tag = 'output window, operand 0']
    #allocation5 [shape = 's32[2]{0}', space=sflag, size = 0x8, scoped, tag = 'scoped memory for tpu_custom_call.1']
    %20 = vsyncpa [#allocation5], 0
    %s21 = scalar_lea.sflag [#allocation5], 1
    %22 = vsyncpa %s21, 0
    loop: start=0, step=1, limit=4
    $region2: #{tpu_custom_call.1} parent=1 // loop_pre_header
      _
    $region3: #{tpu_custom_call.1} parent=1 // loop_header
      %s24 = sphi 0, %s28
      %p25 = scmp.ge.s32.totalorder %s24, 4
      %s34 = sphi 0, %s36
      %s37 = sphi 0, %s34
      %s38 = sphi 0, %s37
      %s54 = sphi 0, %s38
      %s58 = sphi 0, %s58
      %s60 = sphi 0, %s58
      %s61 = sphi 0, %s60
      %s75 = sphi 0, %s61
      %s79 = sphi 0, %s79
      %s81 = sphi 0, %s79
      %s82 = sphi 0, %s81
      %s96 = sphi 0, %s82
      %s100 = sphi 0, %s100
      %s102 = sphi 0, %s100
      %s103 = sphi 0, %s102
      %s117 = sphi 0, %s103
      %s121 = sphi 0, %s121
      %s123 = sphi 0, %s121
      %s124 = sphi 0, %s123
      %s138 = sphi 0, %s124
      %s142 = sphi 0, %s142
      %s144 = sphi 0, %s142
      %s145 = sphi 0, %s144
      %s159 = sphi 0, %s145
      %s163 = sphi 0, %s163
      %s165 = sphi 0, %s163
      %s166 = sphi 0, %s165
      %s180 = sphi 0, %s166
      %s184 = sphi 0, %s184
      %s186 = sphi 0, %s184
      %s187 = sphi 0, %s186
      %s201 = sphi 0, %s187
      %s207 = sphi 0, %s209
      %s210 = sphi 0, %s207
      %s211 = sphi 0, %s210
      %s227 = sphi 0, %s211
    $region4: #{tpu_custom_call.1} parent=1 // loop_header_branch
      %27 = sbr.rel (%p25) target = $region8
    $region5: #{tpu_custom_call.1} parent=1 // loop_body
      %s29 = ssub.s32 %s24, 1
      %s30 = ssub.s32 %s24, 2
      %s31 = sadd.s32 %s24, 1
      %s32 = ssub.s32 %s24, %s31
      %p33 = scmp.eq.s32.totalorder %s32, 0
      %s35 = sadd.s32 %s34, 1
      %s36 = scalar_select %p33, %s34, %s35
      %p39 = pneg %p33
      %p40 = scmp.eq.s32.totalorder %s24, 1
      %p41 = por %p39, %p40
      %p42 = scmp.ne.s32.totalorder %s34, %s37
      %p43 = scmp.eq.s32.totalorder %s24, 0
      %p44 = por %p42, %p43
      %p45 = scmp.ne.s32.totalorder %s34, %s37
      %p46 = scmp.eq.s32.totalorder %s29, 1
      %p47 = por %p45, %p46
      %p48 = scmp.ne.s32.totalorder %s37, %s38
      %p49 = scmp.eq.s32.totalorder %s29, 0
      %p50 = por %p48, %p49
      %p51 = scmp.ne.s32.totalorder %s37, %s38
      %p52 = scmp.eq.s32.totalorder %s30, 1
      %p53 = por %p51, %p52
      %p55 = scmp.ne.s32.totalorder %s38, %s54
      %p56 = scmp.eq.s32.totalorder %s30, 0
      %p57 = por %p55, %p56
      %s59 = sadd.s32 %s58, 1
      %p62 = scmp.eq.s32.totalorder %s24, 1
      %p63 = scmp.ne.s32.totalorder %s58, %s60
      %p64 = scmp.eq.s32.totalorder %s24, 0
      %p65 = por %p63, %p64
      %p66 = scmp.ne.s32.totalorder %s58, %s60
      %p67 = scmp.eq.s32.totalorder %s29, 1
      %p68 = por %p66, %p67
      %p69 = scmp.ne.s32.totalorder %s60, %s61
      %p70 = scmp.eq.s32.totalorder %s29, 0
      %p71 = por %p69, %p70
      %p72 = scmp.ne.s32.totalorder %s60, %s61
      %p73 = scmp.eq.s32.totalorder %s30, 1
      %p74 = por %p72, %p73
      %p76 = scmp.ne.s32.totalorder %s61, %s75
      %p77 = scmp.eq.s32.totalorder %s30, 0
      %p78 = por %p76, %p77
      %s80 = sadd.s32 %s79, 1
      %p83 = scmp.eq.s32.totalorder %s24, 1
      %p84 = scmp.ne.s32.totalorder %s79, %s81
      %p85 = scmp.eq.s32.totalorder %s24, 0
      %p86 = por %p84, %p85
      %p87 = scmp.ne.s32.totalorder %s79, %s81
      %p88 = scmp.eq.s32.totalorder %s29, 1
      %p89 = por %p87, %p88
      %p90 = scmp.ne.s32.totalorder %s81, %s82
      %p91 = scmp.eq.s32.totalorder %s29, 0
      %p92 = por %p90, %p91
      %p93 = scmp.ne.s32.totalorder %s81, %s82
      %p94 = scmp.eq.s32.totalorder %s30, 1
      %p95 = por %p93, %p94
      %p97 = scmp.ne.s32.totalorder %s82, %s96
      %p98 = scmp.eq.s32.totalorder %s30, 0
      %p99 = por %p97, %p98
      %s101 = sadd.s32 %s100, 1
      %p104 = scmp.eq.s32.totalorder %s24, 1
      %p105 = scmp.ne.s32.totalorder %s100, %s102
      %p106 = scmp.eq.s32.totalorder %s24, 0
      %p107 = por %p105, %p106
      %p108 = scmp.ne.s32.totalorder %s100, %s102
      %p109 = scmp.eq.s32.totalorder %s29, 1
      %p110 = por %p108, %p109
      %p111 = scmp.ne.s32.totalorder %s102, %s103
      %p112 = scmp.eq.s32.totalorder %s29, 0
      %p113 = por %p111, %p112
      %p114 = scmp.ne.s32.totalorder %s102, %s103
      %p115 = scmp.eq.s32.totalorder %s30, 1
      %p116 = por %p114, %p115
      %p118 = scmp.ne.s32.totalorder %s103, %s117
      %p119 = scmp.eq.s32.totalorder %s30, 0
      %p120 = por %p118, %p119
      %s122 = sadd.s32 %s121, 1
      %p125 = scmp.eq.s32.totalorder %s24, 1
      %p126 = scmp.ne.s32.totalorder %s121, %s123
      %p127 = scmp.eq.s32.totalorder %s24, 0
      %p128 = por %p126, %p127
      %p129 = scmp.ne.s32.totalorder %s121, %s123
      %p130 = scmp.eq.s32.totalorder %s29, 1
      %p131 = por %p129, %p130
      %p132 = scmp.ne.s32.totalorder %s123, %s124
      %p133 = scmp.eq.s32.totalorder %s29, 0
      %p134 = por %p132, %p133
      %p135 = scmp.ne.s32.totalorder %s123, %s124
      %p136 = scmp.eq.s32.totalorder %s30, 1
      %p137 = por %p135, %p136
      %p139 = scmp.ne.s32.totalorder %s124, %s138
      %p140 = scmp.eq.s32.totalorder %s30, 0
      %p141 = por %p139, %p140
      %s143 = sadd.s32 %s142, 1
      %p146 = scmp.eq.s32.totalorder %s24, 1
      %p147 = scmp.ne.s32.totalorder %s142, %s144
      %p148 = scmp.eq.s32.totalorder %s24, 0
      %p149 = por %p147, %p148
      %p150 = scmp.ne.s32.totalorder %s142, %s144
      %p151 = scmp.eq.s32.totalorder %s29, 1
      %p152 = por %p150, %p151
      %p153 = scmp.ne.s32.totalorder %s144, %s145
      %p154 = scmp.eq.s32.totalorder %s29, 0
      %p155 = por %p153, %p154
      %p156 = scmp.ne.s32.totalorder %s144, %s145
      %p157 = scmp.eq.s32.totalorder %s30, 1
      %p158 = por %p156, %p157
      %p160 = scmp.ne.s32.totalorder %s145, %s159
      %p161 = scmp.eq.s32.totalorder %s30, 0
      %p162 = por %p160, %p161
      %s164 = sadd.s32 %s163, 1
      %p167 = scmp.eq.s32.totalorder %s24, 1
      %p168 = scmp.ne.s32.totalorder %s163, %s165
      %p169 = scmp.eq.s32.totalorder %s24, 0
      %p170 = por %p168, %p169
      %p171 = scmp.ne.s32.totalorder %s163, %s165
      %p172 = scmp.eq.s32.totalorder %s29, 1
      %p173 = por %p171, %p172
      %p174 = scmp.ne.s32.totalorder %s165, %s166
      %p175 = scmp.eq.s32.totalorder %s29, 0
      %p176 = por %p174, %p175
      %p177 = scmp.ne.s32.totalorder %s165, %s166
      %p178 = scmp.eq.s32.totalorder %s30, 1
      %p179 = por %p177, %p178
      %p181 = scmp.ne.s32.totalorder %s166, %s180
      %p182 = scmp.eq.s32.totalorder %s30, 0
      %p183 = por %p181, %p182
      %s185 = sadd.s32 %s184, 1
      %p188 = scmp.eq.s32.totalorder %s24, 1
      %p189 = scmp.ne.s32.totalorder %s184, %s186
      %p190 = scmp.eq.s32.totalorder %s24, 0
      %p191 = por %p189, %p190
      %p192 = scmp.ne.s32.totalorder %s184, %s186
      %p193 = scmp.eq.s32.totalorder %s29, 1
      %p194 = por %p192, %p193
      %p195 = scmp.ne.s32.totalorder %s186, %s187
      %p196 = scmp.eq.s32.totalorder %s29, 0
      %p197 = por %p195, %p196
      %p198 = scmp.ne.s32.totalorder %s186, %s187
      %p199 = scmp.eq.s32.totalorder %s30, 1
      %p200 = por %p198, %p199
      %p202 = scmp.ne.s32.totalorder %s187, %s201
      %p203 = scmp.eq.s32.totalorder %s30, 0
      %p204 = por %p202, %p203
      %s205 = ssub.s32 %s24, %s31
      %p206 = scmp.eq.s32.totalorder %s205, 0
      %s208 = sadd.s32 %s207, 1
      %s209 = scalar_select %p206, %s207, %s208
      %p212 = pneg %p206
      %p213 = scmp.eq.s32.totalorder %s24, 1
      %p214 = por %p212, %p213
      %p215 = scmp.ne.s32.totalorder %s207, %s210
      %p216 = scmp.eq.s32.totalorder %s24, 0
      %p217 = por %p215, %p216
      %p218 = scmp.ne.s32.totalorder %s207, %s210
      %p219 = scmp.eq.s32.totalorder %s29, 1
      %p220 = por %p218, %p219
      %p221 = scmp.ne.s32.totalorder %s210, %s211
      %p222 = scmp.eq.s32.totalorder %s29, 0
      %p223 = por %p221, %p222
      %p224 = scmp.ne.s32.totalorder %s210, %s211
      %p225 = scmp.eq.s32.totalorder %s30, 1
      %p226 = por %p224, %p225
      %p228 = scmp.ne.s32.totalorder %s211, %s227
      %p229 = scmp.eq.s32.totalorder %s30, 0
      %p230 = por %p228, %p229
      %p231 = scmp.le.s32.totalorder 1, %s24
      %p232 = scmp.lt.s32.totalorder %s24, 3
      %p233 = pnand %p231, %p232
      %p234 = pneg %p233
      // Predicated region
      $region9: #{tpu_custom_call.1} parent=5 // pred_check
        _
      $region10: #{tpu_custom_call.1} parent=5 // pred_check_branch
        %236 = sbr.rel (%p233) target = $region12
      $region11: #{tpu_custom_call.1} parent=5 // pred_region
        %s237 = ssub.s32 %s24, 1
        // Predicated region
        $region13: #{tpu_custom_call.1} parent=11 // pred_check
          %p238 = pneg %p71
        $region14: #{tpu_custom_call.1} parent=11 // pred_check_branch
          %240 = sbr.rel (%p238) target = $region16
        $region15: #{tpu_custom_call.1} parent=11 // pred_region
          _
        $region16: #{tpu_custom_call.1} parent=11 // pred_fallthru
          _
        // Predicated region
        $region17: #{tpu_custom_call.1} parent=11 // pred_check
          %p241 = pneg %p92
        $region18: #{tpu_custom_call.1} parent=11 // pred_check_branch
          %243 = sbr.rel (%p241) target = $region20
        $region19: #{tpu_custom_call.1} parent=11 // pred_region
          _
        $region20: #{tpu_custom_call.1} parent=11 // pred_fallthru
          _
        // Predicated region
        $region21: #{tpu_custom_call.1} parent=11 // pred_check
          %p244 = pneg %p113
        $region22: #{tpu_custom_call.1} parent=11 // pred_check_branch
          %246 = sbr.rel (%p244) target = $region24
        $region23: #{tpu_custom_call.1} parent=11 // pred_region
          _
        $region24: #{tpu_custom_call.1} parent=11 // pred_fallthru
          _
        // Predicated region
        $region25: #{tpu_custom_call.1} parent=11 // pred_check
          %p247 = pneg %p134
        $region26: #{tpu_custom_call.1} parent=11 // pred_check_branch
          %249 = sbr.rel (%p247) target = $region28
        $region27: #{tpu_custom_call.1} parent=11 // pred_region
          _
        $region28: #{tpu_custom_call.1} parent=11 // pred_fallthru
          _
        // Predicated region
        $region29: #{tpu_custom_call.1} parent=11 // pred_check
          %p250 = pneg %p155
        $region30: #{tpu_custom_call.1} parent=11 // pred_check_branch
          %252 = sbr.rel (%p250) target = $region32
        $region31: #{tpu_custom_call.1} parent=11 // pred_region
          _
        $region32: #{tpu_custom_call.1} parent=11 // pred_fallthru
          _
        // Predicated region
        $region33: #{tpu_custom_call.1} parent=11 // pred_check
          %p253 = pneg %p176
        $region34: #{tpu_custom_call.1} parent=11 // pred_check_branch
          %255 = sbr.rel (%p253) target = $region36
        $region35: #{tpu_custom_call.1} parent=11 // pred_region
          _
        $region36: #{tpu_custom_call.1} parent=11 // pred_fallthru
          _
        // Predicated region
        $region37: #{tpu_custom_call.1} parent=11 // pred_check
          %p256 = pneg %p197
        $region38: #{tpu_custom_call.1} parent=11 // pred_check_branch
          %258 = sbr.rel (%p256) target = $region40
        $region39: #{tpu_custom_call.1} parent=11 // pred_region
          _
        $region40: #{tpu_custom_call.1} parent=11 // pred_fallthru
          _
      $region12: #{tpu_custom_call.1} parent=5 // pred_fallthru
        _
      %p259 = scmp.lt.s32.totalorder %s24, 2
      // Predicated region
      $region41: #{tpu_custom_call.1} parent=5 // pred_check
        %p260 = pneg %p259
      $region42: #{tpu_custom_call.1} parent=5 // pred_check_branch
        %262 = sbr.rel (%p260) target = $region44
      $region43: #{tpu_custom_call.1} parent=5 // pred_region
        // Predicated region
        $region45: #{tpu_custom_call.1} parent=43 // pred_check
          %p263 = pneg %p44
        $region46: #{tpu_custom_call.1} parent=43 // pred_check_branch
          %265 = sbr.rel (%p263) target = $region48
        $region47: #{tpu_custom_call.1} parent=43 // pred_region
          %p266 = scmp.lt.s32.totalorder %s24, 1
          %s267 = scalar_select %p266, %s24, 1
          %s268 = smul.addr %s267, 8
          %s269 = scalar_lea.vmem %s1, %s268
        $region48: #{tpu_custom_call.1} parent=43 // pred_fallthru
          _
      $region44: #{tpu_custom_call.1} parent=5 // pred_fallthru
        _
      %p270 = scmp.le.s32.totalorder 1, %s24
      %p271 = scmp.lt.s32.totalorder %s24, 3
      %p272 = pnand %p270, %p271
      %p273 = pneg %p272
      // Predicated region
      $region49: #{tpu_custom_call.1} parent=5 // pred_check
        _
      $region50: #{tpu_custom_call.1} parent=5 // pred_check_branch
        %275 = sbr.rel (%p272) target = $region52
      $region51: #{tpu_custom_call.1} parent=5 // pred_region
        %s276 = ssub.s32 %s24, 1
        %p277 = scmp.lt.s32.totalorder %s29, 1
        %s278 = scalar_select %p277, %s29, 1
        %s279 = smul.addr %s278, 8
        %s280 = scalar_lea.vmem %s1, %s279
        %p281 = pneg %p50
        %p282 = pneg %p47
        %p283 = pneg %p71
        %p284 = pneg %p68
        %p285 = pneg %p92
        %p286 = pneg %p89
        %p287 = pneg %p113
        %p288 = pneg %p110
        %p289 = pneg %p134
        %p290 = pneg %p131
        %p291 = pneg %p155
        %p292 = pneg %p152
        %p293 = pneg %p176
        %p294 = pneg %p173
        %p295 = pneg %p197
        %p296 = pneg %p194
        %p297 = pneg %p223
        %p298 = pneg %p220
        %s299 = sand.u32 %s210, 1
        %s300 = scalar_lea.sflag [#allocation5], %s299
        %s301 = sand.u32 %s210, 1
        %s302 = smul.addr %s301, 8
        %s303 = scalar_lea.vmem [#allocation4], %s302
        %p304 = scmp.lt.s32.totalorder %s29, 1
        %s305 = scalar_select %p304, %s29, 1
        %s306 = smul.addr %s305, 8
        %s307 = scalar_lea.vmem %s1, %s306
        %s309 = sld [smem:[#allocation3 + %s29]]
        %v310 = vld [vmem:[%s307] sm:$0xff]
        %v311 = vld [vmem:[%s8] sm:$0x1f]
        %v312 = vlaneseq
        %v313 = vshrl.u32 %v312, 7
        %v314 = vlaneseq
        %v315 = vand.u32 %v314, 127
        %v316 = vstv %s309
        %vm317 = vcmp.lt.s32.totalorder %v315, %v316
        %vm318 = vcmp.ge.s32.totalorder %v313, %v316
        %vm319 = vcmp.le.s32.totalorder %v315, %v313
        %vm320 = vmand %vm318, %vm319
        %vm321 = vmor %vm317, %vm320
        %v322 = vsel %vm321, 0.0, -1e+09
        %v323 = vld [vmem:[%s7] sm:$0x3f]
        %v324 = vpack.c.bf16 %v310, %v310
        %v325 = vld [vmem:[%s2] sm:$0xf]
        %v326 = vld [vmem:[%s2 + $0x4] sm:$0xf]
        %v327 = vld [vmem:[%s2 + $0x8] sm:$0xf]
        %v328 = vld [vmem:[%s2 + $0xc] sm:$0xf]
        %v329 = vlaneseq
        %v330 = vshrl.u32 %v329, 7
        %v331 = vsub.s32 0, %v330
        %v332 = vrot.slane %v311, %v331
        %v337 = vunpack.c.l.b16 %v325
        %v338 = vunpack.c.l.b16 %v326
        %v339 = vunpack.c.l.b16 %v327
        %v340 = vunpack.c.l.b16 %v328
        %v341 = vpack.c.b16 %v338, %v337
        %v342 = vpack.c.b16 %v340, %v339
        %vm345 = vcmask 261120
        %v347 = vsel %vm345, %v324, 0
        %349 = vmatprep.subr.bf16.mxu0 0
        %350 = vmatpush1.bf16.msra.mxu0 %v341
        %351 = vmatprep.subr.bf16.mxu0 0
        %352 = vmatpush1.bf16.msra.mxu0 %v342
        %353 = vmatprep.subr.bf16.mxu0 0
        %354 = vmatpush1.bf16.msra.mxu0 0
        %355 = vmatprep.subr.bf16.mxu0 0
        %356 = vmatpush1.bf16.msra.mxu0 0
        %357 = vmatprep.subr.bf16.mxu0 0
        %358 = vmatpush1.bf16.msra.mxu0 0
        %359 = vmatprep.subr.bf16.mxu0 0
        %360 = vmatpush1.bf16.msra.mxu0 0
        %361 = vmatprep.subr.bf16.mxu0 0
        %362 = vmatpush1.bf16.msra.mxu0 0
        %363 = vmatprep.subr.bf16.mxu0 0
        %364 = vmatpush1.bf16.msra.mxu0 0
        %365 = vmatprep.subr.bf16.mxu0 0
        %366 = vmatpush1.bf16.msra.mxu0 0
        %367 = vmatprep.subr.bf16.mxu0 0
        %368 = vmatpush1.bf16.msra.mxu0 0
        %369 = vmatprep.subr.bf16.mxu0 0
        %370 = vmatpush1.bf16.msra.mxu0 0
        %371 = vmatprep.subr.bf16.mxu0 0
        %372 = vmatpush1.bf16.msra.mxu0 0
        %373 = vmatprep.subr.bf16.mxu0 0
        %374 = vmatpush1.bf16.msra.mxu0 0
        %375 = vmatprep.subr.bf16.mxu0 0
        %376 = vmatpush1.bf16.msra.mxu0 0
        %377 = vmatprep.subr.bf16.mxu0 0
        %378 = vmatpush1.bf16.msra.mxu0 0
        %379 = vmatprep.subr.bf16.mxu0 0
        %380 = vmatpush1.bf16.msra.mxu0 0
        %381 = vmatprep.mubr.bf16.mxu0 0
        %382 = vmatmul.mubr.bf16.gmra.mrb[0].mxu0 %v347
        %v383 = vpop.f32.mrb[0].mxu0
        %v384 = vadd.f32 %v332, %v383
        %v385 = vpop.f32.mrb[0].mxu0
        %v386 = vpop.f32.mrb[0].mxu0
        %v387 = vpop.f32.mrb[0].mxu0
        %388 = vdwg.mxu0
        %v389 = vpack.c.bf16 %v384, %v384
        %391 = vrot.lane.b32.xlu0 %v389, 120
        %v392 = vpop.permute.xlu0 %391
        %393 = vrot.lane.b32.xlu0 %v389, 112
        %v394 = vpop.permute.xlu0 %393
        %395 = vrot.lane.b32.xlu0 %v389, 104
        %v396 = vpop.permute.xlu0 %395
        %397 = vrot.lane.b32.xlu0 %v389, 96
        %v398 = vpop.permute.xlu0 %397
        %vm399 = vcmask 64512
        %v401 = vsel %vm399, %v389, 0
        %v404 = vsel %vm399, %v398, 0
        %406 = vmatprep.subr.bf16.mxu0 0
        %407 = vmatpush1.bf16.xpose.msra.mxu0 %v404
        %408 = vmatprep.subr.bf16.mxu0 0
        %409 = vmatpush1.bf16.xpose.msra.mxu0 0
        %410 = vmatprep.subr.bf16.mxu0 0
        %411 = vmatpush1.bf16.xpose.msra.mxu0 0
        %412 = vmatprep.subr.bf16.mxu0 0
        %413 = vmatpush1.bf16.xpose.msra.mxu0 0
        %414 = vmatprep.subr.bf16.mxu0 0
        %415 = vmatpush1.bf16.xpose.msra.mxu0 0
        %416 = vmatprep.subr.bf16.mxu0 0
        %417 = vmatpush1.bf16.xpose.msra.mxu0 0
        %418 = vmatprep.subr.bf16.mxu0 0
        %419 = vmatpush1.bf16.xpose.msra.mxu0 0
        %420 = vmatprep.subr.bf16.mxu0 0
        %421 = vmatpush1.bf16.xpose.msra.mxu0 0
        %422 = vmatprep.subr.bf16.mxu0 0
        %423 = vmatpush1.bf16.xpose.msra.mxu0 0
        %424 = vmatprep.subr.bf16.mxu0 0
        %425 = vmatpush1.bf16.xpose.msra.mxu0 0
        %426 = vmatprep.subr.bf16.mxu0 0
        %427 = vmatpush1.bf16.xpose.msra.mxu0 0
        %428 = vmatprep.subr.bf16.mxu0 0
        %429 = vmatpush1.bf16.xpose.msra.mxu0 0
        %430 = vmatprep.subr.bf16.mxu0 0
        %431 = vmatpush1.bf16.xpose.msra.mxu0 0
        %432 = vmatprep.subr.bf16.mxu0 0
        %433 = vmatpush1.bf16.xpose.msra.mxu0 0
        %434 = vmatprep.subr.bf16.mxu0 0
        %435 = vmatpush1.bf16.xpose.msra.mxu0 0
        %436 = vmatprep.subr.bf16.mxu0 0
        %437 = vmatpush1.bf16.xpose.msra.mxu0 0
        %438 = vmatprep.mubr.bf16.mxu0 0
        %439 = vmatmul.mubr.bf16.gmra.mrb[0].mxu0 %v401
        %v440 = vpop.f32.mrb[0].mxu0
        %v441 = vadd.f32 0.0, %v440
        %v442 = vpop.f32.mrb[0].mxu0
        %v443 = vpop.f32.mrb[0].mxu0
        %v444 = vpop.f32.mrb[0].mxu0
        %445 = vdwg.mxu0
        %446 = vrot.lane.b32.xlu0 %v392, 96
        %v447 = vpop.permute.xlu0 %446
        %v449 = vsel %vm399, %v392, 0
        %v452 = vsel %vm399, %v447, 0
        %454 = vmatprep.subr.bf16.mxu0 0
        %455 = vmatpush1.bf16.xpose.msra.mxu0 %v452
        %456 = vmatprep.subr.bf16.mxu0 0
        %457 = vmatpush1.bf16.xpose.msra.mxu0 0
        %458 = vmatprep.subr.bf16.mxu0 0
        %459 = vmatpush1.bf16.xpose.msra.mxu0 0
        %460 = vmatprep.subr.bf16.mxu0 0
        %461 = vmatpush1.bf16.xpose.msra.mxu0 0
        %462 = vmatprep.subr.bf16.mxu0 0
        %463 = vmatpush1.bf16.xpose.msra.mxu0 0
        %464 = vmatprep.subr.bf16.mxu0 0
        %465 = vmatpush1.bf16.xpose.msra.mxu0 0
        %466 = vmatprep.subr.bf16.mxu0 0
        %467 = vmatpush1.bf16.xpose.msra.mxu0 0
        %468 = vmatprep.subr.bf16.mxu0 0
        %469 = vmatpush1.bf16.xpose.msra.mxu0 0
        %470 = vmatprep.subr.bf16.mxu0 0
        %471 = vmatpush1.bf16.xpose.msra.mxu0 0
        %472 = vmatprep.subr.bf16.mxu0 0
        %473 = vmatpush1.bf16.xpose.msra.mxu0 0
        %474 = vmatprep.subr.bf16.mxu0 0
        %475 = vmatpush1.bf16.xpose.msra.mxu0 0
        %476 = vmatprep.subr.bf16.mxu0 0
        %477 = vmatpush1.bf16.xpose.msra.mxu0 0
        %478 = vmatprep.subr.bf16.mxu0 0
        %479 = vmatpush1.bf16.xpose.msra.mxu0 0
        %480 = vmatprep.subr.bf16.mxu0 0
        %481 = vmatpush1.bf16.xpose.msra.mxu0 0
        %482 = vmatprep.subr.bf16.mxu0 0
        %483 = vmatpush1.bf16.xpose.msra.mxu0 0
        %484 = vmatprep.subr.bf16.mxu0 0
        %485 = vmatpush1.bf16.xpose.msra.mxu0 0
        %486 = vmatprep.mubr.bf16.mxu0 0
        %487 = vmatmul.mubr.bf16.gmra.mrb[0].mxu0 %v449
        %v488 = vpop.f32.mrb[0].mxu0
        %v489 = vadd.f32 0.0, %v488
        %v490 = vpop.f32.mrb[0].mxu0
        %v491 = vpop.f32.mrb[0].mxu0
        %v492 = vpop.f32.mrb[0].mxu0
        %493 = vdwg.mxu0
        %494 = vrot.lane.b32.xlu0 %v394, 96
        %v495 = vpop.permute.xlu0 %494
        %v497 = vsel %vm399, %v394, 0
        %v500 = vsel %vm399, %v495, 0
        %502 = vmatprep.subr.bf16.mxu0 0
        %503 = vmatpush1.bf16.xpose.msra.mxu0 %v500
        %504 = vmatprep.subr.bf16.mxu0 0
        %505 = vmatpush1.bf16.xpose.msra.mxu0 0
        %506 = vmatprep.subr.bf16.mxu0 0
        %507 = vmatpush1.bf16.xpose.msra.mxu0 0
        %508 = vmatprep.subr.bf16.mxu0 0
        %509 = vmatpush1.bf16.xpose.msra.mxu0 0
        %510 = vmatprep.subr.bf16.mxu0 0
        %511 = vmatpush1.bf16.xpose.msra.mxu0 0
        %512 = vmatprep.subr.bf16.mxu0 0
        %513 = vmatpush1.bf16.xpose.msra.mxu0 0
        %514 = vmatprep.subr.bf16.mxu0 0
        %515 = vmatpush1.bf16.xpose.msra.mxu0 0
        %516 = vmatprep.subr.bf16.mxu0 0
        %517 = vmatpush1.bf16.xpose.msra.mxu0 0
        %518 = vmatprep.subr.bf16.mxu0 0
        %519 = vmatpush1.bf16.xpose.msra.mxu0 0
        %520 = vmatprep.subr.bf16.mxu0 0
        %521 = vmatpush1.bf16.xpose.msra.mxu0 0
        %522 = vmatprep.subr.bf16.mxu0 0
        %523 = vmatpush1.bf16.xpose.msra.mxu0 0
        %524 = vmatprep.subr.bf16.mxu0 0
        %525 = vmatpush1.bf16.xpose.msra.mxu0 0
        %526 = vmatprep.subr.bf16.mxu0 0
        %527 = vmatpush1.bf16.xpose.msra.mxu0 0
        %528 = vmatprep.subr.bf16.mxu0 0
        %529 = vmatpush1.bf16.xpose.msra.mxu0 0
        %530 = vmatprep.subr.bf16.mxu0 0
        %531 = vmatpush1.bf16.xpose.msra.mxu0 0
        %532 = vmatprep.subr.bf16.mxu0 0
        %533 = vmatpush1.bf16.xpose.msra.mxu0 0
        %534 = vmatprep.mubr.bf16.mxu0 0
        %535 = vmatmul.mubr.bf16.gmra.mrb[0].mxu0 %v497
        %v536 = vpop.f32.mrb[0].mxu0
        %v537 = vadd.f32 0.0, %v536
        %v538 = vpop.f32.mrb[0].mxu0
        %v539 = vpop.f32.mrb[0].mxu0
        %v540 = vpop.f32.mrb[0].mxu0
        %541 = vdwg.mxu0
        %542 = vrot.lane.b32.xlu0 %v396, 96
        %v543 = vpop.permute.xlu0 %542
        %v545 = vsel %vm399, %v396, 0
        %v548 = vsel %vm399, %v543, 0
        %550 = vmatprep.subr.bf16.mxu0 0
        %551 = vmatpush1.bf16.xpose.msra.mxu0 %v548
        %552 = vmatprep.subr.bf16.mxu0 0
        %553 = vmatpush1.bf16.xpose.msra.mxu0 0
        %554 = vmatprep.subr.bf16.mxu0 0
        %555 = vmatpush1.bf16.xpose.msra.mxu0 0
        %556 = vmatprep.subr.bf16.mxu0 0
        %557 = vmatpush1.bf16.xpose.msra.mxu0 0
        %558 = vmatprep.subr.bf16.mxu0 0
        %559 = vmatpush1.bf16.xpose.msra.mxu0 0
        %560 = vmatprep.subr.bf16.mxu0 0
        %561 = vmatpush1.bf16.xpose.msra.mxu0 0
        %562 = vmatprep.subr.bf16.mxu0 0
        %563 = vmatpush1.bf16.xpose.msra.mxu0 0
        %564 = vmatprep.subr.bf16.mxu0 0
        %565 = vmatpush1.bf16.xpose.msra.mxu0 0
        %566 = vmatprep.subr.bf16.mxu0 0
        %567 = vmatpush1.bf16.xpose.msra.mxu0 0
        %568 = vmatprep.subr.bf16.mxu0 0
        %569 = vmatpush1.bf16.xpose.msra.mxu0 0
        %570 = vmatprep.subr.bf16.mxu0 0
        %571 = vmatpush1.bf16.xpose.msra.mxu0 0
        %572 = vmatprep.subr.bf16.mxu0 0
        %573 = vmatpush1.bf16.xpose.msra.mxu0 0
        %574 = vmatprep.subr.bf16.mxu0 0
        %575 = vmatpush1.bf16.xpose.msra.mxu0 0
        %576 = vmatprep.subr.bf16.mxu0 0
        %577 = vmatpush1.bf16.xpose.msra.mxu0 0
        %578 = vmatprep.subr.bf16.mxu0 0
        %579 = vmatpush1.bf16.xpose.msra.mxu0 0
        %580 = vmatprep.subr.bf16.mxu0 0
        %581 = vmatpush1.bf16.xpose.msra.mxu0 0
        %582 = vmatprep.mubr.bf16.mxu0 0
        %583 = vmatmul.mubr.bf16.gmra.mrb[0].mxu0 %v545
        %v584 = vpop.f32.mrb[0].mxu0
        %v585 = vadd.f32 0.0, %v584
        %v586 = vpop.f32.mrb[0].mxu0
        %v587 = vpop.f32.mrb[0].mxu0
        %v588 = vpop.f32.mrb[0].mxu0
        %589 = vdwg.mxu0
        %v590 = vmul.f32 %v441, 0.35355338
        %v591 = vmul.f32 %v489, 0.35355338
        %v592 = vmul.f32 %v537, 0.35355338
        %v593 = vmul.f32 %v585, 0.35355338
        %v594 = vadd.f32 %v590, %v322
        %v595 = vadd.f32 %v591, %v322
        %v596 = vadd.f32 %v592, %v322
        %v597 = vadd.f32 %v593, %v322
        %v598 = vsel %vm399, %v594, -inf
        %599 = vmax.xlane.f32.xlu0 %v598
        %v600 = vpop.xlane.xlu0 %599
        %v601 = vsel %vm399, %v595, -inf
        %602 = vmax.xlane.f32.xlu0 %v601
        %v603 = vpop.xlane.xlu0 %602
        %v604 = vsel %vm399, %v596, -inf
        %605 = vmax.xlane.f32.xlu0 %v604
        %v606 = vpop.xlane.xlu0 %605
        %v607 = vsel %vm399, %v597, -inf
        %608 = vmax.xlane.f32.xlu0 %v607
        %v609 = vpop.xlane.xlu0 %608
        %v610 = vsub.f32 %v594, %v600
        %v611 = vsub.f32 %v595, %v603
        %v612 = vsub.f32 %v596, %v606
        %v613 = vsub.f32 %v597, %v609
        %v614 = vmul.f32 %v610, 1.442695
        %v615 = vpow.pop %v614
        %v616 = vmul.f32 %v611, 1.442695
        %v617 = vpow.pop %v616
        %v618 = vmul.f32 %v612, 1.442695
        %v619 = vpow.pop %v618
        %v620 = vmul.f32 %v613, 1.442695
        %v621 = vpow.pop %v620
        %v622 = vsel %vm399, %v615, 0.0
        %623 = vadd.xlane.f32.xlu0 %v622
        %v624 = vpop.xlane.xlu0 %623
        %v625 = vsel %vm399, %v617, 0.0
        %626 = vadd.xlane.f32.xlu0 %v625
        %v627 = vpop.xlane.xlu0 %626
        %v628 = vsel %vm399, %v619, 0.0
        %629 = vadd.xlane.f32.xlu0 %v628
        %v630 = vpop.xlane.xlu0 %629
        %v631 = vsel %vm399, %v621, 0.0
        %632 = vadd.xlane.f32.xlu0 %v631
        %v633 = vpop.xlane.xlu0 %632
        %v634 = vrcp.pop %v624
        %v635 = vrcp.pop %v627
        %v636 = vrcp.pop %v630
        %v637 = vrcp.pop %v633
        %v638 = vmul.f32 %v615, %v634
        %v639 = vmul.f32 %v617, %v635
        %v640 = vmul.f32 %v619, %v636
        %v641 = vmul.f32 %v621, %v637
        %v642 = vpack.c.bf16 %v638, %v638
        %v643 = vpack.c.bf16 %v639, %v639
        %v644 = vpack.c.bf16 %v640, %v640
        %v645 = vpack.c.bf16 %v641, %v641
        %646 = vrot.lane.b32.xlu0 %v389, 64
        %v647 = vpop.permute.xlu0 %646
        %v649 = vsel %vm399, %v642, 0
        %vm651 = vcmask 1043456
        %v653 = vsel %vm651, %v647, 0
        %655 = vmatprep.subr.bf16.mxu0 0
        %656 = vmatpush1.bf16.msra.mxu0 %v653
        %657 = vmatprep.subr.bf16.mxu0 0
        %658 = vmatpush1.bf16.msra.mxu0 0
        %659 = vmatprep.subr.bf16.mxu0 0
        %660 = vmatpush1.bf16.msra.mxu0 0
        %661 = vmatprep.subr.bf16.mxu0 0
        %662 = vmatpush1.bf16.msra.mxu0 0
        %663 = vmatprep.subr.bf16.mxu0 0
        %664 = vmatpush1.bf16.msra.mxu0 0
        %665 = vmatprep.subr.bf16.mxu0 0
        %666 = vmatpush1.bf16.msra.mxu0 0
        %667 = vmatprep.subr.bf16.mxu0 0
        %668 = vmatpush1.bf16.msra.mxu0 0
        %669 = vmatprep.subr.bf16.mxu0 0
        %670 = vmatpush1.bf16.msra.mxu0 0
        %671 = vmatprep.subr.bf16.mxu0 0
        %672 = vmatpush1.bf16.msra.mxu0 0
        %673 = vmatprep.subr.bf16.mxu0 0
        %674 = vmatpush1.bf16.msra.mxu0 0
        %675 = vmatprep.subr.bf16.mxu0 0
        %676 = vmatpush1.bf16.msra.mxu0 0
        %677 = vmatprep.subr.bf16.mxu0 0
        %678 = vmatpush1.bf16.msra.mxu0 0
        %679 = vmatprep.subr.bf16.mxu0 0
        %680 = vmatpush1.bf16.msra.mxu0 0
        %681 = vmatprep.subr.bf16.mxu0 0
        %682 = vmatpush1.bf16.msra.mxu0 0
        %683 = vmatprep.subr.bf16.mxu0 0
        %684 = vmatpush1.bf16.msra.mxu0 0
        %685 = vmatprep.subr.bf16.mxu0 0
        %686 = vmatpush1.bf16.msra.mxu0 0
        %687 = vmatprep.mubr.bf16.mxu0 0
        %688 = vmatmul.mubr.bf16.gmra.mrb[0].mxu0 %v649
        %v689 = vpop.f32.mrb[0].mxu0
        %v690 = vadd.f32 0.0, %v689
        %v691 = vpop.f32.mrb[0].mxu0
        %v692 = vpop.f32.mrb[0].mxu0
        %v693 = vpop.f32.mrb[0].mxu0
        %694 = vdwg.mxu0
        %695 = vrot.lane.b32.xlu0 %v392, 64
        %v696 = vpop.permute.xlu0 %695
        %v698 = vsel %vm399, %v643, 0
        %v701 = vsel %vm651, %v696, 0
        %703 = vmatprep.subr.bf16.mxu0 0
        %704 = vmatpush1.bf16.msra.mxu0 %v701
        %705 = vmatprep.subr.bf16.mxu0 0
        %706 = vmatpush1.bf16.msra.mxu0 0
        %707 = vmatprep.subr.bf16.mxu0 0
        %708 = vmatpush1.bf16.msra.mxu0 0
        %709 = vmatprep.subr.bf16.mxu0 0
        %710 = vmatpush1.bf16.msra.mxu0 0
        %711 = vmatprep.subr.bf16.mxu0 0
        %712 = vmatpush1.bf16.msra.mxu0 0
        %713 = vmatprep.subr.bf16.mxu0 0
        %714 = vmatpush1.bf16.msra.mxu0 0
        %715 = vmatprep.subr.bf16.mxu0 0
        %716 = vmatpush1.bf16.msra.mxu0 0
        %717 = vmatprep.subr.bf16.mxu0 0
        %718 = vmatpush1.bf16.msra.mxu0 0
        %719 = vmatprep.subr.bf16.mxu0 0
        %720 = vmatpush1.bf16.msra.mxu0 0
        %721 = vmatprep.subr.bf16.mxu0 0
        %722 = vmatpush1.bf16.msra.mxu0 0
        %723 = vmatprep.subr.bf16.mxu0 0
        %724 = vmatpush1.bf16.msra.mxu0 0
        %725 = vmatprep.subr.bf16.mxu0 0
        %726 = vmatpush1.bf16.msra.mxu0 0
        %727 = vmatprep.subr.bf16.mxu0 0
        %728 = vmatpush1.bf16.msra.mxu0 0
        %729 = vmatprep.subr.bf16.mxu0 0
        %730 = vmatpush1.bf16.msra.mxu0 0
        %731 = vmatprep.subr.bf16.mxu0 0
        %732 = vmatpush1.bf16.msra.mxu0 0
        %733 = vmatprep.subr.bf16.mxu0 0
        %734 = vmatpush1.bf16.msra.mxu0 0
        %735 = vmatprep.mubr.bf16.mxu0 0
        %736 = vmatmul.mubr.bf16.gmra.mrb[0].mxu0 %v698
        %v737 = vpop.f32.mrb[0].mxu0
        %v738 = vadd.f32 0.0, %v737
        %v739 = vpop.f32.mrb[0].mxu0
        %v740 = vpop.f32.mrb[0].mxu0
        %v741 = vpop.f32.mrb[0].mxu0
        %742 = vdwg.mxu0
        %743 = vrot.lane.b32.xlu0 %v394, 64
        %v744 = vpop.permute.xlu0 %743
        %v746 = vsel %vm399, %v644, 0
        %v749 = vsel %vm651, %v744, 0
        %751 = vmatprep.subr.bf16.mxu0 0
        %752 = vmatpush1.bf16.msra.mxu0 %v749
        %753 = vmatprep.subr.bf16.mxu0 0
        %754 = vmatpush1.bf16.msra.mxu0 0
        %755 = vmatprep.subr.bf16.mxu0 0
        %756 = vmatpush1.bf16.msra.mxu0 0
        %757 = vmatprep.subr.bf16.mxu0 0
        %758 = vmatpush1.bf16.msra.mxu0 0
        %759 = vmatprep.subr.bf16.mxu0 0
        %760 = vmatpush1.bf16.msra.mxu0 0
        %761 = vmatprep.subr.bf16.mxu0 0
        %762 = vmatpush1.bf16.msra.mxu0 0
        %763 = vmatprep.subr.bf16.mxu0 0
        %764 = vmatpush1.bf16.msra.mxu0 0
        %765 = vmatprep.subr.bf16.mxu0 0
        %766 = vmatpush1.bf16.msra.mxu0 0
        %767 = vmatprep.subr.bf16.mxu0 0
        %768 = vmatpush1.bf16.msra.mxu0 0
        %769 = vmatprep.subr.bf16.mxu0 0
        %770 = vmatpush1.bf16.msra.mxu0 0
        %771 = vmatprep.subr.bf16.mxu0 0
        %772 = vmatpush1.bf16.msra.mxu0 0
        %773 = vmatprep.subr.bf16.mxu0 0
        %774 = vmatpush1.bf16.msra.mxu0 0
        %775 = vmatprep.subr.bf16.mxu0 0
        %776 = vmatpush1.bf16.msra.mxu0 0
        %777 = vmatprep.subr.bf16.mxu0 0
        %778 = vmatpush1.bf16.msra.mxu0 0
        %779 = vmatprep.subr.bf16.mxu0 0
        %780 = vmatpush1.bf16.msra.mxu0 0
        %781 = vmatprep.subr.bf16.mxu0 0
        %782 = vmatpush1.bf16.msra.mxu0 0
        %783 = vmatprep.mubr.bf16.mxu0 0
        %784 = vmatmul.mubr.bf16.gmra.mrb[0].mxu0 %v746
        %v785 = vpop.f32.mrb[0].mxu0
        %v786 = vadd.f32 0.0, %v785
        %v787 = vpop.f32.mrb[0].mxu0
        %v788 = vpop.f32.mrb[0].mxu0
        %v789 = vpop.f32.mrb[0].mxu0
        %790 = vdwg.mxu0
        %791 = vrot.lane.b32.xlu0 %v396, 64
        %v792 = vpop.permute.xlu0 %791
        %v794 = vsel %vm399, %v645, 0
        %v797 = vsel %vm651, %v792, 0
        %799 = vmatprep.subr.bf16.mxu0 0
        %800 = vmatpush1.bf16.msra.mxu0 %v797
        %801 = vmatprep.subr.bf16.mxu0 0
        %802 = vmatpush1.bf16.msra.mxu0 0
        %803 = vmatprep.subr.bf16.mxu0 0
        %804 = vmatpush1.bf16.msra.mxu0 0
        %805 = vmatprep.subr.bf16.mxu0 0
        %806 = vmatpush1.bf16.msra.mxu0 0
        %807 = vmatprep.subr.bf16.mxu0 0
        %808 = vmatpush1.bf16.msra.mxu0 0
        %809 = vmatprep.subr.bf16.mxu0 0
        %810 = vmatpush1.bf16.msra.mxu0 0
        %811 = vmatprep.subr.bf16.mxu0 0
        %812 = vmatpush1.bf16.msra.mxu0 0
        %813 = vmatprep.subr.bf16.mxu0 0
        %814 = vmatpush1.bf16.msra.mxu0 0
        %815 = vmatprep.subr.bf16.mxu0 0
        %816 = vmatpush1.bf16.msra.mxu0 0
        %817 = vmatprep.subr.bf16.mxu0 0
        %818 = vmatpush1.bf16.msra.mxu0 0
        %819 = vmatprep.subr.bf16.mxu0 0
        %820 = vmatpush1.bf16.msra.mxu0 0
        %821 = vmatprep.subr.bf16.mxu0 0
        %822 = vmatpush1.bf16.msra.mxu0 0
        %823 = vmatprep.subr.bf16.mxu0 0
        %824 = vmatpush1.bf16.msra.mxu0 0
        %825 = vmatprep.subr.bf16.mxu0 0
        %826 = vmatpush1.bf16.msra.mxu0 0
        %827 = vmatprep.subr.bf16.mxu0 0
        %828 = vmatpush1.bf16.msra.mxu0 0
        %829 = vmatprep.subr.bf16.mxu0 0
        %830 = vmatpush1.bf16.msra.mxu0 0
        %831 = vmatprep.mubr.bf16.mxu0 0
        %832 = vmatmul.mubr.bf16.gmra.mrb[0].mxu0 %v794
        %v833 = vpop.f32.mrb[0].mxu0
        %v834 = vadd.f32 0.0, %v833
        %v835 = vpop.f32.mrb[0].mxu0
        %v836 = vpop.f32.mrb[0].mxu0
        %v837 = vpop.f32.mrb[0].mxu0
        %838 = vdwg.mxu0
        %v839 = vpack.c.bf16 %v690, %v690
        %v840 = vld [vmem:[%s3] sm:$0xf]
        %v842 = vsel %vm399, %v839, 0
        %v845 = vsel %vm651, %v840, 0
        %847 = vmatprep.subr.bf16.mxu0 0
        %848 = vmatpush1.bf16.msra.mxu0 %v845
        %849 = vmatprep.subr.bf16.mxu0 0
        %850 = vmatpush1.bf16.msra.mxu0 0
        %851 = vmatprep.subr.bf16.mxu0 0
        %852 = vmatpush1.bf16.msra.mxu0 0
        %853 = vmatprep.subr.bf16.mxu0 0
        %854 = vmatpush1.bf16.msra.mxu0 0
        %855 = vmatprep.subr.bf16.mxu0 0
        %856 = vmatpush1.bf16.msra.mxu0 0
        %857 = vmatprep.subr.bf16.mxu0 0
        %858 = vmatpush1.bf16.msra.mxu0 0
        %859 = vmatprep.subr.bf16.mxu0 0
        %860 = vmatpush1.bf16.msra.mxu0 0
        %861 = vmatprep.subr.bf16.mxu0 0
        %862 = vmatpush1.bf16.msra.mxu0 0
        %863 = vmatprep.subr.bf16.mxu0 0
        %864 = vmatpush1.bf16.msra.mxu0 0
        %865 = vmatprep.subr.bf16.mxu0 0
        %866 = vmatpush1.bf16.msra.mxu0 0
        %867 = vmatprep.subr.bf16.mxu0 0
        %868 = vmatpush1.bf16.msra.mxu0 0
        %869 = vmatprep.subr.bf16.mxu0 0
        %870 = vmatpush1.bf16.msra.mxu0 0
        %871 = vmatprep.subr.bf16.mxu0 0
        %872 = vmatpush1.bf16.msra.mxu0 0
        %873 = vmatprep.subr.bf16.mxu0 0
        %874 = vmatpush1.bf16.msra.mxu0 0
        %875 = vmatprep.subr.bf16.mxu0 0
        %876 = vmatpush1.bf16.msra.mxu0 0
        %877 = vmatprep.subr.bf16.mxu0 0
        %878 = vmatpush1.bf16.msra.mxu0 0
        %879 = vmatprep.mubr.bf16.mxu0 0
        %880 = vmatmul.mubr.bf16.gmra.mrb[0].mxu0 %v842
        %v881 = vpop.f32.mrb[0].mxu0
        %v882 = vadd.f32 0.0, %v881
        %v883 = vpop.f32.mrb[0].mxu0
        %v884 = vpop.f32.mrb[0].mxu0
        %v885 = vpop.f32.mrb[0].mxu0
        %886 = vdwg.mxu0
        %v887 = vlaneseq
        %v888 = vshrl.u32 %v887, 7
        %v889 = vsub.s32 0, %v888
        %v890 = vrot.slane %v323, %v889
        %v891 = vadd.f32 %v890, %v882
        %v892 = vpack.c.bf16 %v738, %v738
        %s893 = scalar_lea.vmem %s3, 4
        %v894 = vld [vmem:[%s893] sm:$0xf]
        %v896 = vsel %vm399, %v892, 0
        %v899 = vsel %vm651, %v894, 0
        %901 = vmatprep.subr.bf16.mxu0 0
        %902 = vmatpush1.bf16.msra.mxu0 %v899
        %903 = vmatprep.subr.bf16.mxu0 0
        %904 = vmatpush1.bf16.msra.mxu0 0
        %905 = vmatprep.subr.bf16.mxu0 0
        %906 = vmatpush1.bf16.msra.mxu0 0
        %907 = vmatprep.subr.bf16.mxu0 0
        %908 = vmatpush1.bf16.msra.mxu0 0
        %909 = vmatprep.subr.bf16.mxu0 0
        %910 = vmatpush1.bf16.msra.mxu0 0
        %911 = vmatprep.subr.bf16.mxu0 0
        %912 = vmatpush1.bf16.msra.mxu0 0
        %913 = vmatprep.subr.bf16.mxu0 0
        %914 = vmatpush1.bf16.msra.mxu0 0
        %915 = vmatprep.subr.bf16.mxu0 0
        %916 = vmatpush1.bf16.msra.mxu0 0
        %917 = vmatprep.subr.bf16.mxu0 0
        %918 = vmatpush1.bf16.msra.mxu0 0
        %919 = vmatprep.subr.bf16.mxu0 0
        %920 = vmatpush1.bf16.msra.mxu0 0
        %921 = vmatprep.subr.bf16.mxu0 0
        %922 = vmatpush1.bf16.msra.mxu0 0
        %923 = vmatprep.subr.bf16.mxu0 0
        %924 = vmatpush1.bf16.msra.mxu0 0
        %925 = vmatprep.subr.bf16.mxu0 0
        %926 = vmatpush1.bf16.msra.mxu0 0
        %927 = vmatprep.subr.bf16.mxu0 0
        %928 = vmatpush1.bf16.msra.mxu0 0
        %929 = vmatprep.subr.bf16.mxu0 0
        %930 = vmatpush1.bf16.msra.mxu0 0
        %931 = vmatprep.subr.bf16.mxu0 0
        %932 = vmatpush1.bf16.msra.mxu0 0
        %933 = vmatprep.mubr.bf16.mxu0 0
        %934 = vmatmul.mubr.bf16.gmra.mrb[0].mxu0 %v896
        %v935 = vpop.f32.mrb[0].mxu0
        %v936 = vadd.f32 0.0, %v935
        %v937 = vpop.f32.mrb[0].mxu0
        %v938 = vpop.f32.mrb[0].mxu0
        %v939 = vpop.f32.mrb[0].mxu0
        %940 = vdwg.mxu0
        %v941 = vadd.f32 %v891, %v936
        %v942 = vpack.c.bf16 %v786, %v786
        %s943 = scalar_lea.vmem %s3, 8
        %v944 = vld [vmem:[%s943] sm:$0xf]
        %v946 = vsel %vm399, %v942, 0
        %v949 = vsel %vm651, %v944, 0
        %951 = vmatprep.subr.bf16.mxu0 0
        %952 = vmatpush1.bf16.msra.mxu0 %v949
        %953 = vmatprep.subr.bf16.mxu0 0
        %954 = vmatpush1.bf16.msra.mxu0 0
        %955 = vmatprep.subr.bf16.mxu0 0
        %956 = vmatpush1.bf16.msra.mxu0 0
        %957 = vmatprep.subr.bf16.mxu0 0
        %958 = vmatpush1.bf16.msra.mxu0 0
        %959 = vmatprep.subr.bf16.mxu0 0
        %960 = vmatpush1.bf16.msra.mxu0 0
        %961 = vmatprep.subr.bf16.mxu0 0
        %962 = vmatpush1.bf16.msra.mxu0 0
        %963 = vmatprep.subr.bf16.mxu0 0
        %964 = vmatpush1.bf16.msra.mxu0 0
        %965 = vmatprep.subr.bf16.mxu0 0
        %966 = vmatpush1.bf16.msra.mxu0 0
        %967 = vmatprep.subr.bf16.mxu0 0
        %968 = vmatpush1.bf16.msra.mxu0 0
        %969 = vmatprep.subr.bf16.mxu0 0
        %970 = vmatpush1.bf16.msra.mxu0 0
        %971 = vmatprep.subr.bf16.mxu0 0
        %972 = vmatpush1.bf16.msra.mxu0 0
        %973 = vmatprep.subr.bf16.mxu0 0
        %974 = vmatpush1.bf16.msra.mxu0 0
        %975 = vmatprep.subr.bf16.mxu0 0
        %976 = vmatpush1.bf16.msra.mxu0 0
        %977 = vmatprep.subr.bf16.mxu0 0
        %978 = vmatpush1.bf16.msra.mxu0 0
        %979 = vmatprep.subr.bf16.mxu0 0
        %980 = vmatpush1.bf16.msra.mxu0 0
        %981 = vmatprep.subr.bf16.mxu0 0
        %982 = vmatpush1.bf16.msra.mxu0 0
        %983 = vmatprep.mubr.bf16.mxu0 0
        %984 = vmatmul.mubr.bf16.gmra.mrb[0].mxu0 %v946
        %v985 = vpop.f32.mrb[0].mxu0
        %v986 = vadd.f32 0.0, %v985
        %v987 = vpop.f32.mrb[0].mxu0
        %v988 = vpop.f32.mrb[0].mxu0
        %v989 = vpop.f32.mrb[0].mxu0
        %990 = vdwg.mxu0
        %v991 = vadd.f32 %v941, %v986
        %v992 = vpack.c.bf16 %v834, %v834
        %s993 = scalar_lea.vmem %s3, 12
        %v994 = vld [vmem:[%s993] sm:$0xf]
        %v996 = vsel %vm399, %v992, 0
        %v999 = vsel %vm651, %v994, 0
        %1001 = vmatprep.subr.bf16.mxu0 0
        %1002 = vmatpush1.bf16.msra.mxu0 %v999
        %1003 = vmatprep.subr.bf16.mxu0 0
        %1004 = vmatpush1.bf16.msra.mxu0 0
        %1005 = vmatprep.subr.bf16.mxu0 0
        %1006 = vmatpush1.bf16.msra.mxu0 0
        %1007 = vmatprep.subr.bf16.mxu0 0
        %1008 = vmatpush1.bf16.msra.mxu0 0
        %1009 = vmatprep.subr.bf16.mxu0 0
        %1010 = vmatpush1.bf16.msra.mxu0 0
        %1011 = vmatprep.subr.bf16.mxu0 0
        %1012 = vmatpush1.bf16.msra.mxu0 0
        %1013 = vmatprep.subr.bf16.mxu0 0
        %1014 = vmatpush1.bf16.msra.mxu0 0
        %1015 = vmatprep.subr.bf16.mxu0 0
        %1016 = vmatpush1.bf16.msra.mxu0 0
        %1017 = vmatprep.subr.bf16.mxu0 0
        %1018 = vmatpush1.bf16.msra.mxu0 0
        %1019 = vmatprep.subr.bf16.mxu0 0
        %1020 = vmatpush1.bf16.msra.mxu0 0
        %1021 = vmatprep.subr.bf16.mxu0 0
        %1022 = vmatpush1.bf16.msra.mxu0 0
        %1023 = vmatprep.subr.bf16.mxu0 0
        %1024 = vmatpush1.bf16.msra.mxu0 0
        %1025 = vmatprep.subr.bf16.mxu0 0
        %1026 = vmatpush1.bf16.msra.mxu0 0
        %1027 = vmatprep.subr.bf16.mxu0 0
        %1028 = vmatpush1.bf16.msra.mxu0 0
        %1029 = vmatprep.subr.bf16.mxu0 0
        %1030 = vmatpush1.bf16.msra.mxu0 0
        %1031 = vmatprep.subr.bf16.mxu0 0
        %1032 = vmatpush1.bf16.msra.mxu0 0
        %1033 = vmatprep.mubr.bf16.mxu0 0
        %1034 = vmatmul.mubr.bf16.gmra.mrb[0].mxu0 %v996
        %v1035 = vpop.f32.mrb[0].mxu0
        %v1036 = vadd.f32 0.0, %v1035
        %v1037 = vpop.f32.mrb[0].mxu0
        %v1038 = vpop.f32.mrb[0].mxu0
        %v1039 = vpop.f32.mrb[0].mxu0
        %1040 = vdwg.mxu0
        %v1041 = vadd.f32 %v991, %v1036
        %v1042 = vadd.f32 %v310, %v1041
        %v1043 = vsel %vm345, %v1042, 0.0
        %1044 = vadd.xlane.f32.xlu0 %v1043
        %v1045 = vpop.xlane.xlu0 %1044
        %v1046 = vrcp.pop 32.0
        %v1047 = vmul.f32 %v1045, %v1046
        %v1048 = vsub.f32 %v1042, %v1047
        %v1049 = vmul.f32 %v1048, %v1048
        %v1050 = vsel %vm345, %v1049, 0.0
        %1051 = vadd.xlane.f32.xlu0 %v1050
        %v1052 = vpop.xlane.xlu0 %1051
        %v1053 = vmul.f32 %v1052, %v1046
        %v1054 = vadd.f32 %v1053, 1e-12
        %v1055 = vrsqrt.pop %v1054
        %v1056 = vmul.f32 %v1048, %v1055
        %v1057 = vlaneseq
        %v1058 = vshrl.u32 %v1057, 7
        %v1059 = vsub.s32 1, %v1058
        %v1060 = vrot.slane %v323, %v1059
        %v1061 = vmul.f32 %v1056, %v1060
        %v1062 = vlaneseq
        %v1063 = vshrl.u32 %v1062, 7
        %v1064 = vsub.s32 2, %v1063
        %v1065 = vrot.slane %v323, %v1064
        %v1066 = vadd.f32 %v1061, %v1065
        %v1067 = vpack.c.bf16 %v1066, %v1066
        %v1068 = vld [vmem:[%s4] sm:$0xf]
        %v1069 = vld [vmem:[%s4 + $0x4] sm:$0xf]
        %v1070 = vld [vmem:[%s4 + $0x8] sm:$0xf]
        %v1071 = vld [vmem:[%s4 + $0xc] sm:$0xf]
        %v1072 = vlaneseq
        %v1073 = vshrl.u32 %v1072, 7
        %v1074 = vsub.s32 1, %v1073
        %v1075 = vrot.slane %v311, %v1074
        %v1080 = vunpack.c.l.b16 %v1068
        %v1081 = vunpack.c.l.b16 %v1069
        %v1082 = vunpack.c.l.b16 %v1070
        %v1083 = vunpack.c.l.b16 %v1071
        %v1084 = vpack.c.b16 %v1081, %v1080
        %v1085 = vpack.c.b16 %v1083, %v1082
        %v1089 = vsel %vm345, %v1067, 0
        %1091 = vmatprep.subr.bf16.mxu0 0
        %1092 = vmatpush1.bf16.msra.mxu0 %v1084
        %1093 = vmatprep.subr.bf16.mxu0 0
        %1094 = vmatpush1.bf16.msra.mxu0 %v1085
        %1095 = vmatprep.subr.bf16.mxu0 0
        %1096 = vmatpush1.bf16.msra.mxu0 0
        %1097 = vmatprep.subr.bf16.mxu0 0
        %1098 = vmatpush1.bf16.msra.mxu0 0
        %1099 = vmatprep.subr.bf16.mxu0 0
        %1100 = vmatpush1.bf16.msra.mxu0 0
        %1101 = vmatprep.subr.bf16.mxu0 0
        %1102 = vmatpush1.bf16.msra.mxu0 0
        %1103 = vmatprep.subr.bf16.mxu0 0
        %1104 = vmatpush1.bf16.msra.mxu0 0
        %1105 = vmatprep.subr.bf16.mxu0 0
        %1106 = vmatpush1.bf16.msra.mxu0 0
        %1107 = vmatprep.subr.bf16.mxu0 0
        %1108 = vmatpush1.bf16.msra.mxu0 0
        %1109 = vmatprep.subr.bf16.mxu0 0
        %1110 = vmatpush1.bf16.msra.mxu0 0
        %1111 = vmatprep.subr.bf16.mxu0 0
        %1112 = vmatpush1.bf16.msra.mxu0 0
        %1113 = vmatprep.subr.bf16.mxu0 0
        %1114 = vmatpush1.bf16.msra.mxu0 0
        %1115 = vmatprep.subr.bf16.mxu0 0
        %1116 = vmatpush1.bf16.msra.mxu0 0
        %1117 = vmatprep.subr.bf16.mxu0 0
        %1118 = vmatpush1.bf16.msra.mxu0 0
        %1119 = vmatprep.subr.bf16.mxu0 0
        %1120 = vmatpush1.bf16.msra.mxu0 0
        %1121 = vmatprep.subr.bf16.mxu0 0
        %1122 = vmatpush1.bf16.msra.mxu0 0
        %1123 = vmatprep.mubr.bf16.mxu0 0
        %1124 = vmatmul.mubr.bf16.gmra.mrb[0].mxu0 %v1089
        %v1125 = vpop.f32.mrb[0].mxu0
        %v1126 = vadd.f32 %v1075, %v1125
        %v1127 = vpop.f32.mrb[0].mxu0
        %v1128 = vpop.f32.mrb[0].mxu0
        %v1129 = vpop.f32.mrb[0].mxu0
        %1130 = vdwg.mxu0
        %v1131 = vmul.f32 %v1126, 0.5
        %v1132 = vmul.f32 %v1126, 0.044715
        %v1133 = vmul.f32 %v1132, %v1126
        %v1134 = vmul.f32 %v1133, %v1126
        %v1135 = vadd.f32 %v1126, %v1134
        %v1136 = vmul.f32 %v1135, 0.7978846
        %v1137 = vtanh.pop %v1136
        %v1138 = vadd.f32 %v1137, 1.0
        %v1139 = vmul.f32 %v1131, %v1138
        %v1140 = vpack.c.bf16 %v1139, %v1139
        %v1141 = vld [vmem:[%s5] sm:$0xf]
        %v1142 = vld [vmem:[%s5 + $0x4] sm:$0xf]
        %v1143 = vld [vmem:[%s5 + $0x8] sm:$0xf]
        %v1144 = vld [vmem:[%s5 + $0xc] sm:$0xf]
        %v1145 = vld [vmem:[%s5 + $0x10] sm:$0xf]
        %v1146 = vld [vmem:[%s5 + $0x14] sm:$0xf]
        %v1147 = vld [vmem:[%s5 + $0x18] sm:$0xf]
        %v1148 = vld [vmem:[%s5 + $0x1c] sm:$0xf]
        %v1149 = vld [vmem:[%s5 + $0x20] sm:$0xf]
        %v1150 = vld [vmem:[%s5 + $0x24] sm:$0xf]
        %v1151 = vld [vmem:[%s5 + $0x28] sm:$0xf]
        %v1152 = vld [vmem:[%s5 + $0x2c] sm:$0xf]
        %v1153 = vld [vmem:[%s5 + $0x30] sm:$0xf]
        %v1154 = vld [vmem:[%s5 + $0x34] sm:$0xf]
        %v1155 = vld [vmem:[%s5 + $0x38] sm:$0xf]
        %v1156 = vld [vmem:[%s5 + $0x3c] sm:$0xf]
        %v1157 = vlaneseq
        %v1158 = vshrl.u32 %v1157, 7
        %v1159 = vsub.s32 3, %v1158
        %v1160 = vrot.slane %v323, %v1159
        %v1177 = vunpack.c.l.b16 %v1141
        %v1178 = vunpack.c.l.b16 %v1142
        %v1179 = vunpack.c.l.b16 %v1143
        %v1180 = vunpack.c.l.b16 %v1144
        %v1181 = vunpack.c.l.b16 %v1145
        %v1182 = vunpack.c.l.b16 %v1146
        %v1183 = vunpack.c.l.b16 %v1147
        %v1184 = vunpack.c.l.b16 %v1148
        %v1185 = vunpack.c.l.b16 %v1149
        %v1186 = vunpack.c.l.b16 %v1150
        %v1187 = vunpack.c.l.b16 %v1151
        %v1188 = vunpack.c.l.b16 %v1152
        %v1189 = vunpack.c.l.b16 %v1153
        %v1190 = vunpack.c.l.b16 %v1154
        %v1191 = vunpack.c.l.b16 %v1155
        %v1192 = vunpack.c.l.b16 %v1156
        %v1193 = vpack.c.b16 %v1178, %v1177
        %v1194 = vpack.c.b16 %v1180, %v1179
        %v1195 = vpack.c.b16 %v1182, %v1181
        %v1196 = vpack.c.b16 %v1184, %v1183
        %v1197 = vpack.c.b16 %v1186, %v1185
        %v1198 = vpack.c.b16 %v1188, %v1187
        %v1199 = vpack.c.b16 %v1190, %v1189
        %v1200 = vpack.c.b16 %v1192, %v1191
        %1209 = vmatprep.subr.bf16.mxu0 0
        %1210 = vmatpush1.bf16.msra.mxu0 %v1193
        %1211 = vmatprep.subr.bf16.mxu0 0
        %1212 = vmatpush1.bf16.msra.mxu0 %v1194
        %1213 = vmatprep.subr.bf16.mxu0 0
        %1214 = vmatpush1.bf16.msra.mxu0 %v1195
        %1215 = vmatprep.subr.bf16.mxu0 0
        %1216 = vmatpush1.bf16.msra.mxu0 %v1196
        %1217 = vmatprep.subr.bf16.mxu0 0
        %1218 = vmatpush1.bf16.msra.mxu0 %v1197
        %1219 = vmatprep.subr.bf16.mxu0 0
        %1220 = vmatpush1.bf16.msra.mxu0 %v1198
        %1221 = vmatprep.subr.bf16.mxu0 0
        %1222 = vmatpush1.bf16.msra.mxu0 %v1199
        %1223 = vmatprep.subr.bf16.mxu0 0
        %1224 = vmatpush1.bf16.msra.mxu0 %v1200
        %1225 = vmatprep.subr.bf16.mxu0 0
        %1226 = vmatpush1.bf16.msra.mxu0 0
        %1227 = vmatprep.subr.bf16.mxu0 0
        %1228 = vmatpush1.bf16.msra.mxu0 0
        %1229 = vmatprep.subr.bf16.mxu0 0
        %1230 = vmatpush1.bf16.msra.mxu0 0
        %1231 = vmatprep.subr.bf16.mxu0 0
        %1232 = vmatpush1.bf16.msra.mxu0 0
        %1233 = vmatprep.subr.bf16.mxu0 0
        %1234 = vmatpush1.bf16.msra.mxu0 0
        %1235 = vmatprep.subr.bf16.mxu0 0
        %1236 = vmatpush1.bf16.msra.mxu0 0
        %1237 = vmatprep.subr.bf16.mxu0 0
        %1238 = vmatpush1.bf16.msra.mxu0 0
        %1239 = vmatprep.subr.bf16.mxu0 0
        %1240 = vmatpush1.bf16.msra.mxu0 0
        %1241 = vmatprep.mubr.bf16.mxu0 0
        %1242 = vmatmul.mubr.bf16.gmra.mrb[0].mxu0 %v1140
        %v1243 = vpop.f32.mrb[0].mxu0
        %v1244 = vadd.f32 %v1160, %v1243
        %v1245 = vpop.f32.mrb[0].mxu0
        %v1246 = vpop.f32.mrb[0].mxu0
        %v1247 = vpop.f32.mrb[0].mxu0
        %1248 = vdwg.mxu0
        %v1249 = vadd.f32 %v1066, %v1244
        %v1250 = vsel %vm345, %v1249, 0.0
        %1251 = vadd.xlane.f32.xlu0 %v1250
        %v1252 = vpop.xlane.xlu0 %1251
        %v1253 = vmul.f32 %v1252, %v1046
        %v1254 = vsub.f32 %v1249, %v1253
        %v1255 = vmul.f32 %v1254, %v1254
        %v1256 = vsel %vm345, %v1255, 0.0
        %1257 = vadd.xlane.f32.xlu0 %v1256
        %v1258 = vpop.xlane.xlu0 %1257
        %v1259 = vmul.f32 %v1258, %v1046
        %v1260 = vadd.f32 %v1259, 1e-12
        %v1261 = vrsqrt.pop %v1260
        %v1262 = vmul.f32 %v1254, %v1261
        %v1263 = vlaneseq
        %v1264 = vshrl.u32 %v1263, 7
        %v1265 = vsub.s32 4, %v1264
        %v1266 = vrot.slane %v323, %v1265
        %v1267 = vmul.f32 %v1262, %v1266
        %v1268 = vlaneseq
        %v1269 = vshrl.u32 %v1268, 7
        %v1270 = vsub.s32 5, %v1269
        %v1271 = vrot.slane %v323, %v1270
        %v1272 = vadd.f32 %v1267, %v1271
        %s1273 = scalar_lea.vmem %s7, 8
        %v1274 = vld [vmem:[%s1273] sm:$0x3f]
        %v1275 = vpack.c.bf16 %v1272, %v1272
        %s1276 = scalar_lea.vmem %s2, 16
        %v1277 = vld [vmem:[%s1276] sm:$0xf]
        %v1278 = vld [vmem:[%s1276 + $0x4] sm:$0xf]
        %v1279 = vld [vmem:[%s1276 + $0x8] sm:$0xf]
        %v1280 = vld [vmem:[%s1276 + $0xc] sm:$0xf]
        %v1281 = vlaneseq
        %v1282 = vshrl.u32 %v1281, 7
        %v1283 = vsub.s32 2, %v1282
        %v1284 = vrot.slane %v311, %v1283
        %v1289 = vunpack.c.l.b16 %v1277
        %v1290 = vunpack.c.l.b16 %v1278
        %v1291 = vunpack.c.l.b16 %v1279
        %v1292 = vunpack.c.l.b16 %v1280
        %v1293 = vpack.c.b16 %v1290, %v1289
        %v1294 = vpack.c.b16 %v1292, %v1291
        %v1298 = vsel %vm345, %v1275, 0
        %1300 = vmatprep.subr.bf16.mxu0 0
        %1301 = vmatpush1.bf16.msra.mxu0 %v1293
        %1302 = vmatprep.subr.bf16.mxu0 0
        %1303 = vmatpush1.bf16.msra.mxu0 %v1294
        %1304 = vmatprep.subr.bf16.mxu0 0
        %1305 = vmatpush1.bf16.msra.mxu0 0
        %1306 = vmatprep.subr.bf16.mxu0 0
        %1307 = vmatpush1.bf16.msra.mxu0 0
        %1308 = vmatprep.subr.bf16.mxu0 0
        %1309 = vmatpush1.bf16.msra.mxu0 0
        %1310 = vmatprep.subr.bf16.mxu0 0
        %1311 = vmatpush1.bf16.msra.mxu0 0
        %1312 = vmatprep.subr.bf16.mxu0 0
        %1313 = vmatpush1.bf16.msra.mxu0 0
        %1314 = vmatprep.subr.bf16.mxu0 0
        %1315 = vmatpush1.bf16.msra.mxu0 0
        %1316 = vmatprep.subr.bf16.mxu0 0
        %1317 = vmatpush1.bf16.msra.mxu0 0
        %1318 = vmatprep.subr.bf16.mxu0 0
        %1319 = vmatpush1.bf16.msra.mxu0 0
        %1320 = vmatprep.subr.bf16.mxu0 0
        %1321 = vmatpush1.bf16.msra.mxu0 0
        %1322 = vmatprep.subr.bf16.mxu0 0
        %1323 = vmatpush1.bf16.msra.mxu0 0
        %1324 = vmatprep.subr.bf16.mxu0 0
        %1325 = vmatpush1.bf16.msra.mxu0 0
        %1326 = vmatprep.subr.bf16.mxu0 0
        %1327 = vmatpush1.bf16.msra.mxu0 0
        %1328 = vmatprep.subr.bf16.mxu0 0
        %1329 = vmatpush1.bf16.msra.mxu0 0
        %1330 = vmatprep.subr.bf16.mxu0 0
        %1331 = vmatpush1.bf16.msra.mxu0 0
        %1332 = vmatprep.mubr.bf16.mxu0 0
        %1333 = vmatmul.mubr.bf16.gmra.mrb[0].mxu0 %v1298
        %v1334 = vpop.f32.mrb[0].mxu0
        %v1335 = vadd.f32 %v1284, %v1334
        %v1336 = vpop.f32.mrb[0].mxu0
        %v1337 = vpop.f32.mrb[0].mxu0
        %v1338 = vpop.f32.mrb[0].mxu0
        %1339 = vdwg.mxu0
        %v1340 = vpack.c.bf16 %v1335, %v1335
        %1342 = vrot.lane.b32.xlu0 %v1340, 120
        %v1343 = vpop.permute.xlu0 %1342
        %1344 = vrot.lane.b32.xlu0 %v1340, 112
        %v1345 = vpop.permute.xlu0 %1344
        %1346 = vrot.lane.b32.xlu0 %v1340, 104
        %v1347 = vpop.permute.xlu0 %1346
        %1348 = vrot.lane.b32.xlu0 %v1340, 96
        %v1349 = vpop.permute.xlu0 %1348
        %v1351 = vsel %vm399, %v1340, 0
        %v1354 = vsel %vm399, %v1349, 0
        %1356 = vmatprep.subr.bf16.mxu0 0
        %1357 = vmatpush1.bf16.xpose.msra.mxu0 %v1354
        %1358 = vmatprep.subr.bf16.mxu0 0
        %1359 = vmatpush1.bf16.xpose.msra.mxu0 0
        %1360 = vmatprep.subr.bf16.mxu0 0
        %1361 = vmatpush1.bf16.xpose.msra.mxu0 0
        %1362 = vmatprep.subr.bf16.mxu0 0
        %1363 = vmatpush1.bf16.xpose.msra.mxu0 0
        %1364 = vmatprep.subr.bf16.mxu0 0
        %1365 = vmatpush1.bf16.xpose.msra.mxu0 0
        %1366 = vmatprep.subr.bf16.mxu0 0
        %1367 = vmatpush1.bf16.xpose.msra.mxu0 0
        %1368 = vmatprep.subr.bf16.mxu0 0
        %1369 = vmatpush1.bf16.xpose.msra.mxu0 0
        %1370 = vmatprep.subr.bf16.mxu0 0
        %1371 = vmatpush1.bf16.xpose.msra.mxu0 0
        %1372 = vmatprep.subr.bf16.mxu0 0
        %1373 = vmatpush1.bf16.xpose.msra.mxu0 0
        %1374 = vmatprep.subr.bf16.mxu0 0
        %1375 = vmatpush1.bf16.xpose.msra.mxu0 0
        %1376 = vmatprep.subr.bf16.mxu0 0
        %1377 = vmatpush1.bf16.xpose.msra.mxu0 0
        %1378 = vmatprep.subr.bf16.mxu0 0
        %1379 = vmatpush1.bf16.xpose.msra.mxu0 0
        %1380 = vmatprep.subr.bf16.mxu0 0
        %1381 = vmatpush1.bf16.xpose.msra.mxu0 0
        %1382 = vmatprep.subr.bf16.mxu0 0
        %1383 = vmatpush1.bf16.xpose.msra.mxu0 0
        %1384 = vmatprep.subr.bf16.mxu0 0
        %1385 = vmatpush1.bf16.xpose.msra.mxu0 0
        %1386 = vmatprep.subr.bf16.mxu0 0
        %1387 = vmatpush1.bf16.xpose.msra.mxu0 0
        %1388 = vmatprep.mubr.bf16.mxu0 0
        %1389 = vmatmul.mubr.bf16.gmra.mrb[0].mxu0 %v1351
        %v1390 = vpop.f32.mrb[0].mxu0
        %v1391 = vadd.f32 0.0, %v1390
        %v1392 = vpop.f32.mrb[0].mxu0
        %v1393 = vpop.f32.mrb[0].mxu0
        %v1394 = vpop.f32.mrb[0].mxu0
        %1395 = vdwg.mxu0
        %1396 = vrot.lane.b32.xlu0 %v1343, 96
        %v1397 = vpop.permute.xlu0 %1396
        %v1399 = vsel %vm399, %v1343, 0
        %v1402 = vsel %vm399, %v1397, 0
        %1404 = vmatprep.subr.bf16.mxu0 0
        %1405 = vmatpush1.bf16.xpose.msra.mxu0 %v1402
        %1406 = vmatprep.subr.bf16.mxu0 0
        %1407 = vmatpush1.bf16.xpose.msra.mxu0 0
        %1408 = vmatprep.subr.bf16.mxu0 0
        %1409 = vmatpush1.bf16.xpose.msra.mxu0 0
        %1410 = vmatprep.subr.bf16.mxu0 0
        %1411 = vmatpush1.bf16.xpose.msra.mxu0 0
        %1412 = vmatprep.subr.bf16.mxu0 0
        %1413 = vmatpush1.bf16.xpose.msra.mxu0 0
        %1414 = vmatprep.subr.bf16.mxu0 0
        %1415 = vmatpush1.bf16.xpose.msra.mxu0 0
        %1416 = vmatprep.subr.bf16.mxu0 0
        %1417 = vmatpush1.bf16.xpose.msra.mxu0 0
        %1418 = vmatprep.subr.bf16.mxu0 0
        %1419 = vmatpush1.bf16.xpose.msra.mxu0 0
        %1420 = vmatprep.subr.bf16.mxu0 0
        %1421 = vmatpush1.bf16.xpose.msra.mxu0 0
        %1422 = vmatprep.subr.bf16.mxu0 0
        %1423 = vmatpush1.bf16.xpose.msra.mxu0 0
        %1424 = vmatprep.subr.bf16.mxu0 0
        %1425 = vmatpush1.bf16.xpose.msra.mxu0 0
        %1426 = vmatprep.subr.bf16.mxu0 0
        %1427 = vmatpush1.bf16.xpose.msra.mxu0 0
        %1428 = vmatprep.subr.bf16.mxu0 0
        %1429 = vmatpush1.bf16.xpose.msra.mxu0 0
        %1430 = vmatprep.subr.bf16.mxu0 0
        %1431 = vmatpush1.bf16.xpose.msra.mxu0 0
        %1432 = vmatprep.subr.bf16.mxu0 0
        %1433 = vmatpush1.bf16.xpose.msra.mxu0 0
        %1434 = vmatprep.subr.bf16.mxu0 0
        %1435 = vmatpush1.bf16.xpose.msra.mxu0 0
        %1436 = vmatprep.mubr.bf16.mxu0 0
        %1437 = vmatmul.mubr.bf16.gmra.mrb[0].mxu0 %v1399
        %v1438 = vpop.f32.mrb[0].mxu0
        %v1439 = vadd.f32 0.0, %v1438
        %v1440 = vpop.f32.mrb[0].mxu0
        %v1441 = vpop.f32.mrb[0].mxu0
        %v1442 = vpop.f32.mrb[0].mxu0
        %1443 = vdwg.mxu0
        %1444 = vrot.lane.b32.xlu0 %v1345, 96
        %v1445 = vpop.permute.xlu0 %1444
        %v1447 = vsel %vm399, %v1345, 0
        %v1450 = vsel %vm399, %v1445, 0
        %1452 = vmatprep.subr.bf16.mxu0 0
        %1453 = vmatpush1.bf16.xpose.msra.mxu0 %v1450
        %1454 = vmatprep.subr.bf16.mxu0 0
        %1455 = vmatpush1.bf16.xpose.msra.mxu0 0
        %1456 = vmatprep.subr.bf16.mxu0 0
        %1457 = vmatpush1.bf16.xpose.msra.mxu0 0
        %1458 = vmatprep.subr.bf16.mxu0 0
        %1459 = vmatpush1.bf16.xpose.msra.mxu0 0
        %1460 = vmatprep.subr.bf16.mxu0 0
        %1461 = vmatpush1.bf16.xpose.msra.mxu0 0
        %1462 = vmatprep.subr.bf16.mxu0 0
        %1463 = vmatpush1.bf16.xpose.msra.mxu0 0
        %1464 = vmatprep.subr.bf16.mxu0 0
        %1465 = vmatpush1.bf16.xpose.msra.mxu0 0
        %1466 = vmatprep.subr.bf16.mxu0 0
        %1467 = vmatpush1.bf16.xpose.msra.mxu0 0
        %1468 = vmatprep.subr.bf16.mxu0 0
        %1469 = vmatpush1.bf16.xpose.msra.mxu0 0
        %1470 = vmatprep.subr.bf16.mxu0 0
        %1471 = vmatpush1.bf16.xpose.msra.mxu0 0
        %1472 = vmatprep.subr.bf16.mxu0 0
        %1473 = vmatpush1.bf16.xpose.msra.mxu0 0
        %1474 = vmatprep.subr.bf16.mxu0 0
        %1475 = vmatpush1.bf16.xpose.msra.mxu0 0
        %1476 = vmatprep.subr.bf16.mxu0 0
        %1477 = vmatpush1.bf16.xpose.msra.mxu0 0
        %1478 = vmatprep.subr.bf16.mxu0 0
        %1479 = vmatpush1.bf16.xpose.msra.mxu0 0
        %1480 = vmatprep.subr.bf16.mxu0 0
        %1481 = vmatpush1.bf16.xpose.msra.mxu0 0
        %1482 = vmatprep.subr.bf16.mxu0 0
        %1483 = vmatpush1.bf16.xpose.msra.mxu0 0
        %1484 = vmatprep.mubr.bf16.mxu0 0
        %1485 = vmatmul.mubr.bf16.gmra.mrb[0].mxu0 %v1447
        %v1486 = vpop.f32.mrb[0].mxu0
        %v1487 = vadd.f32 0.0, %v1486
        %v1488 = vpop.f32.mrb[0].mxu0
        %v1489 = vpop.f32.mrb[0].mxu0
        %v1490 = vpop.f32.mrb[0].mxu0
        %1491 = vdwg.mxu0
        %1492 = vrot.lane.b32.xlu0 %v1347, 96
        %v1493 = vpop.permute.xlu0 %1492
        %v1495 = vsel %vm399, %v1347, 0
        %v1498 = vsel %vm399, %v1493, 0
        %1500 = vmatprep.subr.bf16.mxu0 0
        %1501 = vmatpush1.bf16.xpose.msra.mxu0 %v1498
        %1502 = vmatprep.subr.bf16.mxu0 0
        %1503 = vmatpush1.bf16.xpose.msra.mxu0 0
        %1504 = vmatprep.subr.bf16.mxu0 0
        %1505 = vmatpush1.bf16.xpose.msra.mxu0 0
        %1506 = vmatprep.subr.bf16.mxu0 0
        %1507 = vmatpush1.bf16.xpose.msra.mxu0 0
        %1508 = vmatprep.subr.bf16.mxu0 0
        %1509 = vmatpush1.bf16.xpose.msra.mxu0 0
        %1510 = vmatprep.subr.bf16.mxu0 0
        %1511 = vmatpush1.bf16.xpose.msra.mxu0 0
        %1512 = vmatprep.subr.bf16.mxu0 0
        %1513 = vmatpush1.bf16.xpose.msra.mxu0 0
        %1514 = vmatprep.subr.bf16.mxu0 0
        %1515 = vmatpush1.bf16.xpose.msra.mxu0 0
        %1516 = vmatprep.subr.bf16.mxu0 0
        %1517 = vmatpush1.bf16.xpose.msra.mxu0 0
        %1518 = vmatprep.subr.bf16.mxu0 0
        %1519 = vmatpush1.bf16.xpose.msra.mxu0 0
        %1520 = vmatprep.subr.bf16.mxu0 0
        %1521 = vmatpush1.bf16.xpose.msra.mxu0 0
        %1522 = vmatprep.subr.bf16.mxu0 0
        %1523 = vmatpush1.bf16.xpose.msra.mxu0 0
        %1524 = vmatprep.subr.bf16.mxu0 0
        %1525 = vmatpush1.bf16.xpose.msra.mxu0 0
        %1526 = vmatprep.subr.bf16.mxu0 0
        %1527 = vmatpush1.bf16.xpose.msra.mxu0 0
        %1528 = vmatprep.subr.bf16.mxu0 0
        %1529 = vmatpush1.bf16.xpose.msra.mxu0 0
        %1530 = vmatprep.subr.bf16.mxu0 0
        %1531 = vmatpush1.bf16.xpose.msra.mxu0 0
        %1532 = vmatprep.mubr.bf16.mxu0 0
        %1533 = vmatmul.mubr.bf16.gmra.mrb[0].mxu0 %v1495
        %v1534 = vpop.f32.mrb[0].mxu0
        %v1535 = vadd.f32 0.0, %v1534
        %v1536 = vpop.f32.mrb[0].mxu0
        %v1537 = vpop.f32.mrb[0].mxu0
        %v1538 = vpop.f32.mrb[0].mxu0
        %1539 = vdwg.mxu0
        %v1540 = vmul.f32 %v1391, 0.35355338
        %v1541 = vmul.f32 %v1439, 0.35355338
        %v1542 = vmul.f32 %v1487, 0.35355338
        %v1543 = vmul.f32 %v1535, 0.35355338
        %v1544 = vadd.f32 %v1540, %v322
        %v1545 = vadd.f32 %v1541, %v322
        %v1546 = vadd.f32 %v1542, %v322
        %v1547 = vadd.f32 %v1543, %v322
        %v1548 = vsel %vm399, %v1544, -inf
        %1549 = vmax.xlane.f32.xlu0 %v1548
        %v1550 = vpop.xlane.xlu0 %1549
        %v1551 = vsel %vm399, %v1545, -inf
        %1552 = vmax.xlane.f32.xlu0 %v1551
        %v1553 = vpop.xlane.xlu0 %1552
        %v1554 = vsel %vm399, %v1546, -inf
        %1555 = vmax.xlane.f32.xlu0 %v1554
        %v1556 = vpop.xlane.xlu0 %1555
        %v1557 = vsel %vm399, %v1547, -inf
        %1558 = vmax.xlane.f32.xlu0 %v1557
        %v1559 = vpop.xlane.xlu0 %1558
        %v1560 = vsub.f32 %v1544, %v1550
        %v1561 = vsub.f32 %v1545, %v1553
        %v1562 = vsub.f32 %v1546, %v1556
        %v1563 = vsub.f32 %v1547, %v1559
        %v1564 = vmul.f32 %v1560, 1.442695
        %v1565 = vpow.pop %v1564
        %v1566 = vmul.f32 %v1561, 1.442695
        %v1567 = vpow.pop %v1566
        %v1568 = vmul.f32 %v1562, 1.442695
        %v1569 = vpow.pop %v1568
        %v1570 = vmul.f32 %v1563, 1.442695
        %v1571 = vpow.pop %v1570
        %v1572 = vsel %vm399, %v1565, 0.0
        %1573 = vadd.xlane.f32.xlu0 %v1572
        %v1574 = vpop.xlane.xlu0 %1573
        %v1575 = vsel %vm399, %v1567, 0.0
        %1576 = vadd.xlane.f32.xlu0 %v1575
        %v1577 = vpop.xlane.xlu0 %1576
        %v1578 = vsel %vm399, %v1569, 0.0
        %1579 = vadd.xlane.f32.xlu0 %v1578
        %v1580 = vpop.xlane.xlu0 %1579
        %v1581 = vsel %vm399, %v1571, 0.0
        %1582 = vadd.xlane.f32.xlu0 %v1581
        %v1583 = vpop.xlane.xlu0 %1582
        %v1584 = vrcp.pop %v1574
        %v1585 = vrcp.pop %v1577
        %v1586 = vrcp.pop %v1580
        %v1587 = vrcp.pop %v1583
        %v1588 = vmul.f32 %v1565, %v1584
        %v1589 = vmul.f32 %v1567, %v1585
        %v1590 = vmul.f32 %v1569, %v1586
        %v1591 = vmul.f32 %v1571, %v1587
        %v1592 = vpack.c.bf16 %v1588, %v1588
        %v1593 = vpack.c.bf16 %v1589, %v1589
        %v1594 = vpack.c.bf16 %v1590, %v1590
        %v1595 = vpack.c.bf16 %v1591, %v1591
        %1596 = vrot.lane.b32.xlu0 %v1340, 64
        %v1597 = vpop.permute.xlu0 %1596
        %v1599 = vsel %vm399, %v1592, 0
        %v1602 = vsel %vm651, %v1597, 0
        %1604 = vmatprep.subr.bf16.mxu0 0
        %1605 = vmatpush1.bf16.msra.mxu0 %v1602
        %1606 = vmatprep.subr.bf16.mxu0 0
        %1607 = vmatpush1.bf16.msra.mxu0 0
        %1608 = vmatprep.subr.bf16.mxu0 0
        %1609 = vmatpush1.bf16.msra.mxu0 0
        %1610 = vmatprep.subr.bf16.mxu0 0
        %1611 = vmatpush1.bf16.msra.mxu0 0
        %1612 = vmatprep.subr.bf16.mxu0 0
        %1613 = vmatpush1.bf16.msra.mxu0 0
        %1614 = vmatprep.subr.bf16.mxu0 0
        %1615 = vmatpush1.bf16.msra.mxu0 0
        %1616 = vmatprep.subr.bf16.mxu0 0
        %1617 = vmatpush1.bf16.msra.mxu0 0
        %1618 = vmatprep.subr.bf16.mxu0 0
        %1619 = vmatpush1.bf16.msra.mxu0 0
        %1620 = vmatprep.subr.bf16.mxu0 0
        %1621 = vmatpush1.bf16.msra.mxu0 0
        %1622 = vmatprep.subr.bf16.mxu0 0
        %1623 = vmatpush1.bf16.msra.mxu0 0
        %1624 = vmatprep.subr.bf16.mxu0 0
        %1625 = vmatpush1.bf16.msra.mxu0 0
        %1626 = vmatprep.subr.bf16.mxu0 0
        %1627 = vmatpush1.bf16.msra.mxu0 0
        %1628 = vmatprep.subr.bf16.mxu0 0
        %1629 = vmatpush1.bf16.msra.mxu0 0
        %1630 = vmatprep.subr.bf16.mxu0 0
        %1631 = vmatpush1.bf16.msra.mxu0 0
        %1632 = vmatprep.subr.bf16.mxu0 0
        %1633 = vmatpush1.bf16.msra.mxu0 0
        %1634 = vmatprep.subr.bf16.mxu0 0
        %1635 = vmatpush1.bf16.msra.mxu0 0
        %1636 = vmatprep.mubr.bf16.mxu0 0
        %1637 = vmatmul.mubr.bf16.gmra.mrb[0].mxu0 %v1599
        %v1638 = vpop.f32.mrb[0].mxu0
        %v1639 = vadd.f32 0.0, %v1638
        %v1640 = vpop.f32.mrb[0].mxu0
        %v1641 = vpop.f32.mrb[0].mxu0
        %v1642 = vpop.f32.mrb[0].mxu0
        %1643 = vdwg.mxu0
        %1644 = vrot.lane.b32.xlu0 %v1343, 64
        %v1645 = vpop.permute.xlu0 %1644
        %v1647 = vsel %vm399, %v1593, 0
        %v1650 = vsel %vm651, %v1645, 0
        %1652 = vmatprep.subr.bf16.mxu0 0
        %1653 = vmatpush1.bf16.msra.mxu0 %v1650
        %1654 = vmatprep.subr.bf16.mxu0 0
        %1655 = vmatpush1.bf16.msra.mxu0 0
        %1656 = vmatprep.subr.bf16.mxu0 0
        %1657 = vmatpush1.bf16.msra.mxu0 0
        %1658 = vmatprep.subr.bf16.mxu0 0
        %1659 = vmatpush1.bf16.msra.mxu0 0
        %1660 = vmatprep.subr.bf16.mxu0 0
        %1661 = vmatpush1.bf16.msra.mxu0 0
        %1662 = vmatprep.subr.bf16.mxu0 0
        %1663 = vmatpush1.bf16.msra.mxu0 0
        %1664 = vmatprep.subr.bf16.mxu0 0
        %1665 = vmatpush1.bf16.msra.mxu0 0
        %1666 = vmatprep.subr.bf16.mxu0 0
        %1667 = vmatpush1.bf16.msra.mxu0 0
        %1668 = vmatprep.subr.bf16.mxu0 0
        %1669 = vmatpush1.bf16.msra.mxu0 0
        %1670 = vmatprep.subr.bf16.mxu0 0
        %1671 = vmatpush1.bf16.msra.mxu0 0
        %1672 = vmatprep.subr.bf16.mxu0 0
        %1673 = vmatpush1.bf16.msra.mxu0 0
        %1674 = vmatprep.subr.bf16.mxu0 0
        %1675 = vmatpush1.bf16.msra.mxu0 0
        %1676 = vmatprep.subr.bf16.mxu0 0
        %1677 = vmatpush1.bf16.msra.mxu0 0
        %1678 = vmatprep.subr.bf16.mxu0 0
        %1679 = vmatpush1.bf16.msra.mxu0 0
        %1680 = vmatprep.subr.bf16.mxu0 0
        %1681 = vmatpush1.bf16.msra.mxu0 0
        %1682 = vmatprep.subr.bf16.mxu0 0
        %1683 = vmatpush1.bf16.msra.mxu0 0
        %1684 = vmatprep.mubr.bf16.mxu0 0
        %1685 = vmatmul.mubr.bf16.gmra.mrb[0].mxu0 %v1647
        %v1686 = vpop.f32.mrb[0].mxu0
        %v1687 = vadd.f32 0.0, %v1686
        %v1688 = vpop.f32.mrb[0].mxu0
        %v1689 = vpop.f32.mrb[0].mxu0
        %v1690 = vpop.f32.mrb[0].mxu0
        %1691 = vdwg.mxu0
        %1692 = vrot.lane.b32.xlu0 %v1345, 64
        %v1693 = vpop.permute.xlu0 %1692
        %v1695 = vsel %vm399, %v1594, 0
        %v1698 = vsel %vm651, %v1693, 0
        %1700 = vmatprep.subr.bf16.mxu0 0
        %1701 = vmatpush1.bf16.msra.mxu0 %v1698
        %1702 = vmatprep.subr.bf16.mxu0 0
        %1703 = vmatpush1.bf16.msra.mxu0 0
        %1704 = vmatprep.subr.bf16.mxu0 0
        %1705 = vmatpush1.bf16.msra.mxu0 0
        %1706 = vmatprep.subr.bf16.mxu0 0
        %1707 = vmatpush1.bf16.msra.mxu0 0
        %1708 = vmatprep.subr.bf16.mxu0 0
        %1709 = vmatpush1.bf16.msra.mxu0 0
        %1710 = vmatprep.subr.bf16.mxu0 0
        %1711 = vmatpush1.bf16.msra.mxu0 0
        %1712 = vmatprep.subr.bf16.mxu0 0
        %1713 = vmatpush1.bf16.msra.mxu0 0
        %1714 = vmatprep.subr.bf16.mxu0 0
        %1715 = vmatpush1.bf16.msra.mxu0 0
        %1716 = vmatprep.subr.bf16.mxu0 0
        %1717 = vmatpush1.bf16.msra.mxu0 0
        %1718 = vmatprep.subr.bf16.mxu0 0
        %1719 = vmatpush1.bf16.msra.mxu0 0
        %1720 = vmatprep.subr.bf16.mxu0 0
        %1721 = vmatpush1.bf16.msra.mxu0 0
        %1722 = vmatprep.subr.bf16.mxu0 0
        %1723 = vmatpush1.bf16.msra.mxu0 0
        %1724 = vmatprep.subr.bf16.mxu0 0
        %1725 = vmatpush1.bf16.msra.mxu0 0
        %1726 = vmatprep.subr.bf16.mxu0 0
        %1727 = vmatpush1.bf16.msra.mxu0 0
        %1728 = vmatprep.subr.bf16.mxu0 0
        %1729 = vmatpush1.bf16.msra.mxu0 0
        %1730 = vmatprep.subr.bf16.mxu0 0
        %1731 = vmatpush1.bf16.msra.mxu0 0
        %1732 = vmatprep.mubr.bf16.mxu0 0
        %1733 = vmatmul.mubr.bf16.gmra.mrb[0].mxu0 %v1695
        %v1734 = vpop.f32.mrb[0].mxu0
        %v1735 = vadd.f32 0.0, %v1734
        %v1736 = vpop.f32.mrb[0].mxu0
        %v1737 = vpop.f32.mrb[0].mxu0
        %v1738 = vpop.f32.mrb[0].mxu0
        %1739 = vdwg.mxu0
        %1740 = vrot.lane.b32.xlu0 %v1347, 64
        %v1741 = vpop.permute.xlu0 %1740
        %v1743 = vsel %vm399, %v1595, 0
        %v1746 = vsel %vm651, %v1741, 0
        %1748 = vmatprep.subr.bf16.mxu0 0
        %1749 = vmatpush1.bf16.msra.mxu0 %v1746
        %1750 = vmatprep.subr.bf16.mxu0 0
        %1751 = vmatpush1.bf16.msra.mxu0 0
        %1752 = vmatprep.subr.bf16.mxu0 0
        %1753 = vmatpush1.bf16.msra.mxu0 0
        %1754 = vmatprep.subr.bf16.mxu0 0
        %1755 = vmatpush1.bf16.msra.mxu0 0
        %1756 = vmatprep.subr.bf16.mxu0 0
        %1757 = vmatpush1.bf16.msra.mxu0 0
        %1758 = vmatprep.subr.bf16.mxu0 0
        %1759 = vmatpush1.bf16.msra.mxu0 0
        %1760 = vmatprep.subr.bf16.mxu0 0
        %1761 = vmatpush1.bf16.msra.mxu0 0
        %1762 = vmatprep.subr.bf16.mxu0 0
        %1763 = vmatpush1.bf16.msra.mxu0 0
        %1764 = vmatprep.subr.bf16.mxu0 0
        %1765 = vmatpush1.bf16.msra.mxu0 0
        %1766 = vmatprep.subr.bf16.mxu0 0
        %1767 = vmatpush1.bf16.msra.mxu0 0
        %1768 = vmatprep.subr.bf16.mxu0 0
        %1769 = vmatpush1.bf16.msra.mxu0 0
        %1770 = vmatprep.subr.bf16.mxu0 0
        %1771 = vmatpush1.bf16.msra.mxu0 0
        %1772 = vmatprep.subr.bf16.mxu0 0
        %1773 = vmatpush1.bf16.msra.mxu0 0
        %1774 = vmatprep.subr.bf16.mxu0 0
        %1775 = vmatpush1.bf16.msra.mxu0 0
        %1776 = vmatprep.subr.bf16.mxu0 0
        %1777 = vmatpush1.bf16.msra.mxu0 0
        %1778 = vmatprep.subr.bf16.mxu0 0
        %1779 = vmatpush1.bf16.msra.mxu0 0
        %1780 = vmatprep.mubr.bf16.mxu0 0
        %1781 = vmatmul.mubr.bf16.gmra.mrb[0].mxu0 %v1743
        %v1782 = vpop.f32.mrb[0].mxu0
        %v1783 = vadd.f32 0.0, %v1782
        %v1784 = vpop.f32.mrb[0].mxu0
        %v1785 = vpop.f32.mrb[0].mxu0
        %v1786 = vpop.f32.mrb[0].mxu0
        %1787 = vdwg.mxu0
        %v1788 = vpack.c.bf16 %v1639, %v1639
        %s1789 = scalar_lea.vmem %s3, 16
        %v1790 = vld [vmem:[%s1789] sm:$0xf]
        %v1792 = vsel %vm399, %v1788, 0
        %v1795 = vsel %vm651, %v1790, 0
        %1797 = vmatprep.subr.bf16.mxu0 0
        %1798 = vmatpush1.bf16.msra.mxu0 %v1795
        %1799 = vmatprep.subr.bf16.mxu0 0
        %1800 = vmatpush1.bf16.msra.mxu0 0
        %1801 = vmatprep.subr.bf16.mxu0 0
        %1802 = vmatpush1.bf16.msra.mxu0 0
        %1803 = vmatprep.subr.bf16.mxu0 0
        %1804 = vmatpush1.bf16.msra.mxu0 0
        %1805 = vmatprep.subr.bf16.mxu0 0
        %1806 = vmatpush1.bf16.msra.mxu0 0
        %1807 = vmatprep.subr.bf16.mxu0 0
        %1808 = vmatpush1.bf16.msra.mxu0 0
        %1809 = vmatprep.subr.bf16.mxu0 0
        %1810 = vmatpush1.bf16.msra.mxu0 0
        %1811 = vmatprep.subr.bf16.mxu0 0
        %1812 = vmatpush1.bf16.msra.mxu0 0
        %1813 = vmatprep.subr.bf16.mxu0 0
        %1814 = vmatpush1.bf16.msra.mxu0 0
        %1815 = vmatprep.subr.bf16.mxu0 0
        %1816 = vmatpush1.bf16.msra.mxu0 0
        %1817 = vmatprep.subr.bf16.mxu0 0
        %1818 = vmatpush1.bf16.msra.mxu0 0
        %1819 = vmatprep.subr.bf16.mxu0 0
        %1820 = vmatpush1.bf16.msra.mxu0 0
        %1821 = vmatprep.subr.bf16.mxu0 0
        %1822 = vmatpush1.bf16.msra.mxu0 0
        %1823 = vmatprep.subr.bf16.mxu0 0
        %1824 = vmatpush1.bf16.msra.mxu0 0
        %1825 = vmatprep.subr.bf16.mxu0 0
        %1826 = vmatpush1.bf16.msra.mxu0 0
        %1827 = vmatprep.subr.bf16.mxu0 0
        %1828 = vmatpush1.bf16.msra.mxu0 0
        %1829 = vmatprep.mubr.bf16.mxu0 0
        %1830 = vmatmul.mubr.bf16.gmra.mrb[0].mxu0 %v1792
        %v1831 = vpop.f32.mrb[0].mxu0
        %v1832 = vadd.f32 0.0, %v1831
        %v1833 = vpop.f32.mrb[0].mxu0
        %v1834 = vpop.f32.mrb[0].mxu0
        %v1835 = vpop.f32.mrb[0].mxu0
        %1836 = vdwg.mxu0
        %v1837 = vlaneseq
        %v1838 = vshrl.u32 %v1837, 7
        %v1839 = vsub.s32 0, %v1838
        %v1840 = vrot.slane %v1274, %v1839
        %v1841 = vadd.f32 %v1840, %v1832
        %v1842 = vpack.c.bf16 %v1687, %v1687
        %s1843 = scalar_lea.vmem %s3, 20
        %v1844 = vld [vmem:[%s1843] sm:$0xf]
        %v1846 = vsel %vm399, %v1842, 0
        %v1849 = vsel %vm651, %v1844, 0
        %1851 = vmatprep.subr.bf16.mxu0 0
        %1852 = vmatpush1.bf16.msra.mxu0 %v1849
        %1853 = vmatprep.subr.bf16.mxu0 0
        %1854 = vmatpush1.bf16.msra.mxu0 0
        %1855 = vmatprep.subr.bf16.mxu0 0
        %1856 = vmatpush1.bf16.msra.mxu0 0
        %1857 = vmatprep.subr.bf16.mxu0 0
        %1858 = vmatpush1.bf16.msra.mxu0 0
        %1859 = vmatprep.subr.bf16.mxu0 0
        %1860 = vmatpush1.bf16.msra.mxu0 0
        %1861 = vmatprep.subr.bf16.mxu0 0
        %1862 = vmatpush1.bf16.msra.mxu0 0
        %1863 = vmatprep.subr.bf16.mxu0 0
        %1864 = vmatpush1.bf16.msra.mxu0 0
        %1865 = vmatprep.subr.bf16.mxu0 0
        %1866 = vmatpush1.bf16.msra.mxu0 0
        %1867 = vmatprep.subr.bf16.mxu0 0
        %1868 = vmatpush1.bf16.msra.mxu0 0
        %1869 = vmatprep.subr.bf16.mxu0 0
        %1870 = vmatpush1.bf16.msra.mxu0 0
        %1871 = vmatprep.subr.bf16.mxu0 0
        %1872 = vmatpush1.bf16.msra.mxu0 0
        %1873 = vmatprep.subr.bf16.mxu0 0
        %1874 = vmatpush1.bf16.msra.mxu0 0
        %1875 = vmatprep.subr.bf16.mxu0 0
        %1876 = vmatpush1.bf16.msra.mxu0 0
        %1877 = vmatprep.subr.bf16.mxu0 0
        %1878 = vmatpush1.bf16.msra.mxu0 0
        %1879 = vmatprep.subr.bf16.mxu0 0
        %1880 = vmatpush1.bf16.msra.mxu0 0
        %1881 = vmatprep.subr.bf16.mxu0 0
        %1882 = vmatpush1.bf16.msra.mxu0 0
        %1883 = vmatprep.mubr.bf16.mxu0 0
        %1884 = vmatmul.mubr.bf16.gmra.mrb[0].mxu0 %v1846
        %v1885 = vpop.f32.mrb[0].mxu0
        %v1886 = vadd.f32 0.0, %v1885
        %v1887 = vpop.f32.mrb[0].mxu0
        %v1888 = vpop.f32.mrb[0].mxu0
        %v1889 = vpop.f32.mrb[0].mxu0
        %1890 = vdwg.mxu0
        %v1891 = vadd.f32 %v1841, %v1886
        %v1892 = vpack.c.bf16 %v1735, %v1735
        %s1893 = scalar_lea.vmem %s3, 24
        %v1894 = vld [vmem:[%s1893] sm:$0xf]
        %v1896 = vsel %vm399, %v1892, 0
        %v1899 = vsel %vm651, %v1894, 0
        %1901 = vmatprep.subr.bf16.mxu0 0
        %1902 = vmatpush1.bf16.msra.mxu0 %v1899
        %1903 = vmatprep.subr.bf16.mxu0 0
        %1904 = vmatpush1.bf16.msra.mxu0 0
        %1905 = vmatprep.subr.bf16.mxu0 0
        %1906 = vmatpush1.bf16.msra.mxu0 0
        %1907 = vmatprep.subr.bf16.mxu0 0
        %1908 = vmatpush1.bf16.msra.mxu0 0
        %1909 = vmatprep.subr.bf16.mxu0 0
        %1910 = vmatpush1.bf16.msra.mxu0 0
        %1911 = vmatprep.subr.bf16.mxu0 0
        %1912 = vmatpush1.bf16.msra.mxu0 0
        %1913 = vmatprep.subr.bf16.mxu0 0
        %1914 = vmatpush1.bf16.msra.mxu0 0
        %1915 = vmatprep.subr.bf16.mxu0 0
        %1916 = vmatpush1.bf16.msra.mxu0 0
        %1917 = vmatprep.subr.bf16.mxu0 0
        %1918 = vmatpush1.bf16.msra.mxu0 0
        %1919 = vmatprep.subr.bf16.mxu0 0
        %1920 = vmatpush1.bf16.msra.mxu0 0
        %1921 = vmatprep.subr.bf16.mxu0 0
        %1922 = vmatpush1.bf16.msra.mxu0 0
        %1923 = vmatprep.subr.bf16.mxu0 0
        %1924 = vmatpush1.bf16.msra.mxu0 0
        %1925 = vmatprep.subr.bf16.mxu0 0
        %1926 = vmatpush1.bf16.msra.mxu0 0
        %1927 = vmatprep.subr.bf16.mxu0 0
        %1928 = vmatpush1.bf16.msra.mxu0 0
        %1929 = vmatprep.subr.bf16.mxu0 0
        %1930 = vmatpush1.bf16.msra.mxu0 0
        %1931 = vmatprep.subr.bf16.mxu0 0
        %1932 = vmatpush1.bf16.msra.mxu0 0
        %1933 = vmatprep.mubr.bf16.mxu0 0
        %1934 = vmatmul.mubr.bf16.gmra.mrb[0].mxu0 %v1896
        %v1935 = vpop.f32.mrb[0].mxu0
        %v1936 = vadd.f32 0.0, %v1935
        %v1937 = vpop.f32.mrb[0].mxu0
        %v1938 = vpop.f32.mrb[0].mxu0
        %v1939 = vpop.f32.mrb[0].mxu0
        %1940 = vdwg.mxu0
        %v1941 = vadd.f32 %v1891, %v1936
        %v1942 = vpack.c.bf16 %v1783, %v1783
        %s1943 = scalar_lea.vmem %s3, 28
        %v1944 = vld [vmem:[%s1943] sm:$0xf]
        %v1946 = vsel %vm399, %v1942, 0
        %v1949 = vsel %vm651, %v1944, 0
        %1951 = vmatprep.subr.bf16.mxu0 0
        %1952 = vmatpush1.bf16.msra.mxu0 %v1949
        %1953 = vmatprep.subr.bf16.mxu0 0
        %1954 = vmatpush1.bf16.msra.mxu0 0
        %1955 = vmatprep.subr.bf16.mxu0 0
        %1956 = vmatpush1.bf16.msra.mxu0 0
        %1957 = vmatprep.subr.bf16.mxu0 0
        %1958 = vmatpush1.bf16.msra.mxu0 0
        %1959 = vmatprep.subr.bf16.mxu0 0
        %1960 = vmatpush1.bf16.msra.mxu0 0
        %1961 = vmatprep.subr.bf16.mxu0 0
        %1962 = vmatpush1.bf16.msra.mxu0 0
        %1963 = vmatprep.subr.bf16.mxu0 0
        %1964 = vmatpush1.bf16.msra.mxu0 0
        %1965 = vmatprep.subr.bf16.mxu0 0
        %1966 = vmatpush1.bf16.msra.mxu0 0
        %1967 = vmatprep.subr.bf16.mxu0 0
        %1968 = vmatpush1.bf16.msra.mxu0 0
        %1969 = vmatprep.subr.bf16.mxu0 0
        %1970 = vmatpush1.bf16.msra.mxu0 0
        %1971 = vmatprep.subr.bf16.mxu0 0
        %1972 = vmatpush1.bf16.msra.mxu0 0
        %1973 = vmatprep.subr.bf16.mxu0 0
        %1974 = vmatpush1.bf16.msra.mxu0 0
        %1975 = vmatprep.subr.bf16.mxu0 0
        %1976 = vmatpush1.bf16.msra.mxu0 0
        %1977 = vmatprep.subr.bf16.mxu0 0
        %1978 = vmatpush1.bf16.msra.mxu0 0
        %1979 = vmatprep.subr.bf16.mxu0 0
        %1980 = vmatpush1.bf16.msra.mxu0 0
        %1981 = vmatprep.subr.bf16.mxu0 0
        %1982 = vmatpush1.bf16.msra.mxu0 0
        %1983 = vmatprep.mubr.bf16.mxu0 0
        %1984 = vmatmul.mubr.bf16.gmra.mrb[0].mxu0 %v1946
        %v1985 = vpop.f32.mrb[0].mxu0
        %v1986 = vadd.f32 0.0, %v1985
        %v1987 = vpop.f32.mrb[0].mxu0
        %v1988 = vpop.f32.mrb[0].mxu0
        %v1989 = vpop.f32.mrb[0].mxu0
        %1990 = vdwg.mxu0
        %v1991 = vadd.f32 %v1941, %v1986
        %v1992 = vadd.f32 %v1272, %v1991
        %v1993 = vsel %vm345, %v1992, 0.0
        %1994 = vadd.xlane.f32.xlu0 %v1993
        %v1995 = vpop.xlane.xlu0 %1994
        %v1996 = vmul.f32 %v1995, %v1046
        %v1997 = vsub.f32 %v1992, %v1996
        %v1998 = vmul.f32 %v1997, %v1997
        %v1999 = vsel %vm345, %v1998, 0.0
        %2000 = vadd.xlane.f32.xlu0 %v1999
        %v2001 = vpop.xlane.xlu0 %2000
        %v2002 = vmul.f32 %v2001, %v1046
        %v2003 = vadd.f32 %v2002, 1e-12
        %v2004 = vrsqrt.pop %v2003
        %v2005 = vmul.f32 %v1997, %v2004
        %v2006 = vlaneseq
        %v2007 = vshrl.u32 %v2006, 7
        %v2008 = vsub.s32 1, %v2007
        %v2009 = vrot.slane %v1274, %v2008
        %v2010 = vmul.f32 %v2005, %v2009
        %v2011 = vlaneseq
        %v2012 = vshrl.u32 %v2011, 7
        %v2013 = vsub.s32 2, %v2012
        %v2014 = vrot.slane %v1274, %v2013
        %v2015 = vadd.f32 %v2010, %v2014
        %v2016 = vpack.c.bf16 %v2015, %v2015
        %s2017 = scalar_lea.vmem %s4, 16
        %v2018 = vld [vmem:[%s2017] sm:$0xf]
        %v2019 = vld [vmem:[%s2017 + $0x4] sm:$0xf]
        %v2020 = vld [vmem:[%s2017 + $0x8] sm:$0xf]
        %v2021 = vld [vmem:[%s2017 + $0xc] sm:$0xf]
        %v2022 = vlaneseq
        %v2023 = vshrl.u32 %v2022, 7
        %v2024 = vsub.s32 3, %v2023
        %v2025 = vrot.slane %v311, %v2024
        %v2030 = vunpack.c.l.b16 %v2018
        %v2031 = vunpack.c.l.b16 %v2019
        %v2032 = vunpack.c.l.b16 %v2020
        %v2033 = vunpack.c.l.b16 %v2021
        %v2034 = vpack.c.b16 %v2031, %v2030
        %v2035 = vpack.c.b16 %v2033, %v2032
        %v2039 = vsel %vm345, %v2016, 0
        %2041 = vmatprep.subr.bf16.mxu0 0
        %2042 = vmatpush1.bf16.msra.mxu0 %v2034
        %2043 = vmatprep.subr.bf16.mxu0 0
        %2044 = vmatpush1.bf16.msra.mxu0 %v2035
        %2045 = vmatprep.subr.bf16.mxu0 0
        %2046 = vmatpush1.bf16.msra.mxu0 0
        %2047 = vmatprep.subr.bf16.mxu0 0
        %2048 = vmatpush1.bf16.msra.mxu0 0
        %2049 = vmatprep.subr.bf16.mxu0 0
        %2050 = vmatpush1.bf16.msra.mxu0 0
        %2051 = vmatprep.subr.bf16.mxu0 0
        %2052 = vmatpush1.bf16.msra.mxu0 0
        %2053 = vmatprep.subr.bf16.mxu0 0
        %2054 = vmatpush1.bf16.msra.mxu0 0
        %2055 = vmatprep.subr.bf16.mxu0 0
        %2056 = vmatpush1.bf16.msra.mxu0 0
        %2057 = vmatprep.subr.bf16.mxu0 0
        %2058 = vmatpush1.bf16.msra.mxu0 0
        %2059 = vmatprep.subr.bf16.mxu0 0
        %2060 = vmatpush1.bf16.msra.mxu0 0
        %2061 = vmatprep.subr.bf16.mxu0 0
        %2062 = vmatpush1.bf16.msra.mxu0 0
        %2063 = vmatprep.subr.bf16.mxu0 0
        %2064 = vmatpush1.bf16.msra.mxu0 0
        %2065 = vmatprep.subr.bf16.mxu0 0
        %2066 = vmatpush1.bf16.msra.mxu0 0
        %2067 = vmatprep.subr.bf16.mxu0 0
        %2068 = vmatpush1.bf16.msra.mxu0 0
        %2069 = vmatprep.subr.bf16.mxu0 0
        %2070 = vmatpush1.bf16.msra.mxu0 0
        %2071 = vmatprep.subr.bf16.mxu0 0
        %2072 = vmatpush1.bf16.msra.mxu0 0
        %2073 = vmatprep.mubr.bf16.mxu0 0
        %2074 = vmatmul.mubr.bf16.gmra.mrb[0].mxu0 %v2039
        %v2075 = vpop.f32.mrb[0].mxu0
        %v2076 = vadd.f32 %v2025, %v2075
        %v2077 = vpop.f32.mrb[0].mxu0
        %v2078 = vpop.f32.mrb[0].mxu0
        %v2079 = vpop.f32.mrb[0].mxu0
        %2080 = vdwg.mxu0
        %v2081 = vmul.f32 %v2076, 0.5
        %v2082 = vmul.f32 %v2076, 0.044715
        %v2083 = vmul.f32 %v2082, %v2076
        %v2084 = vmul.f32 %v2083, %v2076
        %v2085 = vadd.f32 %v2076, %v2084
        %v2086 = vmul.f32 %v2085, 0.7978846
        %v2087 = vtanh.pop %v2086
        %v2088 = vadd.f32 %v2087, 1.0
        %v2089 = vmul.f32 %v2081, %v2088
        %v2090 = vpack.c.bf16 %v2089, %v2089
        %s2091 = scalar_lea.vmem %s5, 64
        %v2092 = vld [vmem:[%s2091] sm:$0xf]
        %v2093 = vld [vmem:[%s2091 + $0x4] sm:$0xf]
        %v2094 = vld [vmem:[%s2091 + $0x8] sm:$0xf]
        %v2095 = vld [vmem:[%s2091 + $0xc] sm:$0xf]
        %v2096 = vld [vmem:[%s2091 + $0x10] sm:$0xf]
        %v2097 = vld [vmem:[%s2091 + $0x14] sm:$0xf]
        %v2098 = vld [vmem:[%s2091 + $0x18] sm:$0xf]
        %v2099 = vld [vmem:[%s2091 + $0x1c] sm:$0xf]
        %v2100 = vld [vmem:[%s2091 + $0x20] sm:$0xf]
        %v2101 = vld [vmem:[%s2091 + $0x24] sm:$0xf]
        %v2102 = vld [vmem:[%s2091 + $0x28] sm:$0xf]
        %v2103 = vld [vmem:[%s2091 + $0x2c] sm:$0xf]
        %v2104 = vld [vmem:[%s2091 + $0x30] sm:$0xf]
        %v2105 = vld [vmem:[%s2091 + $0x34] sm:$0xf]
        %v2106 = vld [vmem:[%s2091 + $0x38] sm:$0xf]
        %v2107 = vld [vmem:[%s2091 + $0x3c] sm:$0xf]
        %v2108 = vlaneseq
        %v2109 = vshrl.u32 %v2108, 7
        %v2110 = vsub.s32 3, %v2109
        %v2111 = vrot.slane %v1274, %v2110
        %v2128 = vunpack.c.l.b16 %v2092
        %v2129 = vunpack.c.l.b16 %v2093
        %v2130 = vunpack.c.l.b16 %v2094
        %v2131 = vunpack.c.l.b16 %v2095
        %v2132 = vunpack.c.l.b16 %v2096
        %v2133 = vunpack.c.l.b16 %v2097
        %v2134 = vunpack.c.l.b16 %v2098
        %v2135 = vunpack.c.l.b16 %v2099
        %v2136 = vunpack.c.l.b16 %v2100
        %v2137 = vunpack.c.l.b16 %v2101
        %v2138 = vunpack.c.l.b16 %v2102
        %v2139 = vunpack.c.l.b16 %v2103
        %v2140 = vunpack.c.l.b16 %v2104
        %v2141 = vunpack.c.l.b16 %v2105
        %v2142 = vunpack.c.l.b16 %v2106
        %v2143 = vunpack.c.l.b16 %v2107
        %v2144 = vpack.c.b16 %v2129, %v2128
        %v2145 = vpack.c.b16 %v2131, %v2130
        %v2146 = vpack.c.b16 %v2133, %v2132
        %v2147 = vpack.c.b16 %v2135, %v2134
        %v2148 = vpack.c.b16 %v2137, %v2136
        %v2149 = vpack.c.b16 %v2139, %v2138
        %v2150 = vpack.c.b16 %v2141, %v2140
        %v2151 = vpack.c.b16 %v2143, %v2142
        %2160 = vmatprep.subr.bf16.mxu0 0
        %2161 = vmatpush1.bf16.msra.mxu0 %v2144
        %2162 = vmatprep.subr.bf16.mxu0 0
        %2163 = vmatpush1.bf16.msra.mxu0 %v2145
        %2164 = vmatprep.subr.bf16.mxu0 0
        %2165 = vmatpush1.bf16.msra.mxu0 %v2146
        %2166 = vmatprep.subr.bf16.mxu0 0
        %2167 = vmatpush1.bf16.msra.mxu0 %v2147
        %2168 = vmatprep.subr.bf16.mxu0 0
        %2169 = vmatpush1.bf16.msra.mxu0 %v2148
        %2170 = vmatprep.subr.bf16.mxu0 0
        %2171 = vmatpush1.bf16.msra.mxu0 %v2149
        %2172 = vmatprep.subr.bf16.mxu0 0
        %2173 = vmatpush1.bf16.msra.mxu0 %v2150
        %2174 = vmatprep.subr.bf16.mxu0 0
        %2175 = vmatpush1.bf16.msra.mxu0 %v2151
        %2176 = vmatprep.subr.bf16.mxu0 0
        %2177 = vmatpush1.bf16.msra.mxu0 0
        %2178 = vmatprep.subr.bf16.mxu0 0
        %2179 = vmatpush1.bf16.msra.mxu0 0
        %2180 = vmatprep.subr.bf16.mxu0 0
        %2181 = vmatpush1.bf16.msra.mxu0 0
        %2182 = vmatprep.subr.bf16.mxu0 0
        %2183 = vmatpush1.bf16.msra.mxu0 0
        %2184 = vmatprep.subr.bf16.mxu0 0
        %2185 = vmatpush1.bf16.msra.mxu0 0
        %2186 = vmatprep.subr.bf16.mxu0 0
        %2187 = vmatpush1.bf16.msra.mxu0 0
        %2188 = vmatprep.subr.bf16.mxu0 0
        %2189 = vmatpush1.bf16.msra.mxu0 0
        %2190 = vmatprep.subr.bf16.mxu0 0
        %2191 = vmatpush1.bf16.msra.mxu0 0
        %2192 = vmatprep.mubr.bf16.mxu0 0
        %2193 = vmatmul.mubr.bf16.gmra.mrb[0].mxu0 %v2090
        %v2194 = vpop.f32.mrb[0].mxu0
        %v2195 = vadd.f32 %v2111, %v2194
        %v2196 = vpop.f32.mrb[0].mxu0
        %v2197 = vpop.f32.mrb[0].mxu0
        %v2198 = vpop.f32.mrb[0].mxu0
        %2199 = vdwg.mxu0
        %v2200 = vadd.f32 %v2015, %v2195
        %v2201 = vsel %vm345, %v2200, 0.0
        %2202 = vadd.xlane.f32.xlu0 %v2201
        %v2203 = vpop.xlane.xlu0 %2202
        %v2204 = vmul.f32 %v2203, %v1046
        %v2205 = vsub.f32 %v2200, %v2204
        %v2206 = vmul.f32 %v2205, %v2205
        %v2207 = vsel %vm345, %v2206, 0.0
        %2208 = vadd.xlane.f32.xlu0 %v2207
        %v2209 = vpop.xlane.xlu0 %2208
        %v2210 = vmul.f32 %v2209, %v1046
        %v2211 = vadd.f32 %v2210, 1e-12
        %v2212 = vrsqrt.pop %v2211
        %v2213 = vmul.f32 %v2205, %v2212
        %v2214 = vlaneseq
        %v2215 = vshrl.u32 %v2214, 7
        %v2216 = vsub.s32 4, %v2215
        %v2217 = vrot.slane %v1274, %v2216
        %v2218 = vmul.f32 %v2213, %v2217
        %v2219 = vlaneseq
        %v2220 = vshrl.u32 %v2219, 7
        %v2221 = vsub.s32 5, %v2220
        %v2222 = vrot.slane %v1274, %v2221
        %v2223 = vadd.f32 %v2218, %v2222
        %v2224 = vpack.c.bf16 %v2223, %v2223
        %v2225 = vld [vmem:[%s6] sm:$0xf]
        %v2226 = vld [vmem:[%s6 + $0x4] sm:$0xf]
        %v2227 = vld [vmem:[%s6 + $0x8] sm:$0xf]
        %v2228 = vld [vmem:[%s6 + $0xc] sm:$0xf]
        %v2229 = vlaneseq
        %v2230 = vshrl.u32 %v2229, 7
        %v2231 = vsub.s32 4, %v2230
        %v2232 = vrot.slane %v311, %v2231
        %v2237 = vunpack.c.l.b16 %v2225
        %v2238 = vunpack.c.l.b16 %v2226
        %v2239 = vunpack.c.l.b16 %v2227
        %v2240 = vunpack.c.l.b16 %v2228
        %v2241 = vpack.c.b16 %v2238, %v2237
        %v2242 = vpack.c.b16 %v2240, %v2239
        %v2246 = vsel %vm345, %v2224, 0
        %2248 = vmatprep.subr.bf16.mxu0 0
        %2249 = vmatpush1.bf16.msra.mxu0 %v2241
        %2250 = vmatprep.subr.bf16.mxu0 0
        %2251 = vmatpush1.bf16.msra.mxu0 %v2242
        %2252 = vmatprep.subr.bf16.mxu0 0
        %2253 = vmatpush1.bf16.msra.mxu0 0
        %2254 = vmatprep.subr.bf16.mxu0 0
        %2255 = vmatpush1.bf16.msra.mxu0 0
        %2256 = vmatprep.subr.bf16.mxu0 0
        %2257 = vmatpush1.bf16.msra.mxu0 0
        %2258 = vmatprep.subr.bf16.mxu0 0
        %2259 = vmatpush1.bf16.msra.mxu0 0
        %2260 = vmatprep.subr.bf16.mxu0 0
        %2261 = vmatpush1.bf16.msra.mxu0 0
        %2262 = vmatprep.subr.bf16.mxu0 0
        %2263 = vmatpush1.bf16.msra.mxu0 0
        %2264 = vmatprep.subr.bf16.mxu0 0
        %2265 = vmatpush1.bf16.msra.mxu0 0
        %2266 = vmatprep.subr.bf16.mxu0 0
        %2267 = vmatpush1.bf16.msra.mxu0 0
        %2268 = vmatprep.subr.bf16.mxu0 0
        %2269 = vmatpush1.bf16.msra.mxu0 0
        %2270 = vmatprep.subr.bf16.mxu0 0
        %2271 = vmatpush1.bf16.msra.mxu0 0
        %2272 = vmatprep.subr.bf16.mxu0 0
        %2273 = vmatpush1.bf16.msra.mxu0 0
        %2274 = vmatprep.subr.bf16.mxu0 0
        %2275 = vmatpush1.bf16.msra.mxu0 0
        %2276 = vmatprep.subr.bf16.mxu0 0
        %2277 = vmatpush1.bf16.msra.mxu0 0
        %2278 = vmatprep.subr.bf16.mxu0 0
        %2279 = vmatpush1.bf16.msra.mxu0 0
        %2280 = vmatprep.mubr.bf16.mxu0 0
        %2281 = vmatmul.mubr.bf16.gmra.mrb[0].mxu0 %v2246
        %v2282 = vpop.f32.mrb[0].mxu0
        %v2283 = vadd.f32 %v2232, %v2282
        %v2284 = vpop.f32.mrb[0].mxu0
        %v2285 = vpop.f32.mrb[0].mxu0
        %v2286 = vpop.f32.mrb[0].mxu0
        %2287 = vdwg.mxu0
        %2288 = vmax.xlane.f32.xlu0 %v2283
        %v2289 = vpop.xlane.xlu0 %2288
        %v2290 = vsub.f32 %v2283, %v2289
        %v2291 = vmul.f32 %v2290, 1.442695
        %v2292 = vpow.pop %v2291
        %2293 = vadd.xlane.f32.xlu0 %v2292
        %v2294 = vpop.xlane.xlu0 %2293
        %v2295 = vrcp.pop %v2294
        %v2296 = vmul.f32 %v2292, %v2295
        %2297 = vst [vmem:[%s303] sm:$0xff] %v2296
        %s2298 = sand.u32 %s210, 1
        %s2299 = scalar_lea.sflag [#allocation5], %s2298
        %s2300 = sand.u32 %s210, 1
        %s2301 = smul.addr %s2300, 8
        %s2302 = scalar_lea.vmem [#allocation4], %s2301
        // Predicated region
        $region53: #{tpu_custom_call.1} parent=51 // pred_check
          %p2303 = pneg %p220
        $region54: #{tpu_custom_call.1} parent=51 // pred_check_branch
          %2305 = sbr.rel (%p2303) target = $region56
        $region55: #{tpu_custom_call.1} parent=51 // pred_region
          %s2307 = ssub.s32 128, 128
          %2308 = vsyncadd %s2299, %s2307
          %s2309 = smul.addr %s29, 128
          %s2310 = scalar_lea.hbm %s9, %s2309
          %s2312 = sshll.u32 %s2302, 4
          %s2313 = int_to_ptr.vmem [resolvable:$true] %s2312
          %2315 = dma.vmem_to_hbm [thread:$0]  %s2313, 128, %s2310, %s2299
        $region56: #{tpu_custom_call.1} parent=51 // pred_fallthru
          _
      $region52: #{tpu_custom_call.1} parent=5 // pred_fallthru
        _
      %p2316 = scmp.le.s32.totalorder 2, %s24
      // Predicated region
      $region57: #{tpu_custom_call.1} parent=5 // pred_check
        %p2317 = pneg %p2316
      $region58: #{tpu_custom_call.1} parent=5 // pred_check_branch
        %2319 = sbr.rel (%p2317) target = $region60
      $region59: #{tpu_custom_call.1} parent=5 // pred_region
        %s2320 = ssub.s32 %s24, 2
        // Predicated region
        $region61: #{tpu_custom_call.1} parent=59 // pred_check
          %p2321 = pneg %p226
        $region62: #{tpu_custom_call.1} parent=59 // pred_check_branch
          %2323 = sbr.rel (%p2321) target = $region64
        $region63: #{tpu_custom_call.1} parent=59 // pred_region
          %s2324 = sand.u32 %s211, 1
          %s2325 = scalar_lea.sflag [#allocation5], %s2324
          %s2326 = sand.u32 %s211, 1
          %s2327 = smul.addr %s2326, 8
          %s2328 = scalar_lea.vmem [#allocation4], %s2327
          %2329 = dma.done %s2325, 128
        $region64: #{tpu_custom_call.1} parent=59 // pred_fallthru
          _
      $region60: #{tpu_custom_call.1} parent=5 // pred_fallthru
        _
    $region6: #{tpu_custom_call.1} parent=1 // loop_footer
      %s28 = sadd.s32 1, %s24
    $region7: #{tpu_custom_call.1} parent=1 // loop_footer_branch
      %23 = sbr.rel target = $region3
    $region8: #{tpu_custom_call.1} parent=1 // loop_exit
      _
    %2330 = vsyncpa [#allocation5], 1
    %s2331 = scalar_lea.sflag [#allocation5], 1
    %2332 = vsyncpa %s2331, 1

</llo_original>
